<compile_context>
chip_gen: v7x
topology: tpu7x:2x2x1
jax: 0.10.0
libtpu: 0.0.40
codegen_flags: <defaults>
</compile_context>

<pallas_src>
import jax
import jax.numpy as jnp
from jax import lax
from jax.experimental import pallas as pl
from jax.experimental.pallas import tpu as pltpu

EPS = 1e-5
LANE = 128


def _round_up(n, m):
    return (n + m - 1) // m * m


def _bn_relu(y, gamma, beta, relu=True):
    """Training-mode BatchNorm (biased variance) fused into one scale/shift.

    y: (N, C) f32, gamma/beta: (1, C).  One sweep for sum / sum-of-squares,
    rsqrt goes to the EUP slot, then a single y*scale + shift FMA pass.
    """
    inv_n = 1.0 / y.shape[0]
    s1 = jnp.sum(y, axis=0, keepdims=True)
    s2 = jnp.sum(y * y, axis=0, keepdims=True)
    mean = s1 * inv_n
    var = s2 * inv_n - mean * mean
    scale = gamma * lax.rsqrt(var + EPS)
    shift = beta - mean * scale
    out = y * scale + shift
    if relu:
        out = jnp.maximum(out, 0.0)
    return out


def bottleneck_kernel(x_ref, w1_ref, g1_ref, b1_ref,
                      w2_ref, g2_ref, b2_ref,
                      w3_ref, g3_ref, b3_ref,
                      o_ref, yp_ref):
    B, H, W, C = x_ref.shape          # C = padded inplanes (multiple of 128)
    P = w1_ref.shape[1]               # padded planes   (multiple of 128)
    N = B * H * W

    # Leading-dim collapse only (last dim stays a full 128-lane group): free.
    xf = x_ref[...].reshape(N, C)

    # ---- conv1 (1x1) + bn1 + relu ---------------------------------------
    y = jnp.dot(xf, w1_ref[...], preferred_element_type=jnp.float32)
    y = _bn_relu(y, g1_ref[...], b1_ref[...])

    # ---- conv2 (3x3, stride=1, pad=1) + bn2 + relu -----------------------
    # Zero only the 1-element halo ring of the padded scratch; the interior is
    # written exactly once.  Then gather the 9 taps into one im2col slab and
    # issue a single K = 9*P matmul on the MXU.
    zrow = jnp.zeros((B, 1, W + 2, P), jnp.float32)
    zcol = jnp.zeros((B, H, 1, P), jnp.float32)
    yp_ref[:, 0:1, 0:W + 2, :] = zrow
    yp_ref[:, H + 1:H + 2, 0:W + 2, :] = zrow
    yp_ref[:, 1:H + 1, 0:1, :] = zcol
    yp_ref[:, 1:H + 1, W + 1:W + 2, :] = zcol
    yp_ref[:, 1:H + 1, 1:W + 1, :] = y.reshape(B, H, W, P)

    taps = [yp_ref[:, dy:dy + H, dx:dx + W, :].reshape(N, P)
            for dy in range(3) for dx in range(3)]
    patches = jnp.concatenate(taps, axis=-1)          # (N, 9*P), lane-dense
    y = jnp.dot(patches, w2_ref[...], preferred_element_type=jnp.float32)
    y = _bn_relu(y, g2_ref[...], b2_ref[...])

    # ---- conv3 (1x1, expansion 4) + bn3 + residual + relu ----------------
    y = jnp.dot(y, w3_ref[...], preferred_element_type=jnp.float32)
    y = _bn_relu(y, g3_ref[...], b3_ref[...], relu=False)
    y = jnp.maximum(y + xf, 0.0)      # identity path (stride=1, no downsample)
    o_ref[...] = y.reshape(B, H, W, C).astype(o_ref.dtype)


def bottleneck_forward(x, params):
    """x: (B, H, W, Cin) NHWC float32.  Returns (B, H, W, Cin)."""
    B, H, W, Cin = x.shape
    P = params["w1"].shape[1]
    assert params["w3"].shape[1] == Cin, \
        "stride=1 / downsample=None requires inplanes == planes * 4"

    Cp = _round_up(Cin, LANE)
    Pp = _round_up(P, LANE)

    # Pad channels to a multiple of 128 (layout plumbing only): padded
    # channels see zero weights / gamma / beta, so they stay exactly zero
    # through conv/BN/ReLU/residual and are sliced off at the end.
    xp = jnp.zeros((B, H, W, Cp), x.dtype).at[..., :Cin].set(x)
    w1 = jnp.zeros((Cp, Pp), jnp.float32).at[:Cin, :P].set(params["w1"])
    w2 = jnp.zeros((3, 3, Pp, Pp), jnp.float32).at[:, :, :P, :P].set(params["w2"])
    w2 = w2.reshape(9 * Pp, Pp)       # im2col weight: rows ordered (dy, dx, cin)
    w3 = jnp.zeros((Pp, Cp), jnp.float32).at[:P, :Cin].set(params["w3"])

    def padv(v, n):
        return jnp.zeros((1, n), jnp.float32).at[:, :v.shape[-1]].set(
            v.reshape(1, -1).astype(jnp.float32))

    g1, b1 = padv(params["g1"], Pp), padv(params["b1"], Pp)
    g2, b2 = padv(params["g2"], Pp), padv(params["b2"], Pp)
    g3, b3 = padv(params["g3"], Cp), padv(params["b3"], Cp)

    Wp2 = _round_up(W + 2, 8)         # sublane-friendly halo scratch width
    vmem = pl.BlockSpec(memory_space=pltpu.MemorySpace.VMEM)
    args = (xp, w1, g1, b1, w2, g2, b2, w3, g3, b3)

    n = B * H * W
    flops = 2 * n * (Cp * Pp + 9 * Pp * Pp + Pp * Cp) + 12 * n * (Cp + 2 * Pp)
    bytes_accessed = 4 * (xp.size + w1.size + w2.size + w3.size + n * Cp)

    out = pl.pallas_call(
        bottleneck_kernel,
        out_shape=jax.ShapeDtypeStruct((B, H, W, Cp), x.dtype),
        in_specs=[vmem] * len(args),
        out_specs=vmem,
        scratch_shapes=[pltpu.VMEM((B, H + 2, Wp2, Pp), jnp.float32)],
        compiler_params=pltpu.CompilerParams(
            vmem_limit_bytes=32 * 1024 * 1024),
        cost_estimate=pl.CostEstimate(
            flops=int(flops),
            transcendentals=int(Cp + 2 * Pp),
            bytes_accessed=int(bytes_accessed)),
    )(*args)
    return out[..., :Cin]


def bottleneck_reference(x, params):
    """Pure-JAX reference (NHWC, unpadded) for correctness checking."""
    def bn(y, g, b):
        mean = jnp.mean(y, axis=(0, 1, 2), keepdims=True)
        var = jnp.mean((y - mean) ** 2, axis=(0, 1, 2), keepdims=True)
        return (y - mean) * lax.rsqrt(var + EPS) * g.reshape(1, 1, 1, -1) \
            + b.reshape(1, 1, 1, -1)

    dn = ("NHWC", "HWIO", "NHWC")
    y = jnp.einsum("bhwc,cd->bhwd", x, params["w1"])
    y = jax.nn.relu(bn(y, params["g1"], params["b1"]))
    y = lax.conv_general_dilated(y, params["w2"], (1, 1), "SAME",
                                 dimension_numbers=dn)
    y = jax.nn.relu(bn(y, params["g2"], params["b2"]))
    y = jnp.einsum("bhwc,cd->bhwd", y, params["w3"])
    y = bn(y, params["g3"], params["b3"])
    return jax.nn.relu(y + x)


if __name__ == "__main__":
    key = jax.random.PRNGKey(0)
    B, H, W = 2, 16, 16
    planes = 4
    inplanes = planes * 4              # expansion=4, so the residual add is valid

    ks = jax.random.split(key, 10)
    x = jax.random.normal(ks[0], (B, H, W, inplanes), jnp.float32)

    params = {
        # conv1: PyTorch (P, Cin, 1, 1) -> (Cin, P)
        "w1": 0.2 * jax.random.normal(ks[1], (inplanes, planes), jnp.float32),
        "g1": 1.0 + 0.1 * jax.random.normal(ks[2], (1, planes), jnp.float32),
        "b1": 0.1 * jax.random.normal(ks[3], (1, planes), jnp.float32),
        # conv2: PyTorch (P, P, 3, 3) -> HWIO (3, 3, P, P)
        "w2": 0.2 * jax.random.normal(ks[4], (3, 3, planes, planes),
                                      jnp.float32),
        "g2": 1.0 + 0.1 * jax.random.normal(ks[5], (1, planes), jnp.float32),
        "b2": 0.1 * jax.random.normal(ks[6], (1, planes), jnp.float32),
        # conv3: PyTorch (4P, P, 1, 1) -> (P, 4P)
        "w3": 0.2 * jax.random.normal(ks[7], (planes, inplanes), jnp.float32),
        "g3": 1.0 + 0.1 * jax.random.normal(ks[8], (1, inplanes), jnp.float32),
        "b3": 0.1 * jax.random.normal(ks[9], (1, inplanes), jnp.float32),
    }

    out = jax.block_until_ready(bottleneck_forward(x, params))
    ref = jax.block_until_ready(bottleneck_reference(x, params))
    assert out.shape == (B, H, W, inplanes)
    err = float(jnp.max(jnp.abs(out - ref)))
    assert jnp.allclose(out, ref, atol=1e-3, rtol=1e-3), err
    print("KERNEL_OK")
</pallas_src>

<mosaic_0001>
module attributes {stable_mosaic.version = 11 : i64} {
  func.func @bottleneck_kernel(%arg0: memref<2x16x16x128xf32, #tpu.memory_space<vmem>>, %arg1: memref<128x128xf32, #tpu.memory_space<vmem>>, %arg2: memref<1x128xf32, #tpu.memory_space<vmem>>, %arg3: memref<1x128xf32, #tpu.memory_space<vmem>>, %arg4: memref<1152x128xf32, #tpu.memory_space<vmem>>, %arg5: memref<1x128xf32, #tpu.memory_space<vmem>>, %arg6: memref<1x128xf32, #tpu.memory_space<vmem>>, %arg7: memref<128x128xf32, #tpu.memory_space<vmem>>, %arg8: memref<1x128xf32, #tpu.memory_space<vmem>>, %arg9: memref<1x128xf32, #tpu.memory_space<vmem>>, %arg10: memref<2x16x16x128xf32, #tpu.memory_space<vmem>>, %arg11: memref<2x18x24x128xf32, #tpu.memory_space<vmem>>) attributes {dimension_semantics = [], scalar_prefetch = 0 : i64, scratch_operands = 1 : i64, tpu.core_type = #tpu.core_type<tc>} {
    %c0 = arith.constant 0 : index
    %c0_0 = arith.constant 0 : index
    %c0_1 = arith.constant 0 : index
    %c0_2 = arith.constant 0 : index
    %0 = vector.load %arg0[%c0, %c0_0, %c0_1, %c0_2] : memref<2x16x16x128xf32, #tpu.memory_space<vmem>>, vector<2x16x16x128xf32>
    %1 = vector.shape_cast %0 : vector<2x16x16x128xf32> to vector<512x128xf32>
    %c0_3 = arith.constant 0 : index
    %c0_4 = arith.constant 0 : index
    %2 = vector.load %arg1[%c0_3, %c0_4] : memref<128x128xf32, #tpu.memory_space<vmem>>, vector<128x128xf32>
    %cst = arith.constant dense<0.000000e+00> : vector<512x128xf32>
    %3 = tpu.matmul %1, %2, %cst {dimension_numbers = #tpu.dot_dimension_numbers<[1], [0], [0], [1], [0, 0, 1, 1], [], []>} : vector<512x128xf32>, vector<128x128xf32>, vector<512x128xf32> -> vector<512x128xf32>
    %c0_5 = arith.constant 0 : index
    %c0_6 = arith.constant 0 : index
    %4 = vector.load %arg2[%c0_5, %c0_6] : memref<1x128xf32, #tpu.memory_space<vmem>>, vector<1x128xf32>
    %c0_7 = arith.constant 0 : index
    %c0_8 = arith.constant 0 : index
    %5 = vector.load %arg3[%c0_7, %c0_8] : memref<1x128xf32, #tpu.memory_space<vmem>>, vector<1x128xf32>
    %cst_9 = arith.constant dense<0.000000e+00> : vector<128xf32>
    %6 = vector.multi_reduction <add>, %3, %cst_9 [0] : vector<512x128xf32> to vector<128xf32>
    %7 = vector.shape_cast %6 : vector<128xf32> to vector<1x128xf32>
    %8 = arith.mulf %3, %3 : vector<512x128xf32>
    %cst_10 = arith.constant dense<0.000000e+00> : vector<128xf32>
    %9 = vector.multi_reduction <add>, %8, %cst_10 [0] : vector<512x128xf32> to vector<128xf32>
    %10 = vector.shape_cast %9 : vector<128xf32> to vector<1x128xf32>
    %cst_11 = arith.constant 0.001953125 : f32
    %11 = vector.broadcast %cst_11 : f32 to vector<1x128xf32>
    %12 = arith.mulf %7, %11 : vector<1x128xf32>
    %cst_12 = arith.constant 0.001953125 : f32
    %13 = vector.broadcast %cst_12 : f32 to vector<1x128xf32>
    %14 = arith.mulf %10, %13 : vector<1x128xf32>
    %15 = arith.mulf %12, %12 : vector<1x128xf32>
    %16 = arith.subf %14, %15 : vector<1x128xf32>
    %cst_13 = arith.constant 9.99999974E-6 : f32
    %17 = vector.broadcast %cst_13 : f32 to vector<1x128xf32>
    %18 = arith.addf %16, %17 : vector<1x128xf32>
    %19 = math.rsqrt %18 : vector<1x128xf32>
    %20 = arith.mulf %4, %19 : vector<1x128xf32>
    %21 = arith.mulf %12, %20 : vector<1x128xf32>
    %22 = arith.subf %5, %21 : vector<1x128xf32>
    %23 = vector.broadcast %20 : vector<1x128xf32> to vector<512x128xf32>
    %24 = arith.mulf %3, %23 : vector<512x128xf32>
    %25 = vector.broadcast %22 : vector<1x128xf32> to vector<512x128xf32>
    %26 = arith.addf %24, %25 : vector<512x128xf32>
    %cst_14 = arith.constant 0.000000e+00 : f32
    %27 = vector.broadcast %cst_14 : f32 to vector<512x128xf32>
    %28 = arith.maximumf %26, %27 : vector<512x128xf32>
    %cst_15 = arith.constant 0.000000e+00 : f32
    %29 = vector.broadcast %cst_15 : f32 to vector<2x1x18x128xf32>
    %cst_16 = arith.constant 0.000000e+00 : f32
    %30 = vector.broadcast %cst_16 : f32 to vector<2x16x1x128xf32>
    %c0_17 = arith.constant 0 : index
    %c0_18 = arith.constant 0 : index
    %c0_19 = arith.constant 0 : index
    %c0_20 = arith.constant 0 : index
    %31 = vector.load %arg11[%c0_17, %c0_18, %c0_19, %c0_20] : memref<2x18x24x128xf32, #tpu.memory_space<vmem>>, vector<2x1x18x128xf32>
    tpu.vector_store %arg11[%c0_17, %c0_18, %c0_19, %c0_20], %29 {strides = array<i32>} : memref<2x18x24x128xf32, #tpu.memory_space<vmem>>, vector<2x1x18x128xf32>,
    %c0_21 = arith.constant 0 : index
    %c17 = arith.constant 17 : index
    %c0_22 = arith.constant 0 : index
    %c0_23 = arith.constant 0 : index
    %32 = vector.load %arg11[%c0_21, %c17, %c0_22, %c0_23] : memref<2x18x24x128xf32, #tpu.memory_space<vmem>>, vector<2x1x18x128xf32>
    tpu.vector_store %arg11[%c0_21, %c17, %c0_22, %c0_23], %29 {strides = array<i32>} : memref<2x18x24x128xf32, #tpu.memory_space<vmem>>, vector<2x1x18x128xf32>,
    %c0_24 = arith.constant 0 : index
    %c1 = arith.constant 1 : index
    %c0_25 = arith.constant 0 : index
    %c0_26 = arith.constant 0 : index
    %33 = vector.load %arg11[%c0_24, %c1, %c0_25, %c0_26] : memref<2x18x24x128xf32, #tpu.memory_space<vmem>>, vector<2x16x1x128xf32>
    tpu.vector_store %arg11[%c0_24, %c1, %c0_25, %c0_26], %30 {strides = array<i32>} : memref<2x18x24x128xf32, #tpu.memory_space<vmem>>, vector<2x16x1x128xf32>,
    %c0_27 = arith.constant 0 : index
    %c1_28 = arith.constant 1 : index
    %c17_29 = arith.constant 17 : index
    %c0_30 = arith.constant 0 : index
    %34 = vector.load %arg11[%c0_27, %c1_28, %c17_29, %c0_30] : memref<2x18x24x128xf32, #tpu.memory_space<vmem>>, vector<2x16x1x128xf32>
    tpu.vector_store %arg11[%c0_27, %c1_28, %c17_29, %c0_30], %30 {strides = array<i32>} : memref<2x18x24x128xf32, #tpu.memory_space<vmem>>, vector<2x16x1x128xf32>,
    %35 = vector.shape_cast %28 : vector<512x128xf32> to vector<2x16x16x128xf32>
    %c0_31 = arith.constant 0 : index
    %c1_32 = arith.constant 1 : index
    %c1_33 = arith.constant 1 : index
    %c0_34 = arith.constant 0 : index
    %36 = vector.load %arg11[%c0_31, %c1_32, %c1_33, %c0_34] : memref<2x18x24x128xf32, #tpu.memory_space<vmem>>, vector<2x16x16x128xf32>
    tpu.vector_store %arg11[%c0_31, %c1_32, %c1_33, %c0_34], %35 {strides = array<i32>} : memref<2x18x24x128xf32, #tpu.memory_space<vmem>>, vector<2x16x16x128xf32>,
    %c0_35 = arith.constant 0 : index
    %c0_36 = arith.constant 0 : index
    %c0_37 = arith.constant 0 : index
    %c0_38 = arith.constant 0 : index
    %37 = vector.load %arg11[%c0_35, %c0_36, %c0_37, %c0_38] : memref<2x18x24x128xf32, #tpu.memory_space<vmem>>, vector<2x16x16x128xf32>
    %38 = vector.shape_cast %37 : vector<2x16x16x128xf32> to vector<512x128xf32>
    %c0_39 = arith.constant 0 : index
    %c0_40 = arith.constant 0 : index
    %c1_41 = arith.constant 1 : index
    %c0_42 = arith.constant 0 : index
    %39 = vector.load %arg11[%c0_39, %c0_40, %c1_41, %c0_42] : memref<2x18x24x128xf32, #tpu.memory_space<vmem>>, vector<2x16x16x128xf32>
    %40 = vector.shape_cast %39 : vector<2x16x16x128xf32> to vector<512x128xf32>
    %c0_43 = arith.constant 0 : index
    %c0_44 = arith.constant 0 : index
    %c2 = arith.constant 2 : index
    %c0_45 = arith.constant 0 : index
    %41 = vector.load %arg11[%c0_43, %c0_44, %c2, %c0_45] : memref<2x18x24x128xf32, #tpu.memory_space<vmem>>, vector<2x16x16x128xf32>
    %42 = vector.shape_cast %41 : vector<2x16x16x128xf32> to vector<512x128xf32>
    %c0_46 = arith.constant 0 : index
    %c1_47 = arith.constant 1 : index
    %c0_48 = arith.constant 0 : index
    %c0_49 = arith.constant 0 : index
    %43 = vector.load %arg11[%c0_46, %c1_47, %c0_48, %c0_49] : memref<2x18x24x128xf32, #tpu.memory_space<vmem>>, vector<2x16x16x128xf32>
    %44 = vector.shape_cast %43 : vector<2x16x16x128xf32> to vector<512x128xf32>
    %c0_50 = arith.constant 0 : index
    %c1_51 = arith.constant 1 : index
    %c1_52 = arith.constant 1 : index
    %c0_53 = arith.constant 0 : index
    %45 = vector.load %arg11[%c0_50, %c1_51, %c1_52, %c0_53] : memref<2x18x24x128xf32, #tpu.memory_space<vmem>>, vector<2x16x16x128xf32>
    %46 = vector.shape_cast %45 : vector<2x16x16x128xf32> to vector<512x128xf32>
    %c0_54 = arith.constant 0 : index
    %c1_55 = arith.constant 1 : index
    %c2_56 = arith.constant 2 : index
    %c0_57 = arith.constant 0 : index
    %47 = vector.load %arg11[%c0_54, %c1_55, %c2_56, %c0_57] : memref<2x18x24x128xf32, #tpu.memory_space<vmem>>, vector<2x16x16x128xf32>
    %48 = vector.shape_cast %47 : vector<2x16x16x128xf32> to vector<512x128xf32>
    %c0_58 = arith.constant 0 : index
    %c2_59 = arith.constant 2 : index
    %c0_60 = arith.constant 0 : index
    %c0_61 = arith.constant 0 : index
    %49 = vector.load %arg11[%c0_58, %c2_59, %c0_60, %c0_61] : memref<2x18x24x128xf32, #tpu.memory_space<vmem>>, vector<2x16x16x128xf32>
    %50 = vector.shape_cast %49 : vector<2x16x16x128xf32> to vector<512x128xf32>
    %c0_62 = arith.constant 0 : index
    %c2_63 = arith.constant 2 : index
    %c1_64 = arith.constant 1 : index
    %c0_65 = arith.constant 0 : index
    %51 = vector.load %arg11[%c0_62, %c2_63, %c1_64, %c0_65] : memref<2x18x24x128xf32, #tpu.memory_space<vmem>>, vector<2x16x16x128xf32>
    %52 = vector.shape_cast %51 : vector<2x16x16x128xf32> to vector<512x128xf32>
    %c0_66 = arith.constant 0 : index
    %c2_67 = arith.constant 2 : index
    %c2_68 = arith.constant 2 : index
    %c0_69 = arith.constant 0 : index
    %53 = vector.load %arg11[%c0_66, %c2_67, %c2_68, %c0_69] : memref<2x18x24x128xf32, #tpu.memory_space<vmem>>, vector<2x16x16x128xf32>
    %54 = vector.shape_cast %53 : vector<2x16x16x128xf32> to vector<512x128xf32>
    %55 = tpu.concatenate %38, %40, %42, %44, %46, %48, %50, %52, %54 in 1 : vector<512x128xf32>, vector<512x128xf32>, vector<512x128xf32>, vector<512x128xf32>, vector<512x128xf32>, vector<512x128xf32>, vector<512x128xf32>, vector<512x128xf32>, vector<512x128xf32> -> vector<512x1152xf32>
    %c0_70 = arith.constant 0 : index
    %c0_71 = arith.constant 0 : index
    %56 = vector.load %arg4[%c0_70, %c0_71] : memref<1152x128xf32, #tpu.memory_space<vmem>>, vector<1152x128xf32>
    %cst_72 = arith.constant dense<0.000000e+00> : vector<512x128xf32>
    %57 = tpu.matmul %55, %56, %cst_72 {dimension_numbers = #tpu.dot_dimension_numbers<[1], [0], [0], [1], [0, 0, 1, 1], [], []>} : vector<512x1152xf32>, vector<1152x128xf32>, vector<512x128xf32> -> vector<512x128xf32>
    %c0_73 = arith.constant 0 : index
    %c0_74 = arith.constant 0 : index
    %58 = vector.load %arg5[%c0_73, %c0_74] : memref<1x128xf32, #tpu.memory_space<vmem>>, vector<1x128xf32>
    %c0_75 = arith.constant 0 : index
    %c0_76 = arith.constant 0 : index
    %59 = vector.load %arg6[%c0_75, %c0_76] : memref<1x128xf32, #tpu.memory_space<vmem>>, vector<1x128xf32>
    %cst_77 = arith.constant dense<0.000000e+00> : vector<128xf32>
    %60 = vector.multi_reduction <add>, %57, %cst_77 [0] : vector<512x128xf32> to vector<128xf32>
    %61 = vector.shape_cast %60 : vector<128xf32> to vector<1x128xf32>
    %62 = arith.mulf %57, %57 : vector<512x128xf32>
    %cst_78 = arith.constant dense<0.000000e+00> : vector<128xf32>
    %63 = vector.multi_reduction <add>, %62, %cst_78 [0] : vector<512x128xf32> to vector<128xf32>
    %64 = vector.shape_cast %63 : vector<128xf32> to vector<1x128xf32>
    %cst_79 = arith.constant 0.001953125 : f32
    %65 = vector.broadcast %cst_79 : f32 to vector<1x128xf32>
    %66 = arith.mulf %61, %65 : vector<1x128xf32>
    %cst_80 = arith.constant 0.001953125 : f32
    %67 = vector.broadcast %cst_80 : f32 to vector<1x128xf32>
    %68 = arith.mulf %64, %67 : vector<1x128xf32>
    %69 = arith.mulf %66, %66 : vector<1x128xf32>
    %70 = arith.subf %68, %69 : vector<1x128xf32>
    %cst_81 = arith.constant 9.99999974E-6 : f32
    %71 = vector.broadcast %cst_81 : f32 to vector<1x128xf32>
    %72 = arith.addf %70, %71 : vector<1x128xf32>
    %73 = math.rsqrt %72 : vector<1x128xf32>
    %74 = arith.mulf %58, %73 : vector<1x128xf32>
    %75 = arith.mulf %66, %74 : vector<1x128xf32>
    %76 = arith.subf %59, %75 : vector<1x128xf32>
    %77 = vector.broadcast %74 : vector<1x128xf32> to vector<512x128xf32>
    %78 = arith.mulf %57, %77 : vector<512x128xf32>
    %79 = vector.broadcast %76 : vector<1x128xf32> to vector<512x128xf32>
    %80 = arith.addf %78, %79 : vector<512x128xf32>
    %cst_82 = arith.constant 0.000000e+00 : f32
    %81 = vector.broadcast %cst_82 : f32 to vector<512x128xf32>
    %82 = arith.maximumf %80, %81 : vector<512x128xf32>
    %c0_83 = arith.constant 0 : index
    %c0_84 = arith.constant 0 : index
    %83 = vector.load %arg7[%c0_83, %c0_84] : memref<128x128xf32, #tpu.memory_space<vmem>>, vector<128x128xf32>
    %cst_85 = arith.constant dense<0.000000e+00> : vector<512x128xf32>
    %84 = tpu.matmul %82, %83, %cst_85 {dimension_numbers = #tpu.dot_dimension_numbers<[1], [0], [0], [1], [0, 0, 1, 1], [], []>} : vector<512x128xf32>, vector<128x128xf32>, vector<512x128xf32> -> vector<512x128xf32>
    %c0_86 = arith.constant 0 : index
    %c0_87 = arith.constant 0 : index
    %85 = vector.load %arg8[%c0_86, %c0_87] : memref<1x128xf32, #tpu.memory_space<vmem>>, vector<1x128xf32>
    %c0_88 = arith.constant 0 : index
    %c0_89 = arith.constant 0 : index
    %86 = vector.load %arg9[%c0_88, %c0_89] : memref<1x128xf32, #tpu.memory_space<vmem>>, vector<1x128xf32>
    %cst_90 = arith.constant dense<0.000000e+00> : vector<128xf32>
    %87 = vector.multi_reduction <add>, %84, %cst_90 [0] : vector<512x128xf32> to vector<128xf32>
    %88 = vector.shape_cast %87 : vector<128xf32> to vector<1x128xf32>
    %89 = arith.mulf %84, %84 : vector<512x128xf32>
    %cst_91 = arith.constant dense<0.000000e+00> : vector<128xf32>
    %90 = vector.multi_reduction <add>, %89, %cst_91 [0] : vector<512x128xf32> to vector<128xf32>
    %91 = vector.shape_cast %90 : vector<128xf32> to vector<1x128xf32>
    %cst_92 = arith.constant 0.001953125 : f32
    %92 = vector.broadcast %cst_92 : f32 to vector<1x128xf32>
    %93 = arith.mulf %88, %92 : vector<1x128xf32>
    %cst_93 = arith.constant 0.001953125 : f32
    %94 = vector.broadcast %cst_93 : f32 to vector<1x128xf32>
    %95 = arith.mulf %91, %94 : vector<1x128xf32>
    %96 = arith.mulf %93, %93 : vector<1x128xf32>
    %97 = arith.subf %95, %96 : vector<1x128xf32>
    %cst_94 = arith.constant 9.99999974E-6 : f32
    %98 = vector.broadcast %cst_94 : f32 to vector<1x128xf32>
    %99 = arith.addf %97, %98 : vector<1x128xf32>
    %100 = math.rsqrt %99 : vector<1x128xf32>
    %101 = arith.mulf %85, %100 : vector<1x128xf32>
    %102 = arith.mulf %93, %101 : vector<1x128xf32>
    %103 = arith.subf %86, %102 : vector<1x128xf32>
    %104 = vector.broadcast %101 : vector<1x128xf32> to vector<512x128xf32>
    %105 = arith.mulf %84, %104 : vector<512x128xf32>
    %106 = vector.broadcast %103 : vector<1x128xf32> to vector<512x128xf32>
    %107 = arith.addf %105, %106 : vector<512x128xf32>
    %108 = arith.addf %107, %1 : vector<512x128xf32>
    %cst_95 = arith.constant 0.000000e+00 : f32
    %109 = vector.broadcast %cst_95 : f32 to vector<512x128xf32>
    %110 = arith.maximumf %108, %109 : vector<512x128xf32>
    %111 = vector.shape_cast %110 : vector<512x128xf32> to vector<2x16x16x128xf32>
    %c0_96 = arith.constant 0 : index
    %c0_97 = arith.constant 0 : index
    %c0_98 = arith.constant 0 : index
    %c0_99 = arith.constant 0 : index
    %112 = vector.load %arg10[%c0_96, %c0_97, %c0_98, %c0_99] : memref<2x16x16x128xf32, #tpu.memory_space<vmem>>, vector<2x16x16x128xf32>
    tpu.vector_store %arg10[%c0_96, %c0_97, %c0_98, %c0_99], %111 {strides = array<i32>} : memref<2x16x16x128xf32, #tpu.memory_space<vmem>>, vector<2x16x16x128xf32>,
    return
  }
}

</mosaic_0001>

<llo_original>
// kernel: tpu_custom_call.1
$region0: #{tpu_custom_call.1}
  #allocation0 [shape = 'u32[]', space=smem, size = 0x4, offset = 0x4, fixed_abs, tag = 'smem constant byte address 0x4 - core index']
  #allocation1 [shape = 'u32[144,128]{1,0:T(1,128)}', space=vmem, size = 0x12000, scoped, tag = 'internal scratch']
  #allocation2 [shape = 'f32[2,18,24,128]{3,2,1,0:T(8,128)}', space=vmem, size = 0x6c000, scoped, tag = 'scratch operand']
  %s0 = inlined_call_operand.hbm [shape: f32[2,16,16,128], index: 0, kind: input, shape index: {}]
  %s1 = inlined_call_operand.hbm [shape: f32[128,128], index: 1, kind: input, shape index: {}]
  %s2 = inlined_call_operand.vmem [shape: f32[1,128], index: 2, kind: input, shape index: {}]
  %s3 = inlined_call_operand.vmem [shape: f32[1,128], index: 3, kind: input, shape index: {}]
  %s4 = inlined_call_operand.hbm [shape: f32[1152,128], index: 4, kind: input, shape index: {}]
  %s5 = inlined_call_operand.vmem [shape: f32[1,128], index: 5, kind: input, shape index: {}]
  %s6 = inlined_call_operand.vmem [shape: f32[1,128], index: 6, kind: input, shape index: {}]
  %s7 = inlined_call_operand.hbm [shape: f32[128,128], index: 7, kind: input, shape index: {}]
  %s8 = inlined_call_operand.vmem [shape: f32[1,128], index: 8, kind: input, shape index: {}]
  %s9 = inlined_call_operand.vmem [shape: f32[1,128], index: 9, kind: input, shape index: {}]
  %s10 = inlined_call_operand.hbm [shape: f32[2,16,16,128], index: 10, kind: output, shape index: {}]
  %s11 = sld [smem:[#allocation0]]
  $region66: #{tpu_custom_call.1} parent=0
    _
  %s13 = ssub.s32 1, %s11
  %s14 = scalar_select 0, %s13, %s11
  $region1: #{tpu_custom_call.1} parent=0
    #allocation3 [shape = 'u8[262144]{0}', space=vmem, size = 0x40000, scoped, tag = 'input window, operand 0, single buffered']
    #allocation4 [shape = 's32[1]{0}', space=sflag, size = 0x4, scoped, tag = 'scoped memory for tpu_custom_call.1']
    #allocation5 [shape = 's32[1]{0}', space=sflag, size = 0x4, scoped, tag = 'scoped memory for tpu_custom_call.1']
    #allocation6 [shape = 'u8[65536]{0}', space=vmem, size = 0x10000, scoped, tag = 'input window, operand 1, single buffered']
    #allocation7 [shape = 's32[1]{0}', space=sflag, size = 0x4, scoped, tag = 'scoped memory for tpu_custom_call.1']
    #allocation8 [shape = 'u8[589824]{0}', space=vmem, size = 0x90000, scoped, tag = 'input window, operand 4, single buffered']
    #allocation9 [shape = 'u8[65536]{0}', space=vmem, size = 0x10000, scoped, tag = 'input window, operand 7, single buffered']
    #allocation10 [shape = 's32[1]{0}', space=sflag, size = 0x4, scoped, tag = 'scoped memory for tpu_custom_call.1']
    #allocation11 [shape = 'u8[262144]{0}', space=vmem, size = 0x40000, scoped, tag = 'output window, operand 0, single buffered']
    %15 = vsyncpa [#allocation4], 0
    %16 = vsyncpa [#allocation7], 0
    %17 = vsyncpa [#allocation10], 0
    %18 = vsyncpa [#allocation5], 0
    // Predicated region
    $region2: #{tpu_custom_call.1} parent=1 // pred_check
      _
    $region3: #{tpu_custom_call.1} parent=1 // pred_check_branch
      %20 = sbr.rel (0) target = $region5
    $region4: #{tpu_custom_call.1} parent=1 // pred_region
      %s22 = ssub.s32 8192, 8192
      %23 = vsyncadd [#allocation4], %s22
      %s24 = sshll.u32 [#allocation3], 4
      %s25 = int_to_ptr.vmem [resolvable:$true] %s24
      %30 = dma.hbm_to_vmem [thread:$0]  %s0, 8192, %s25, [#allocation4], 128, 128, 8
    $region5: #{tpu_custom_call.1} parent=1 // pred_fallthru
      _
    // Predicated region
    $region6: #{tpu_custom_call.1} parent=1 // pred_check
      _
    $region7: #{tpu_custom_call.1} parent=1 // pred_check_branch
      %32 = sbr.rel (0) target = $region9
    $region8: #{tpu_custom_call.1} parent=1 // pred_region
      %s34 = ssub.s32 2048, 2048
      %35 = vsyncadd [#allocation7], %s34
      %s36 = sshll.u32 [#allocation6], 4
      %s37 = int_to_ptr.vmem [resolvable:$true] %s36
      %42 = dma.hbm_to_vmem [thread:$0]  %s1, 2048, %s37, [#allocation7], 128, 128, 8
    $region9: #{tpu_custom_call.1} parent=1 // pred_fallthru
      _
    // Predicated region
    $region10: #{tpu_custom_call.1} parent=1 // pred_check
      _
    $region11: #{tpu_custom_call.1} parent=1 // pred_check_branch
      %44 = sbr.rel (0) target = $region13
    $region12: #{tpu_custom_call.1} parent=1 // pred_region
      _
    $region13: #{tpu_custom_call.1} parent=1 // pred_fallthru
      _
    // Predicated region
    $region14: #{tpu_custom_call.1} parent=1 // pred_check
      _
    $region15: #{tpu_custom_call.1} parent=1 // pred_check_branch
      %46 = sbr.rel (0) target = $region17
    $region16: #{tpu_custom_call.1} parent=1 // pred_region
      _
    $region17: #{tpu_custom_call.1} parent=1 // pred_fallthru
      _
    // Predicated region
    $region18: #{tpu_custom_call.1} parent=1 // pred_check
      _
    $region19: #{tpu_custom_call.1} parent=1 // pred_check_branch
      %48 = sbr.rel (0) target = $region21
    $region20: #{tpu_custom_call.1} parent=1 // pred_region
      %s50 = ssub.s32 18432, 18432
      %51 = vsyncadd [#allocation7], %s50
      %s52 = sshll.u32 [#allocation8], 4
      %s53 = int_to_ptr.vmem [resolvable:$true] %s52
      %58 = dma.hbm_to_vmem [thread:$0]  %s4, 18432, %s53, [#allocation7], 128, 128, 8
    $region21: #{tpu_custom_call.1} parent=1 // pred_fallthru
      _
    // Predicated region
    $region22: #{tpu_custom_call.1} parent=1 // pred_check
      _
    $region23: #{tpu_custom_call.1} parent=1 // pred_check_branch
      %60 = sbr.rel (0) target = $region25
    $region24: #{tpu_custom_call.1} parent=1 // pred_region
      _
    $region25: #{tpu_custom_call.1} parent=1 // pred_fallthru
      _
    // Predicated region
    $region26: #{tpu_custom_call.1} parent=1 // pred_check
      _
    $region27: #{tpu_custom_call.1} parent=1 // pred_check_branch
      %62 = sbr.rel (0) target = $region29
    $region28: #{tpu_custom_call.1} parent=1 // pred_region
      _
    $region29: #{tpu_custom_call.1} parent=1 // pred_fallthru
      _
    // Predicated region
    $region30: #{tpu_custom_call.1} parent=1 // pred_check
      _
    $region31: #{tpu_custom_call.1} parent=1 // pred_check_branch
      %64 = sbr.rel (0) target = $region33
    $region32: #{tpu_custom_call.1} parent=1 // pred_region
      %s66 = ssub.s32 2048, 2048
      %67 = vsyncadd [#allocation10], %s66
      %s68 = sshll.u32 [#allocation9], 4
      %s69 = int_to_ptr.vmem [resolvable:$true] %s68
      %74 = dma.hbm_to_vmem [thread:$0]  %s7, 2048, %s69, [#allocation10], 128, 128, 8
    $region33: #{tpu_custom_call.1} parent=1 // pred_fallthru
      _
    // Predicated region
    $region34: #{tpu_custom_call.1} parent=1 // pred_check
      _
    $region35: #{tpu_custom_call.1} parent=1 // pred_check_branch
      %76 = sbr.rel (0) target = $region37
    $region36: #{tpu_custom_call.1} parent=1 // pred_region
      _
    $region37: #{tpu_custom_call.1} parent=1 // pred_fallthru
      _
    // Predicated region
    $region38: #{tpu_custom_call.1} parent=1 // pred_check
      _
    $region39: #{tpu_custom_call.1} parent=1 // pred_check_branch
      %78 = sbr.rel (0) target = $region41
    $region40: #{tpu_custom_call.1} parent=1 // pred_region
      _
    $region41: #{tpu_custom_call.1} parent=1 // pred_fallthru
      _
    // Predicated region
    $region42: #{tpu_custom_call.1} parent=1 // pred_check
      _
    $region43: #{tpu_custom_call.1} parent=1 // pred_check_branch
      %80 = sbr.rel (0) target = $region45
    $region44: #{tpu_custom_call.1} parent=1 // pred_region
      %81 = dma.done [#allocation4], 8192
    $region45: #{tpu_custom_call.1} parent=1 // pred_fallthru
      _
    // Predicated region
    $region46: #{tpu_custom_call.1} parent=1 // pred_check
      _
    $region47: #{tpu_custom_call.1} parent=1 // pred_check_branch
      %83 = sbr.rel (0) target = $region49
    $region48: #{tpu_custom_call.1} parent=1 // pred_region
      %84 = dma.done [#allocation7], 2048
    $region49: #{tpu_custom_call.1} parent=1 // pred_fallthru
      _
    // Predicated region
    $region50: #{tpu_custom_call.1} parent=1 // pred_check
      _
    $region51: #{tpu_custom_call.1} parent=1 // pred_check_branch
      %86 = sbr.rel (0) target = $region53
    $region52: #{tpu_custom_call.1} parent=1 // pred_region
      %87 = dma.done [#allocation7], 18432
    $region53: #{tpu_custom_call.1} parent=1 // pred_fallthru
      _
    // Predicated region
    $region54: #{tpu_custom_call.1} parent=1 // pred_check
      _
    $region55: #{tpu_custom_call.1} parent=1 // pred_check_branch
      %89 = sbr.rel (0) target = $region57
    $region56: #{tpu_custom_call.1} parent=1 // pred_region
      %90 = dma.done [#allocation10], 2048
    $region57: #{tpu_custom_call.1} parent=1 // pred_fallthru
      _
    %v91 = vld [vmem:[#allocation3] sm:$0xff]
    %v92 = vld [vmem:[#allocation3 + $0x8] sm:$0xff]
    %v93 = vld [vmem:[#allocation3 + $0x10] sm:$0xff]
    %v94 = vld [vmem:[#allocation3 + $0x18] sm:$0xff]
    %v95 = vld [vmem:[#allocation3 + $0x20] sm:$0xff]
    %v96 = vld [vmem:[#allocation3 + $0x28] sm:$0xff]
    %v97 = vld [vmem:[#allocation3 + $0x30] sm:$0xff]
    %v98 = vld [vmem:[#allocation3 + $0x38] sm:$0xff]
    %v99 = vld [vmem:[#allocation3 + $0x40] sm:$0xff]
    %v100 = vld [vmem:[#allocation3 + $0x48] sm:$0xff]
    %v101 = vld [vmem:[#allocation3 + $0x50] sm:$0xff]
    %v102 = vld [vmem:[#allocation3 + $0x58] sm:$0xff]
    %v103 = vld [vmem:[#allocation3 + $0x60] sm:$0xff]
    %v104 = vld [vmem:[#allocation3 + $0x68] sm:$0xff]
    %v105 = vld [vmem:[#allocation3 + $0x70] sm:$0xff]
    %v106 = vld [vmem:[#allocation3 + $0x78] sm:$0xff]
    %v107 = vld [vmem:[#allocation3 + $0x80] sm:$0xff]
    %v108 = vld [vmem:[#allocation3 + $0x88] sm:$0xff]
    %v109 = vld [vmem:[#allocation3 + $0x90] sm:$0xff]
    %v110 = vld [vmem:[#allocation3 + $0x98] sm:$0xff]
    %v111 = vld [vmem:[#allocation3 + $0xa0] sm:$0xff]
    %v112 = vld [vmem:[#allocation3 + $0xa8] sm:$0xff]
    %v113 = vld [vmem:[#allocation3 + $0xb0] sm:$0xff]
    %v114 = vld [vmem:[#allocation3 + $0xb8] sm:$0xff]
    %v115 = vld [vmem:[#allocation3 + $0xc0] sm:$0xff]
    %v116 = vld [vmem:[#allocation3 + $0xc8] sm:$0xff]
    %v117 = vld [vmem:[#allocation3 + $0xd0] sm:$0xff]
    %v118 = vld [vmem:[#allocation3 + $0xd8] sm:$0xff]
    %v119 = vld [vmem:[#allocation3 + $0xe0] sm:$0xff]
    %v120 = vld [vmem:[#allocation3 + $0xe8] sm:$0xff]
    %v121 = vld [vmem:[#allocation3 + $0xf0] sm:$0xff]
    %v122 = vld [vmem:[#allocation3 + $0xf8] sm:$0xff]
    %v123 = vld [vmem:[#allocation3 + $0x100] sm:$0xff]
    %v124 = vld [vmem:[#allocation3 + $0x108] sm:$0xff]
    %v125 = vld [vmem:[#allocation3 + $0x110] sm:$0xff]
    %v126 = vld [vmem:[#allocation3 + $0x118] sm:$0xff]
    %v127 = vld [vmem:[#allocation3 + $0x120] sm:$0xff]
    %v128 = vld [vmem:[#allocation3 + $0x128] sm:$0xff]
    %v129 = vld [vmem:[#allocation3 + $0x130] sm:$0xff]
    %v130 = vld [vmem:[#allocation3 + $0x138] sm:$0xff]
    %v131 = vld [vmem:[#allocation3 + $0x140] sm:$0xff]
    %v132 = vld [vmem:[#allocation3 + $0x148] sm:$0xff]
    %v133 = vld [vmem:[#allocation3 + $0x150] sm:$0xff]
    %v134 = vld [vmem:[#allocation3 + $0x158] sm:$0xff]
    %v135 = vld [vmem:[#allocation3 + $0x160] sm:$0xff]
    %v136 = vld [vmem:[#allocation3 + $0x168] sm:$0xff]
    %v137 = vld [vmem:[#allocation3 + $0x170] sm:$0xff]
    %v138 = vld [vmem:[#allocation3 + $0x178] sm:$0xff]
    %v139 = vld [vmem:[#allocation3 + $0x180] sm:$0xff]
    %v140 = vld [vmem:[#allocation3 + $0x188] sm:$0xff]
    %v141 = vld [vmem:[#allocation3 + $0x190] sm:$0xff]
    %v142 = vld [vmem:[#allocation3 + $0x198] sm:$0xff]
    %v143 = vld [vmem:[#allocation3 + $0x1a0] sm:$0xff]
    %v144 = vld [vmem:[#allocation3 + $0x1a8] sm:$0xff]
    %v145 = vld [vmem:[#allocation3 + $0x1b0] sm:$0xff]
    %v146 = vld [vmem:[#allocation3 + $0x1b8] sm:$0xff]
    %v147 = vld [vmem:[#allocation3 + $0x1c0] sm:$0xff]
    %v148 = vld [vmem:[#allocation3 + $0x1c8] sm:$0xff]
    %v149 = vld [vmem:[#allocation3 + $0x1d0] sm:$0xff]
    %v150 = vld [vmem:[#allocation3 + $0x1d8] sm:$0xff]
    %v151 = vld [vmem:[#allocation3 + $0x1e0] sm:$0xff]
    %v152 = vld [vmem:[#allocation3 + $0x1e8] sm:$0xff]
    %v153 = vld [vmem:[#allocation3 + $0x1f0] sm:$0xff]
    %v154 = vld [vmem:[#allocation3 + $0x1f8] sm:$0xff]
    %v155 = vld [vmem:[#allocation6] sm:$0xff]
    %v156 = vld [vmem:[#allocation6 + $0x8] sm:$0xff]
    %v157 = vld [vmem:[#allocation6 + $0x10] sm:$0xff]
    %v158 = vld [vmem:[#allocation6 + $0x18] sm:$0xff]
    %v159 = vld [vmem:[#allocation6 + $0x20] sm:$0xff]
    %v160 = vld [vmem:[#allocation6 + $0x28] sm:$0xff]
    %v161 = vld [vmem:[#allocation6 + $0x30] sm:$0xff]
    %v162 = vld [vmem:[#allocation6 + $0x38] sm:$0xff]
    %v163 = vld [vmem:[#allocation6 + $0x40] sm:$0xff]
    %v164 = vld [vmem:[#allocation6 + $0x48] sm:$0xff]
    %v165 = vld [vmem:[#allocation6 + $0x50] sm:$0xff]
    %v166 = vld [vmem:[#allocation6 + $0x58] sm:$0xff]
    %v167 = vld [vmem:[#allocation6 + $0x60] sm:$0xff]
    %v168 = vld [vmem:[#allocation6 + $0x68] sm:$0xff]
    %v169 = vld [vmem:[#allocation6 + $0x70] sm:$0xff]
    %v170 = vld [vmem:[#allocation6 + $0x78] sm:$0xff]
    %171 = vmatprep.subr.mxu0 0.0
    %172 = vmatpush1.msra.mxu0 %v155
    %173 = vmatprep.subr.mxu0 0.0
    %174 = vmatpush1.msra.mxu0 %v156
    %175 = vmatprep.subr.mxu0 0.0
    %176 = vmatpush1.msra.mxu0 %v157
    %177 = vmatprep.subr.mxu0 0.0
    %178 = vmatpush1.msra.mxu0 %v158
    %179 = vmatprep.subr.mxu0 0.0
    %180 = vmatpush1.msra.mxu0 %v159
    %181 = vmatprep.subr.mxu0 0.0
    %182 = vmatpush1.msra.mxu0 %v160
    %183 = vmatprep.subr.mxu0 0.0
    %184 = vmatpush1.msra.mxu0 %v161
    %185 = vmatprep.subr.mxu0 0.0
    %186 = vmatpush1.msra.mxu0 %v162
    %187 = vmatprep.subr.mxu0 0.0
    %188 = vmatpush1.msra.mxu0 %v163
    %189 = vmatprep.subr.mxu0 0.0
    %190 = vmatpush1.msra.mxu0 %v164
    %191 = vmatprep.subr.mxu0 0.0
    %192 = vmatpush1.msra.mxu0 %v165
    %193 = vmatprep.subr.mxu0 0.0
    %194 = vmatpush1.msra.mxu0 %v166
    %195 = vmatprep.subr.mxu0 0.0
    %196 = vmatpush1.msra.mxu0 %v167
    %197 = vmatprep.subr.mxu0 0.0
    %198 = vmatpush1.msra.mxu0 %v168
    %199 = vmatprep.subr.mxu0 0.0
    %200 = vmatpush1.msra.mxu0 %v169
    %201 = vmatprep.subr.mxu0 0.0
    %202 = vmatpush1.msra.mxu0 %v170
    %203 = vmatprep.subr.mxu0 0.0
    %204 = vmatpush1.msra.mxu0 0.0
    %205 = vmatprep.subr.mxu0 0.0
    %206 = vmatpush1.msra.mxu0 0.0
    %207 = vmatprep.subr.mxu0 0.0
    %208 = vmatpush1.msra.mxu0 0.0
    %209 = vmatprep.subr.mxu0 0.0
    %210 = vmatpush1.msra.mxu0 0.0
    %211 = vmatprep.subr.mxu0 0.0
    %212 = vmatpush1.msra.mxu0 0.0
    %213 = vmatprep.subr.mxu0 0.0
    %214 = vmatpush1.msra.mxu0 0.0
    %215 = vmatprep.subr.mxu0 0.0
    %216 = vmatpush1.msra.mxu0 0.0
    %217 = vmatprep.subr.mxu0 0.0
    %218 = vmatpush1.msra.mxu0 0.0
    %219 = vmatprep.subr.mxu0 0.0
    %220 = vmatpush1.msra.mxu0 0.0
    %221 = vmatprep.subr.mxu0 0.0
    %222 = vmatpush1.msra.mxu0 0.0
    %223 = vmatprep.subr.mxu0 0.0
    %224 = vmatpush1.msra.mxu0 0.0
    %225 = vmatprep.subr.mxu0 0.0
    %226 = vmatpush1.msra.mxu0 0.0
    %227 = vmatprep.subr.mxu0 0.0
    %228 = vmatpush1.msra.mxu0 0.0
    %229 = vmatprep.subr.mxu0 0.0
    %230 = vmatpush1.msra.mxu0 0.0
    %231 = vmatprep.subr.mxu0 0.0
    %232 = vmatpush1.msra.mxu0 0.0
    %233 = vmatprep.subr.mxu0 0.0
    %234 = vmatpush1.msra.mxu0 0.0
    %235 = vmatprep.mubr.f32.mxu0 0.0
    %236 = vmatmul.mubr.f32.gmra.mrb[0].mxu0 %v91
    %v237 = vpop.f32.mrb[0].mxu0
    %v238 = vadd.f32 0.0, %v237
    %v239 = vpop.f32.mrb[0].mxu0
    %240 = vmatprep.mubr.f32.mxu0 0.0
    %241 = vmatmul.mubr.f32.gmra.mrb[0].mxu0 %v92
    %v242 = vpop.f32.mrb[0].mxu0
    %v243 = vadd.f32 0.0, %v242
    %v244 = vpop.f32.mrb[0].mxu0
    %245 = vmatprep.mubr.f32.mxu0 0.0
    %246 = vmatmul.mubr.f32.gmra.mrb[0].mxu0 %v93
    %v247 = vpop.f32.mrb[0].mxu0
    %v248 = vadd.f32 0.0, %v247
    %v249 = vpop.f32.mrb[0].mxu0
    %250 = vmatprep.mubr.f32.mxu0 0.0
    %251 = vmatmul.mubr.f32.gmra.mrb[0].mxu0 %v94
    %v252 = vpop.f32.mrb[0].mxu0
    %v253 = vadd.f32 0.0, %v252
    %v254 = vpop.f32.mrb[0].mxu0
    %255 = vmatprep.mubr.f32.mxu0 0.0
    %256 = vmatmul.mubr.f32.gmra.mrb[0].mxu0 %v95
    %v257 = vpop.f32.mrb[0].mxu0
    %v258 = vadd.f32 0.0, %v257
    %v259 = vpop.f32.mrb[0].mxu0
    %260 = vmatprep.mubr.f32.mxu0 0.0
    %261 = vmatmul.mubr.f32.gmra.mrb[0].mxu0 %v96
    %v262 = vpop.f32.mrb[0].mxu0
    %v263 = vadd.f32 0.0, %v262
    %v264 = vpop.f32.mrb[0].mxu0
    %265 = vmatprep.mubr.f32.mxu0 0.0
    %266 = vmatmul.mubr.f32.gmra.mrb[0].mxu0 %v97
    %v267 = vpop.f32.mrb[0].mxu0
    %v268 = vadd.f32 0.0, %v267
    %v269 = vpop.f32.mrb[0].mxu0
    %270 = vmatprep.mubr.f32.mxu0 0.0
    %271 = vmatmul.mubr.f32.gmra.mrb[0].mxu0 %v98
    %v272 = vpop.f32.mrb[0].mxu0
    %v273 = vadd.f32 0.0, %v272
    %v274 = vpop.f32.mrb[0].mxu0
    %275 = vmatprep.mubr.f32.mxu0 0.0
    %276 = vmatmul.mubr.f32.gmra.mrb[0].mxu0 %v99
    %v277 = vpop.f32.mrb[0].mxu0
    %v278 = vadd.f32 0.0, %v277
    %v279 = vpop.f32.mrb[0].mxu0
    %280 = vmatprep.mubr.f32.mxu0 0.0
    %281 = vmatmul.mubr.f32.gmra.mrb[0].mxu0 %v100
    %v282 = vpop.f32.mrb[0].mxu0
    %v283 = vadd.f32 0.0, %v282
    %v284 = vpop.f32.mrb[0].mxu0
    %285 = vmatprep.mubr.f32.mxu0 0.0
    %286 = vmatmul.mubr.f32.gmra.mrb[0].mxu0 %v101
    %v287 = vpop.f32.mrb[0].mxu0
    %v288 = vadd.f32 0.0, %v287
    %v289 = vpop.f32.mrb[0].mxu0
    %290 = vmatprep.mubr.f32.mxu0 0.0
    %291 = vmatmul.mubr.f32.gmra.mrb[0].mxu0 %v102
    %v292 = vpop.f32.mrb[0].mxu0
    %v293 = vadd.f32 0.0, %v292
    %v294 = vpop.f32.mrb[0].mxu0
    %295 = vmatprep.mubr.f32.mxu0 0.0
    %296 = vmatmul.mubr.f32.gmra.mrb[0].mxu0 %v103
    %v297 = vpop.f32.mrb[0].mxu0
    %v298 = vadd.f32 0.0, %v297
    %v299 = vpop.f32.mrb[0].mxu0
    %300 = vmatprep.mubr.f32.mxu0 0.0
    %301 = vmatmul.mubr.f32.gmra.mrb[0].mxu0 %v104
    %v302 = vpop.f32.mrb[0].mxu0
    %v303 = vadd.f32 0.0, %v302
    %v304 = vpop.f32.mrb[0].mxu0
    %305 = vmatprep.mubr.f32.mxu0 0.0
    %306 = vmatmul.mubr.f32.gmra.mrb[0].mxu0 %v105
    %v307 = vpop.f32.mrb[0].mxu0
    %v308 = vadd.f32 0.0, %v307
    %v309 = vpop.f32.mrb[0].mxu0
    %310 = vmatprep.mubr.f32.mxu0 0.0
    %311 = vmatmul.mubr.f32.gmra.mrb[0].mxu0 %v106
    %v312 = vpop.f32.mrb[0].mxu0
    %v313 = vadd.f32 0.0, %v312
    %v314 = vpop.f32.mrb[0].mxu0
    %315 = vmatprep.mubr.f32.mxu0 0.0
    %316 = vmatmul.mubr.f32.gmra.mrb[0].mxu0 %v107
    %v317 = vpop.f32.mrb[0].mxu0
    %v318 = vadd.f32 0.0, %v317
    %v319 = vpop.f32.mrb[0].mxu0
    %320 = vmatprep.mubr.f32.mxu0 0.0
    %321 = vmatmul.mubr.f32.gmra.mrb[0].mxu0 %v108
    %v322 = vpop.f32.mrb[0].mxu0
    %v323 = vadd.f32 0.0, %v322
    %v324 = vpop.f32.mrb[0].mxu0
    %325 = vmatprep.mubr.f32.mxu0 0.0
    %326 = vmatmul.mubr.f32.gmra.mrb[0].mxu0 %v109
    %v327 = vpop.f32.mrb[0].mxu0
    %v328 = vadd.f32 0.0, %v327
    %v329 = vpop.f32.mrb[0].mxu0
    %330 = vmatprep.mubr.f32.mxu0 0.0
    %331 = vmatmul.mubr.f32.gmra.mrb[0].mxu0 %v110
    %v332 = vpop.f32.mrb[0].mxu0
    %v333 = vadd.f32 0.0, %v332
    %v334 = vpop.f32.mrb[0].mxu0
    %335 = vmatprep.mubr.f32.mxu0 0.0
    %336 = vmatmul.mubr.f32.gmra.mrb[0].mxu0 %v111
    %v337 = vpop.f32.mrb[0].mxu0
    %v338 = vadd.f32 0.0, %v337
    %v339 = vpop.f32.mrb[0].mxu0
    %340 = vmatprep.mubr.f32.mxu0 0.0
    %341 = vmatmul.mubr.f32.gmra.mrb[0].mxu0 %v112
    %v342 = vpop.f32.mrb[0].mxu0
    %v343 = vadd.f32 0.0, %v342
    %v344 = vpop.f32.mrb[0].mxu0
    %345 = vmatprep.mubr.f32.mxu0 0.0
    %346 = vmatmul.mubr.f32.gmra.mrb[0].mxu0 %v113
    %v347 = vpop.f32.mrb[0].mxu0
    %v348 = vadd.f32 0.0, %v347
    %v349 = vpop.f32.mrb[0].mxu0
    %350 = vmatprep.mubr.f32.mxu0 0.0
    %351 = vmatmul.mubr.f32.gmra.mrb[0].mxu0 %v114
    %v352 = vpop.f32.mrb[0].mxu0
    %v353 = vadd.f32 0.0, %v352
    %v354 = vpop.f32.mrb[0].mxu0
    %355 = vmatprep.mubr.f32.mxu0 0.0
    %356 = vmatmul.mubr.f32.gmra.mrb[0].mxu0 %v115
    %v357 = vpop.f32.mrb[0].mxu0
    %v358 = vadd.f32 0.0, %v357
    %v359 = vpop.f32.mrb[0].mxu0
    %360 = vmatprep.mubr.f32.mxu0 0.0
    %361 = vmatmul.mubr.f32.gmra.mrb[0].mxu0 %v116
    %v362 = vpop.f32.mrb[0].mxu0
    %v363 = vadd.f32 0.0, %v362
    %v364 = vpop.f32.mrb[0].mxu0
    %365 = vmatprep.mubr.f32.mxu0 0.0
    %366 = vmatmul.mubr.f32.gmra.mrb[0].mxu0 %v117
    %v367 = vpop.f32.mrb[0].mxu0
    %v368 = vadd.f32 0.0, %v367
    %v369 = vpop.f32.mrb[0].mxu0
    %370 = vmatprep.mubr.f32.mxu0 0.0
    %371 = vmatmul.mubr.f32.gmra.mrb[0].mxu0 %v118
    %v372 = vpop.f32.mrb[0].mxu0
    %v373 = vadd.f32 0.0, %v372
    %v374 = vpop.f32.mrb[0].mxu0
    %375 = vmatprep.mubr.f32.mxu0 0.0
    %376 = vmatmul.mubr.f32.gmra.mrb[0].mxu0 %v119
    %v377 = vpop.f32.mrb[0].mxu0
    %v378 = vadd.f32 0.0, %v377
    %v379 = vpop.f32.mrb[0].mxu0
    %380 = vmatprep.mubr.f32.mxu0 0.0
    %381 = vmatmul.mubr.f32.gmra.mrb[0].mxu0 %v120
    %v382 = vpop.f32.mrb[0].mxu0
    %v383 = vadd.f32 0.0, %v382
    %v384 = vpop.f32.mrb[0].mxu0
    %385 = vmatprep.mubr.f32.mxu0 0.0
    %386 = vmatmul.mubr.f32.gmra.mrb[0].mxu0 %v121
    %v387 = vpop.f32.mrb[0].mxu0
    %v388 = vadd.f32 0.0, %v387
    %v389 = vpop.f32.mrb[0].mxu0
    %390 = vmatprep.mubr.f32.mxu0 0.0
    %391 = vmatmul.mubr.f32.gmra.mrb[0].mxu0 %v122
    %v392 = vpop.f32.mrb[0].mxu0
    %v393 = vadd.f32 0.0, %v392
    %v394 = vpop.f32.mrb[0].mxu0
    %395 = vmatprep.mubr.f32.mxu0 0.0
    %396 = vmatmul.mubr.f32.gmra.mrb[0].mxu0 %v123
    %v397 = vpop.f32.mrb[0].mxu0
    %v398 = vadd.f32 0.0, %v397
    %v399 = vpop.f32.mrb[0].mxu0
    %400 = vmatprep.mubr.f32.mxu0 0.0
    %401 = vmatmul.mubr.f32.gmra.mrb[0].mxu0 %v124
    %v402 = vpop.f32.mrb[0].mxu0
    %v403 = vadd.f32 0.0, %v402
    %v404 = vpop.f32.mrb[0].mxu0
    %405 = vmatprep.mubr.f32.mxu0 0.0
    %406 = vmatmul.mubr.f32.gmra.mrb[0].mxu0 %v125
    %v407 = vpop.f32.mrb[0].mxu0
    %v408 = vadd.f32 0.0, %v407
    %v409 = vpop.f32.mrb[0].mxu0
    %410 = vmatprep.mubr.f32.mxu0 0.0
    %411 = vmatmul.mubr.f32.gmra.mrb[0].mxu0 %v126
    %v412 = vpop.f32.mrb[0].mxu0
    %v413 = vadd.f32 0.0, %v412
    %v414 = vpop.f32.mrb[0].mxu0
    %415 = vmatprep.mubr.f32.mxu0 0.0
    %416 = vmatmul.mubr.f32.gmra.mrb[0].mxu0 %v127
    %v417 = vpop.f32.mrb[0].mxu0
    %v418 = vadd.f32 0.0, %v417
    %v419 = vpop.f32.mrb[0].mxu0
    %420 = vmatprep.mubr.f32.mxu0 0.0
    %421 = vmatmul.mubr.f32.gmra.mrb[0].mxu0 %v128
    %v422 = vpop.f32.mrb[0].mxu0
    %v423 = vadd.f32 0.0, %v422
    %v424 = vpop.f32.mrb[0].mxu0
    %425 = vmatprep.mubr.f32.mxu0 0.0
    %426 = vmatmul.mubr.f32.gmra.mrb[0].mxu0 %v129
    %v427 = vpop.f32.mrb[0].mxu0
    %v428 = vadd.f32 0.0, %v427
    %v429 = vpop.f32.mrb[0].mxu0
    %430 = vmatprep.mubr.f32.mxu0 0.0
    %431 = vmatmul.mubr.f32.gmra.mrb[0].mxu0 %v130
    %v432 = vpop.f32.mrb[0].mxu0
    %v433 = vadd.f32 0.0, %v432
    %v434 = vpop.f32.mrb[0].mxu0
    %435 = vmatprep.mubr.f32.mxu0 0.0
    %436 = vmatmul.mubr.f32.gmra.mrb[0].mxu0 %v131
    %v437 = vpop.f32.mrb[0].mxu0
    %v438 = vadd.f32 0.0, %v437
    %v439 = vpop.f32.mrb[0].mxu0
    %440 = vmatprep.mubr.f32.mxu0 0.0
    %441 = vmatmul.mubr.f32.gmra.mrb[0].mxu0 %v132
    %v442 = vpop.f32.mrb[0].mxu0
    %v443 = vadd.f32 0.0, %v442
    %v444 = vpop.f32.mrb[0].mxu0
    %445 = vmatprep.mubr.f32.mxu0 0.0
    %446 = vmatmul.mubr.f32.gmra.mrb[0].mxu0 %v133
    %v447 = vpop.f32.mrb[0].mxu0
    %v448 = vadd.f32 0.0, %v447
    %v449 = vpop.f32.mrb[0].mxu0
    %450 = vmatprep.mubr.f32.mxu0 0.0
    %451 = vmatmul.mubr.f32.gmra.mrb[0].mxu0 %v134
    %v452 = vpop.f32.mrb[0].mxu0
    %v453 = vadd.f32 0.0, %v452
    %v454 = vpop.f32.mrb[0].mxu0
    %455 = vmatprep.mubr.f32.mxu0 0.0
    %456 = vmatmul.mubr.f32.gmra.mrb[0].mxu0 %v135
    %v457 = vpop.f32.mrb[0].mxu0
    %v458 = vadd.f32 0.0, %v457
    %v459 = vpop.f32.mrb[0].mxu0
    %460 = vmatprep.mubr.f32.mxu0 0.0
    %461 = vmatmul.mubr.f32.gmra.mrb[0].mxu0 %v136
    %v462 = vpop.f32.mrb[0].mxu0
    %v463 = vadd.f32 0.0, %v462
    %v464 = vpop.f32.mrb[0].mxu0
    %465 = vmatprep.mubr.f32.mxu0 0.0
    %466 = vmatmul.mubr.f32.gmra.mrb[0].mxu0 %v137
    %v467 = vpop.f32.mrb[0].mxu0
    %v468 = vadd.f32 0.0, %v467
    %v469 = vpop.f32.mrb[0].mxu0
    %470 = vmatprep.mubr.f32.mxu0 0.0
    %471 = vmatmul.mubr.f32.gmra.mrb[0].mxu0 %v138
    %v472 = vpop.f32.mrb[0].mxu0
    %v473 = vadd.f32 0.0, %v472
    %v474 = vpop.f32.mrb[0].mxu0
    %475 = vmatprep.mubr.f32.mxu0 0.0
    %476 = vmatmul.mubr.f32.gmra.mrb[0].mxu0 %v139
    %v477 = vpop.f32.mrb[0].mxu0
    %v478 = vadd.f32 0.0, %v477
    %v479 = vpop.f32.mrb[0].mxu0
    %480 = vmatprep.mubr.f32.mxu0 0.0
    %481 = vmatmul.mubr.f32.gmra.mrb[0].mxu0 %v140
    %v482 = vpop.f32.mrb[0].mxu0
    %v483 = vadd.f32 0.0, %v482
    %v484 = vpop.f32.mrb[0].mxu0
    %485 = vmatprep.mubr.f32.mxu0 0.0
    %486 = vmatmul.mubr.f32.gmra.mrb[0].mxu0 %v141
    %v487 = vpop.f32.mrb[0].mxu0
    %v488 = vadd.f32 0.0, %v487
    %v489 = vpop.f32.mrb[0].mxu0
    %490 = vmatprep.mubr.f32.mxu0 0.0
    %491 = vmatmul.mubr.f32.gmra.mrb[0].mxu0 %v142
    %v492 = vpop.f32.mrb[0].mxu0
    %v493 = vadd.f32 0.0, %v492
    %v494 = vpop.f32.mrb[0].mxu0
    %495 = vmatprep.mubr.f32.mxu0 0.0
    %496 = vmatmul.mubr.f32.gmra.mrb[0].mxu0 %v143
    %v497 = vpop.f32.mrb[0].mxu0
    %v498 = vadd.f32 0.0, %v497
    %v499 = vpop.f32.mrb[0].mxu0
    %500 = vmatprep.mubr.f32.mxu0 0.0
    %501 = vmatmul.mubr.f32.gmra.mrb[0].mxu0 %v144
    %v502 = vpop.f32.mrb[0].mxu0
    %v503 = vadd.f32 0.0, %v502
    %v504 = vpop.f32.mrb[0].mxu0
    %505 = vmatprep.mubr.f32.mxu0 0.0
    %506 = vmatmul.mubr.f32.gmra.mrb[0].mxu0 %v145
    %v507 = vpop.f32.mrb[0].mxu0
    %v508 = vadd.f32 0.0, %v507
    %v509 = vpop.f32.mrb[0].mxu0
    %510 = vmatprep.mubr.f32.mxu0 0.0
    %511 = vmatmul.mubr.f32.gmra.mrb[0].mxu0 %v146
    %v512 = vpop.f32.mrb[0].mxu0
    %v513 = vadd.f32 0.0, %v512
    %v514 = vpop.f32.mrb[0].mxu0
    %515 = vmatprep.mubr.f32.mxu0 0.0
    %516 = vmatmul.mubr.f32.gmra.mrb[0].mxu0 %v147
    %v517 = vpop.f32.mrb[0].mxu0
    %v518 = vadd.f32 0.0, %v517
    %v519 = vpop.f32.mrb[0].mxu0
    %520 = vmatprep.mubr.f32.mxu0 0.0
    %521 = vmatmul.mubr.f32.gmra.mrb[0].mxu0 %v148
    %v522 = vpop.f32.mrb[0].mxu0
    %v523 = vadd.f32 0.0, %v522
    %v524 = vpop.f32.mrb[0].mxu0
    %525 = vmatprep.mubr.f32.mxu0 0.0
    %526 = vmatmul.mubr.f32.gmra.mrb[0].mxu0 %v149
    %v527 = vpop.f32.mrb[0].mxu0
    %v528 = vadd.f32 0.0, %v527
    %v529 = vpop.f32.mrb[0].mxu0
    %530 = vmatprep.mubr.f32.mxu0 0.0
    %531 = vmatmul.mubr.f32.gmra.mrb[0].mxu0 %v150
    %v532 = vpop.f32.mrb[0].mxu0
    %v533 = vadd.f32 0.0, %v532
    %v534 = vpop.f32.mrb[0].mxu0
    %535 = vmatprep.mubr.f32.mxu0 0.0
    %536 = vmatmul.mubr.f32.gmra.mrb[0].mxu0 %v151
    %v537 = vpop.f32.mrb[0].mxu0
    %v538 = vadd.f32 0.0, %v537
    %v539 = vpop.f32.mrb[0].mxu0
    %540 = vmatprep.mubr.f32.mxu0 0.0
    %541 = vmatmul.mubr.f32.gmra.mrb[0].mxu0 %v152
    %v542 = vpop.f32.mrb[0].mxu0
    %v543 = vadd.f32 0.0, %v542
    %v544 = vpop.f32.mrb[0].mxu0
    %545 = vmatprep.mubr.f32.mxu0 0.0
    %546 = vmatmul.mubr.f32.gmra.mrb[0].mxu0 %v153
    %v547 = vpop.f32.mrb[0].mxu0
    %v548 = vadd.f32 0.0, %v547
    %v549 = vpop.f32.mrb[0].mxu0
    %550 = vmatprep.mubr.f32.mxu0 0.0
    %551 = vmatmul.mubr.f32.gmra.mrb[0].mxu0 %v154
    %v552 = vpop.f32.mrb[0].mxu0
    %v553 = vadd.f32 0.0, %v552
    %v554 = vpop.f32.mrb[0].mxu0
    %555 = vdwg.mxu0
    %v556 = vld [vmem:[%s2] sm:$0x1]
    %v557 = vld [vmem:[%s3] sm:$0x1]
    %v558 = vadd.f32 %v238, %v243
    %v559 = vadd.f32 %v558, %v248
    %v560 = vadd.f32 %v559, %v253
    %v561 = vadd.f32 %v560, %v258
    %v562 = vadd.f32 %v561, %v263
    %v563 = vadd.f32 %v562, %v268
    %v564 = vadd.f32 %v563, %v273
    %v565 = vadd.f32 %v564, %v278
    %v566 = vadd.f32 %v565, %v283
    %v567 = vadd.f32 %v566, %v288
    %v568 = vadd.f32 %v567, %v293
    %v569 = vadd.f32 %v568, %v298
    %v570 = vadd.f32 %v569, %v303
    %v571 = vadd.f32 %v570, %v308
    %v572 = vadd.f32 %v571, %v313
    %v573 = vadd.f32 %v572, %v318
    %v574 = vadd.f32 %v573, %v323
    %v575 = vadd.f32 %v574, %v328
    %v576 = vadd.f32 %v575, %v333
    %v577 = vadd.f32 %v576, %v338
    %v578 = vadd.f32 %v577, %v343
    %v579 = vadd.f32 %v578, %v348
    %v580 = vadd.f32 %v579, %v353
    %v581 = vadd.f32 %v580, %v358
    %v582 = vadd.f32 %v581, %v363
    %v583 = vadd.f32 %v582, %v368
    %v584 = vadd.f32 %v583, %v373
    %v585 = vadd.f32 %v584, %v378
    %v586 = vadd.f32 %v585, %v383
    %v587 = vadd.f32 %v586, %v388
    %v588 = vadd.f32 %v587, %v393
    %v589 = vadd.f32 %v588, %v398
    %v590 = vadd.f32 %v589, %v403
    %v591 = vadd.f32 %v590, %v408
    %v592 = vadd.f32 %v591, %v413
    %v593 = vadd.f32 %v592, %v418
    %v594 = vadd.f32 %v593, %v423
    %v595 = vadd.f32 %v594, %v428
    %v596 = vadd.f32 %v595, %v433
    %v597 = vadd.f32 %v596, %v438
    %v598 = vadd.f32 %v597, %v443
    %v599 = vadd.f32 %v598, %v448
    %v600 = vadd.f32 %v599, %v453
    %v601 = vadd.f32 %v600, %v458
    %v602 = vadd.f32 %v601, %v463
    %v603 = vadd.f32 %v602, %v468
    %v604 = vadd.f32 %v603, %v473
    %v605 = vadd.f32 %v604, %v478
    %v606 = vadd.f32 %v605, %v483
    %v607 = vadd.f32 %v606, %v488
    %v608 = vadd.f32 %v607, %v493
    %v609 = vadd.f32 %v608, %v498
    %v610 = vadd.f32 %v609, %v503
    %v611 = vadd.f32 %v610, %v508
    %v612 = vadd.f32 %v611, %v513
    %v613 = vadd.f32 %v612, %v518
    %v614 = vadd.f32 %v613, %v523
    %v615 = vadd.f32 %v614, %v528
    %v616 = vadd.f32 %v615, %v533
    %v617 = vadd.f32 %v616, %v538
    %v618 = vadd.f32 %v617, %v543
    %v619 = vadd.f32 %v618, %v548
    %v620 = vadd.f32 %v619, %v553
    %v621 = vrot.slane %v620, 4
    %v622 = vadd.f32 %v620, %v621
    %v623 = vrot.slane %v622, 2
    %v624 = vadd.f32 %v622, %v623
    %v625 = vrot.slane %v624, 1
    %v626 = vadd.f32 %v624, %v625
    %v627 = vmul.f32 %v238, %v238
    %v628 = vmul.f32 %v243, %v243
    %v629 = vmul.f32 %v248, %v248
    %v630 = vmul.f32 %v253, %v253
    %v631 = vmul.f32 %v258, %v258
    %v632 = vmul.f32 %v263, %v263
    %v633 = vmul.f32 %v268, %v268
    %v634 = vmul.f32 %v273, %v273
    %v635 = vmul.f32 %v278, %v278
    %v636 = vmul.f32 %v283, %v283
    %v637 = vmul.f32 %v288, %v288
    %v638 = vmul.f32 %v293, %v293
    %v639 = vmul.f32 %v298, %v298
    %v640 = vmul.f32 %v303, %v303
    %v641 = vmul.f32 %v308, %v308
    %v642 = vmul.f32 %v313, %v313
    %v643 = vmul.f32 %v318, %v318
    %v644 = vmul.f32 %v323, %v323
    %v645 = vmul.f32 %v328, %v328
    %v646 = vmul.f32 %v333, %v333
    %v647 = vmul.f32 %v338, %v338
    %v648 = vmul.f32 %v343, %v343
    %v649 = vmul.f32 %v348, %v348
    %v650 = vmul.f32 %v353, %v353
    %v651 = vmul.f32 %v358, %v358
    %v652 = vmul.f32 %v363, %v363
    %v653 = vmul.f32 %v368, %v368
    %v654 = vmul.f32 %v373, %v373
    %v655 = vmul.f32 %v378, %v378
    %v656 = vmul.f32 %v383, %v383
    %v657 = vmul.f32 %v388, %v388
    %v658 = vmul.f32 %v393, %v393
    %v659 = vmul.f32 %v398, %v398
    %v660 = vmul.f32 %v403, %v403
    %v661 = vmul.f32 %v408, %v408
    %v662 = vmul.f32 %v413, %v413
    %v663 = vmul.f32 %v418, %v418
    %v664 = vmul.f32 %v423, %v423
    %v665 = vmul.f32 %v428, %v428
    %v666 = vmul.f32 %v433, %v433
    %v667 = vmul.f32 %v438, %v438
    %v668 = vmul.f32 %v443, %v443
    %v669 = vmul.f32 %v448, %v448
    %v670 = vmul.f32 %v453, %v453
    %v671 = vmul.f32 %v458, %v458
    %v672 = vmul.f32 %v463, %v463
    %v673 = vmul.f32 %v468, %v468
    %v674 = vmul.f32 %v473, %v473
    %v675 = vmul.f32 %v478, %v478
    %v676 = vmul.f32 %v483, %v483
    %v677 = vmul.f32 %v488, %v488
    %v678 = vmul.f32 %v493, %v493
    %v679 = vmul.f32 %v498, %v498
    %v680 = vmul.f32 %v503, %v503
    %v681 = vmul.f32 %v508, %v508
    %v682 = vmul.f32 %v513, %v513
    %v683 = vmul.f32 %v518, %v518
    %v684 = vmul.f32 %v523, %v523
    %v685 = vmul.f32 %v528, %v528
    %v686 = vmul.f32 %v533, %v533
    %v687 = vmul.f32 %v538, %v538
    %v688 = vmul.f32 %v543, %v543
    %v689 = vmul.f32 %v548, %v548
    %v690 = vmul.f32 %v553, %v553
    %v691 = vadd.f32 %v627, %v628
    %v692 = vadd.f32 %v691, %v629
    %v693 = vadd.f32 %v692, %v630
    %v694 = vadd.f32 %v693, %v631
    %v695 = vadd.f32 %v694, %v632
    %v696 = vadd.f32 %v695, %v633
    %v697 = vadd.f32 %v696, %v634
    %v698 = vadd.f32 %v697, %v635
    %v699 = vadd.f32 %v698, %v636
    %v700 = vadd.f32 %v699, %v637
    %v701 = vadd.f32 %v700, %v638
    %v702 = vadd.f32 %v701, %v639
    %v703 = vadd.f32 %v702, %v640
    %v704 = vadd.f32 %v703, %v641
    %v705 = vadd.f32 %v704, %v642
    %v706 = vadd.f32 %v705, %v643
    %v707 = vadd.f32 %v706, %v644
    %v708 = vadd.f32 %v707, %v645
    %v709 = vadd.f32 %v708, %v646
    %v710 = vadd.f32 %v709, %v647
    %v711 = vadd.f32 %v710, %v648
    %v712 = vadd.f32 %v711, %v649
    %v713 = vadd.f32 %v712, %v650
    %v714 = vadd.f32 %v713, %v651
    %v715 = vadd.f32 %v714, %v652
    %v716 = vadd.f32 %v715, %v653
    %v717 = vadd.f32 %v716, %v654
    %v718 = vadd.f32 %v717, %v655
    %v719 = vadd.f32 %v718, %v656
    %v720 = vadd.f32 %v719, %v657
    %v721 = vadd.f32 %v720, %v658
    %v722 = vadd.f32 %v721, %v659
    %v723 = vadd.f32 %v722, %v660
    %v724 = vadd.f32 %v723, %v661
    %v725 = vadd.f32 %v724, %v662
    %v726 = vadd.f32 %v725, %v663
    %v727 = vadd.f32 %v726, %v664
    %v728 = vadd.f32 %v727, %v665
    %v729 = vadd.f32 %v728, %v666
    %v730 = vadd.f32 %v729, %v667
    %v731 = vadd.f32 %v730, %v668
    %v732 = vadd.f32 %v731, %v669
    %v733 = vadd.f32 %v732, %v670
    %v734 = vadd.f32 %v733, %v671
    %v735 = vadd.f32 %v734, %v672
    %v736 = vadd.f32 %v735, %v673
    %v737 = vadd.f32 %v736, %v674
    %v738 = vadd.f32 %v737, %v675
    %v739 = vadd.f32 %v738, %v676
    %v740 = vadd.f32 %v739, %v677
    %v741 = vadd.f32 %v740, %v678
    %v742 = vadd.f32 %v741, %v679
    %v743 = vadd.f32 %v742, %v680
    %v744 = vadd.f32 %v743, %v681
    %v745 = vadd.f32 %v744, %v682
    %v746 = vadd.f32 %v745, %v683
    %v747 = vadd.f32 %v746, %v684
    %v748 = vadd.f32 %v747, %v685
    %v749 = vadd.f32 %v748, %v686
    %v750 = vadd.f32 %v749, %v687
    %v751 = vadd.f32 %v750, %v688
    %v752 = vadd.f32 %v751, %v689
    %v753 = vadd.f32 %v752, %v690
    %v754 = vrot.slane %v753, 4
    %v755 = vadd.f32 %v753, %v754
    %v756 = vrot.slane %v755, 2
    %v757 = vadd.f32 %v755, %v756
    %v758 = vrot.slane %v757, 1
    %v759 = vadd.f32 %v757, %v758
    %v760 = vmul.f32 %v626, 0.001953125
    %v761 = vmul.f32 %v759, 0.001953125
    %v762 = vmul.f32 %v760, %v760
    %v763 = vsub.f32 %v761, %v762
    %v764 = vadd.f32 %v763, 1e-05
    %v765 = vrsqrt.pop %v764
    %v766 = vmul.f32 %v556, %v765
    %v767 = vmul.f32 %v760, %v766
    %v768 = vsub.f32 %v557, %v767
    %v770 = vlaneseq
    %v771 = vshrl.u32 %v770, 7
    %v772 = vsub.s32 0, %v771
    %v773 = vrot.slane %v766, %v772
    %v775 = vmul.f32 %v238, %v773
    %v776 = vmul.f32 %v243, %v773
    %v777 = vmul.f32 %v248, %v773
    %v778 = vmul.f32 %v253, %v773
    %v779 = vmul.f32 %v258, %v773
    %v780 = vmul.f32 %v263, %v773
    %v781 = vmul.f32 %v268, %v773
    %v782 = vmul.f32 %v273, %v773
    %v783 = vmul.f32 %v278, %v773
    %v784 = vmul.f32 %v283, %v773
    %v785 = vmul.f32 %v288, %v773
    %v786 = vmul.f32 %v293, %v773
    %v787 = vmul.f32 %v298, %v773
    %v788 = vmul.f32 %v303, %v773
    %v789 = vmul.f32 %v308, %v773
    %v790 = vmul.f32 %v313, %v773
    %v791 = vmul.f32 %v318, %v773
    %v792 = vmul.f32 %v323, %v773
    %v793 = vmul.f32 %v328, %v773
    %v794 = vmul.f32 %v333, %v773
    %v795 = vmul.f32 %v338, %v773
    %v796 = vmul.f32 %v343, %v773
    %v797 = vmul.f32 %v348, %v773
    %v798 = vmul.f32 %v353, %v773
    %v799 = vmul.f32 %v358, %v773
    %v800 = vmul.f32 %v363, %v773
    %v801 = vmul.f32 %v368, %v773
    %v802 = vmul.f32 %v373, %v773
    %v803 = vmul.f32 %v378, %v773
    %v804 = vmul.f32 %v383, %v773
    %v805 = vmul.f32 %v388, %v773
    %v806 = vmul.f32 %v393, %v773
    %v807 = vmul.f32 %v398, %v773
    %v808 = vmul.f32 %v403, %v773
    %v809 = vmul.f32 %v408, %v773
    %v810 = vmul.f32 %v413, %v773
    %v811 = vmul.f32 %v418, %v773
    %v812 = vmul.f32 %v423, %v773
    %v813 = vmul.f32 %v428, %v773
    %v814 = vmul.f32 %v433, %v773
    %v815 = vmul.f32 %v438, %v773
    %v816 = vmul.f32 %v443, %v773
    %v817 = vmul.f32 %v448, %v773
    %v818 = vmul.f32 %v453, %v773
    %v819 = vmul.f32 %v458, %v773
    %v820 = vmul.f32 %v463, %v773
    %v821 = vmul.f32 %v468, %v773
    %v822 = vmul.f32 %v473, %v773
    %v823 = vmul.f32 %v478, %v773
    %v824 = vmul.f32 %v483, %v773
    %v825 = vmul.f32 %v488, %v773
    %v826 = vmul.f32 %v493, %v773
    %v827 = vmul.f32 %v498, %v773
    %v828 = vmul.f32 %v503, %v773
    %v829 = vmul.f32 %v508, %v773
    %v830 = vmul.f32 %v513, %v773
    %v831 = vmul.f32 %v518, %v773
    %v832 = vmul.f32 %v523, %v773
    %v833 = vmul.f32 %v528, %v773
    %v834 = vmul.f32 %v533, %v773
    %v835 = vmul.f32 %v538, %v773
    %v836 = vmul.f32 %v543, %v773
    %v837 = vmul.f32 %v548, %v773
    %v838 = vmul.f32 %v553, %v773
    %v840 = vlaneseq
    %v841 = vshrl.u32 %v840, 7
    %v842 = vsub.s32 0, %v841
    %v843 = vrot.slane %v768, %v842
    %v845 = vadd.f32 %v775, %v843
    %v846 = vadd.f32 %v776, %v843
    %v847 = vadd.f32 %v777, %v843
    %v848 = vadd.f32 %v778, %v843
    %v849 = vadd.f32 %v779, %v843
    %v850 = vadd.f32 %v780, %v843
    %v851 = vadd.f32 %v781, %v843
    %v852 = vadd.f32 %v782, %v843
    %v853 = vadd.f32 %v783, %v843
    %v854 = vadd.f32 %v784, %v843
    %v855 = vadd.f32 %v785, %v843
    %v856 = vadd.f32 %v786, %v843
    %v857 = vadd.f32 %v787, %v843
    %v858 = vadd.f32 %v788, %v843
    %v859 = vadd.f32 %v789, %v843
    %v860 = vadd.f32 %v790, %v843
    %v861 = vadd.f32 %v791, %v843
    %v862 = vadd.f32 %v792, %v843
    %v863 = vadd.f32 %v793, %v843
    %v864 = vadd.f32 %v794, %v843
    %v865 = vadd.f32 %v795, %v843
    %v866 = vadd.f32 %v796, %v843
    %v867 = vadd.f32 %v797, %v843
    %v868 = vadd.f32 %v798, %v843
    %v869 = vadd.f32 %v799, %v843
    %v870 = vadd.f32 %v800, %v843
    %v871 = vadd.f32 %v801, %v843
    %v872 = vadd.f32 %v802, %v843
    %v873 = vadd.f32 %v803, %v843
    %v874 = vadd.f32 %v804, %v843
    %v875 = vadd.f32 %v805, %v843
    %v876 = vadd.f32 %v806, %v843
    %v877 = vadd.f32 %v807, %v843
    %v878 = vadd.f32 %v808, %v843
    %v879 = vadd.f32 %v809, %v843
    %v880 = vadd.f32 %v810, %v843
    %v881 = vadd.f32 %v811, %v843
    %v882 = vadd.f32 %v812, %v843
    %v883 = vadd.f32 %v813, %v843
    %v884 = vadd.f32 %v814, %v843
    %v885 = vadd.f32 %v815, %v843
    %v886 = vadd.f32 %v816, %v843
    %v887 = vadd.f32 %v817, %v843
    %v888 = vadd.f32 %v818, %v843
    %v889 = vadd.f32 %v819, %v843
    %v890 = vadd.f32 %v820, %v843
    %v891 = vadd.f32 %v821, %v843
    %v892 = vadd.f32 %v822, %v843
    %v893 = vadd.f32 %v823, %v843
    %v894 = vadd.f32 %v824, %v843
    %v895 = vadd.f32 %v825, %v843
    %v896 = vadd.f32 %v826, %v843
    %v897 = vadd.f32 %v827, %v843
    %v898 = vadd.f32 %v828, %v843
    %v899 = vadd.f32 %v829, %v843
    %v900 = vadd.f32 %v830, %v843
    %v901 = vadd.f32 %v831, %v843
    %v902 = vadd.f32 %v832, %v843
    %v903 = vadd.f32 %v833, %v843
    %v904 = vadd.f32 %v834, %v843
    %v905 = vadd.f32 %v835, %v843
    %v906 = vadd.f32 %v836, %v843
    %v907 = vadd.f32 %v837, %v843
    %v908 = vadd.f32 %v838, %v843
    %v909 = vmax.f32 %v845, 0.0
    %v910 = vmax.f32 %v846, 0.0
    %v911 = vmax.f32 %v847, 0.0
    %v912 = vmax.f32 %v848, 0.0
    %v913 = vmax.f32 %v849, 0.0
    %v914 = vmax.f32 %v850, 0.0
    %v915 = vmax.f32 %v851, 0.0
    %v916 = vmax.f32 %v852, 0.0
    %v917 = vmax.f32 %v853, 0.0
    %v918 = vmax.f32 %v854, 0.0
    %v919 = vmax.f32 %v855, 0.0
    %v920 = vmax.f32 %v856, 0.0
    %v921 = vmax.f32 %v857, 0.0
    %v922 = vmax.f32 %v858, 0.0
    %v923 = vmax.f32 %v859, 0.0
    %v924 = vmax.f32 %v860, 0.0
    %v925 = vmax.f32 %v861, 0.0
    %v926 = vmax.f32 %v862, 0.0
    %v927 = vmax.f32 %v863, 0.0
    %v928 = vmax.f32 %v864, 0.0
    %v929 = vmax.f32 %v865, 0.0
    %v930 = vmax.f32 %v866, 0.0
    %v931 = vmax.f32 %v867, 0.0
    %v932 = vmax.f32 %v868, 0.0
    %v933 = vmax.f32 %v869, 0.0
    %v934 = vmax.f32 %v870, 0.0
    %v935 = vmax.f32 %v871, 0.0
    %v936 = vmax.f32 %v872, 0.0
    %v937 = vmax.f32 %v873, 0.0
    %v938 = vmax.f32 %v874, 0.0
    %v939 = vmax.f32 %v875, 0.0
    %v940 = vmax.f32 %v876, 0.0
    %v941 = vmax.f32 %v877, 0.0
    %v942 = vmax.f32 %v878, 0.0
    %v943 = vmax.f32 %v879, 0.0
    %v944 = vmax.f32 %v880, 0.0
    %v945 = vmax.f32 %v881, 0.0
    %v946 = vmax.f32 %v882, 0.0
    %v947 = vmax.f32 %v883, 0.0
    %v948 = vmax.f32 %v884, 0.0
    %v949 = vmax.f32 %v885, 0.0
    %v950 = vmax.f32 %v886, 0.0
    %v951 = vmax.f32 %v887, 0.0
    %v952 = vmax.f32 %v888, 0.0
    %v953 = vmax.f32 %v889, 0.0
    %v954 = vmax.f32 %v890, 0.0
    %v955 = vmax.f32 %v891, 0.0
    %v956 = vmax.f32 %v892, 0.0
    %v957 = vmax.f32 %v893, 0.0
    %v958 = vmax.f32 %v894, 0.0
    %v959 = vmax.f32 %v895, 0.0
    %v960 = vmax.f32 %v896, 0.0
    %v961 = vmax.f32 %v897, 0.0
    %v962 = vmax.f32 %v898, 0.0
    %v963 = vmax.f32 %v899, 0.0
    %v964 = vmax.f32 %v900, 0.0
    %v965 = vmax.f32 %v901, 0.0
    %v966 = vmax.f32 %v902, 0.0
    %v967 = vmax.f32 %v903, 0.0
    %v968 = vmax.f32 %v904, 0.0
    %v969 = vmax.f32 %v905, 0.0
    %v970 = vmax.f32 %v906, 0.0
    %v971 = vmax.f32 %v907, 0.0
    %v972 = vmax.f32 %v908, 0.0
    %973 = vst [vmem:[#allocation2] sm:$0xff] 0.0
    %974 = vst [vmem:[#allocation2 + $0x8] sm:$0xff] 0.0
    %975 = vst [vmem:[#allocation2 + $0x10] sm:$0x3] 0.0
    %976 = vst [vmem:[#allocation2 + $0x1b0] sm:$0xff] 0.0
    %977 = vst [vmem:[#allocation2 + $0x1b8] sm:$0xff] 0.0
    %978 = vst [vmem:[#allocation2 + $0x1c0] sm:$0x3] 0.0
    %s979 = scalar_lea.vmem [#allocation2], 408
    %980 = vst [vmem:[%s979] sm:$0xff] 0.0
    %981 = vst [vmem:[%s979 + $0x8] sm:$0xff] 0.0
    %982 = vst [vmem:[%s979 + $0x10] sm:$0x3] 0.0
    %983 = vst [vmem:[%s979 + $0x1b0] sm:$0xff] 0.0
    %984 = vst [vmem:[%s979 + $0x1b8] sm:$0xff] 0.0
    %985 = vst [vmem:[%s979 + $0x1c0] sm:$0x3] 0.0
    %s986 = scalar_lea.vmem [#allocation2], 24
    %987 = vst [vmem:[%s986] sm:$0x1] 0.0
    %988 = vst [vmem:[%s986 + $0x18] sm:$0x1] 0.0
    %989 = vst [vmem:[%s986 + $0x30] sm:$0x1] 0.0
    %990 = vst [vmem:[%s986 + $0x48] sm:$0x1] 0.0
    %991 = vst [vmem:[%s986 + $0x60] sm:$0x1] 0.0
    %992 = vst [vmem:[%s986 + $0x78] sm:$0x1] 0.0
    %993 = vst [vmem:[%s986 + $0x90] sm:$0x1] 0.0
    %994 = vst [vmem:[%s986 + $0xa8] sm:$0x1] 0.0
    %995 = vst [vmem:[%s986 + $0xc0] sm:$0x1] 0.0
    %996 = vst [vmem:[%s986 + $0xd8] sm:$0x1] 0.0
    %997 = vst [vmem:[%s986 + $0xf0] sm:$0x1] 0.0
    %998 = vst [vmem:[%s986 + $0x108] sm:$0x1] 0.0
    %999 = vst [vmem:[%s986 + $0x120] sm:$0x1] 0.0
    %1000 = vst [vmem:[%s986 + $0x138] sm:$0x1] 0.0
    %1001 = vst [vmem:[%s986 + $0x150] sm:$0x1] 0.0
    %1002 = vst [vmem:[%s986 + $0x168] sm:$0x1] 0.0
    %1003 = vst [vmem:[%s986 + $0x1b0] sm:$0x1] 0.0
    %1004 = vst [vmem:[%s986 + $0x1c8] sm:$0x1] 0.0
    %1005 = vst [vmem:[%s986 + $0x1e0] sm:$0x1] 0.0
    %1006 = vst [vmem:[%s986 + $0x1f8] sm:$0x1] 0.0
    %1007 = vst [vmem:[%s986 + $0x210] sm:$0x1] 0.0
    %1008 = vst [vmem:[%s986 + $0x228] sm:$0x1] 0.0
    %1009 = vst [vmem:[%s986 + $0x240] sm:$0x1] 0.0
    %1010 = vst [vmem:[%s986 + $0x258] sm:$0x1] 0.0
    %1011 = vst [vmem:[%s986 + $0x270] sm:$0x1] 0.0
    %1012 = vst [vmem:[%s986 + $0x288] sm:$0x1] 0.0
    %1013 = vst [vmem:[%s986 + $0x2a0] sm:$0x1] 0.0
    %1014 = vst [vmem:[%s986 + $0x2b8] sm:$0x1] 0.0
    %1015 = vst [vmem:[%s986 + $0x2d0] sm:$0x1] 0.0
    %1016 = vst [vmem:[%s986 + $0x2e8] sm:$0x1] 0.0
    %1017 = vst [vmem:[%s986 + $0x300] sm:$0x1] 0.0
    %1018 = vst [vmem:[%s986 + $0x318] sm:$0x1] 0.0
    %1019 = vst [vmem:[%s986 + $0x11] sm:$0x1] 0.0
    %1020 = vst [vmem:[%s986 + $0x29] sm:$0x1] 0.0
    %1021 = vst [vmem:[%s986 + $0x41] sm:$0x1] 0.0
    %1022 = vst [vmem:[%s986 + $0x59] sm:$0x1] 0.0
    %1023 = vst [vmem:[%s986 + $0x71] sm:$0x1] 0.0
    %1024 = vst [vmem:[%s986 + $0x89] sm:$0x1] 0.0
    %1025 = vst [vmem:[%s986 + $0xa1] sm:$0x1] 0.0
    %1026 = vst [vmem:[%s986 + $0xb9] sm:$0x1] 0.0
    %1027 = vst [vmem:[%s986 + $0xd1] sm:$0x1] 0.0
    %1028 = vst [vmem:[%s986 + $0xe9] sm:$0x1] 0.0
    %1029 = vst [vmem:[%s986 + $0x101] sm:$0x1] 0.0
    %1030 = vst [vmem:[%s986 + $0x119] sm:$0x1] 0.0
    %1031 = vst [vmem:[%s986 + $0x131] sm:$0x1] 0.0
    %1032 = vst [vmem:[%s986 + $0x149] sm:$0x1] 0.0
    %1033 = vst [vmem:[%s986 + $0x161] sm:$0x1] 0.0
    %1034 = vst [vmem:[%s986 + $0x179] sm:$0x1] 0.0
    %1035 = vst [vmem:[%s986 + $0x1c1] sm:$0x1] 0.0
    %1036 = vst [vmem:[%s986 + $0x1d9] sm:$0x1] 0.0
    %1037 = vst [vmem:[%s986 + $0x1f1] sm:$0x1] 0.0
    %1038 = vst [vmem:[%s986 + $0x209] sm:$0x1] 0.0
    %1039 = vst [vmem:[%s986 + $0x221] sm:$0x1] 0.0
    %1040 = vst [vmem:[%s986 + $0x239] sm:$0x1] 0.0
    %1041 = vst [vmem:[%s986 + $0x251] sm:$0x1] 0.0
    %1042 = vst [vmem:[%s986 + $0x269] sm:$0x1] 0.0
    %1043 = vst [vmem:[%s986 + $0x281] sm:$0x1] 0.0
    %1044 = vst [vmem:[%s986 + $0x299] sm:$0x1] 0.0
    %1045 = vst [vmem:[%s986 + $0x2b1] sm:$0x1] 0.0
    %1046 = vst [vmem:[%s986 + $0x2c9] sm:$0x1] 0.0
    %1047 = vst [vmem:[%s986 + $0x2e1] sm:$0x1] 0.0
    %1048 = vst [vmem:[%s986 + $0x2f9] sm:$0x1] 0.0
    %1049 = vst [vmem:[%s986 + $0x311] sm:$0x1] 0.0
    %1050 = vst [vmem:[%s986 + $0x329] sm:$0x1] 0.0
    %1051 = vst [vmem:[%s986 + $0x1] sm:$0xff] %v909
    %1052 = vst [vmem:[%s986 + $0x9] sm:$0xff] %v910
    %1053 = vst [vmem:[%s986 + $0x19] sm:$0xff] %v911
    %1054 = vst [vmem:[%s986 + $0x21] sm:$0xff] %v912
    %1055 = vst [vmem:[%s986 + $0x31] sm:$0xff] %v913
    %1056 = vst [vmem:[%s986 + $0x39] sm:$0xff] %v914
    %1057 = vst [vmem:[%s986 + $0x49] sm:$0xff] %v915
    %1058 = vst [vmem:[%s986 + $0x51] sm:$0xff] %v916
    %1059 = vst [vmem:[%s986 + $0x61] sm:$0xff] %v917
    %1060 = vst [vmem:[%s986 + $0x69] sm:$0xff] %v918
    %1061 = vst [vmem:[%s986 + $0x79] sm:$0xff] %v919
    %1062 = vst [vmem:[%s986 + $0x81] sm:$0xff] %v920
    %1063 = vst [vmem:[%s986 + $0x91] sm:$0xff] %v921
    %1064 = vst [vmem:[%s986 + $0x99] sm:$0xff] %v922
    %1065 = vst [vmem:[%s986 + $0xa9] sm:$0xff] %v923
    %1066 = vst [vmem:[%s986 + $0xb1] sm:$0xff] %v924
    %1067 = vst [vmem:[%s986 + $0xc1] sm:$0xff] %v925
    %1068 = vst [vmem:[%s986 + $0xc9] sm:$0xff] %v926
    %1069 = vst [vmem:[%s986 + $0xd9] sm:$0xff] %v927
    %1070 = vst [vmem:[%s986 + $0xe1] sm:$0xff] %v928
    %1071 = vst [vmem:[%s986 + $0xf1] sm:$0xff] %v929
    %1072 = vst [vmem:[%s986 + $0xf9] sm:$0xff] %v930
    %1073 = vst [vmem:[%s986 + $0x109] sm:$0xff] %v931
    %1074 = vst [vmem:[%s986 + $0x111] sm:$0xff] %v932
    %1075 = vst [vmem:[%s986 + $0x121] sm:$0xff] %v933
    %1076 = vst [vmem:[%s986 + $0x129] sm:$0xff] %v934
    %1077 = vst [vmem:[%s986 + $0x139] sm:$0xff] %v935
    %1078 = vst [vmem:[%s986 + $0x141] sm:$0xff] %v936
    %1079 = vst [vmem:[%s986 + $0x151] sm:$0xff] %v937
    %1080 = vst [vmem:[%s986 + $0x159] sm:$0xff] %v938
    %1081 = vst [vmem:[%s986 + $0x169] sm:$0xff] %v939
    %1082 = vst [vmem:[%s986 + $0x171] sm:$0xff] %v940
    %1083 = vst [vmem:[%s986 + $0x1b1] sm:$0xff] %v941
    %1084 = vst [vmem:[%s986 + $0x1b9] sm:$0xff] %v942
    %1085 = vst [vmem:[%s986 + $0x1c9] sm:$0xff] %v943
    %1086 = vst [vmem:[%s986 + $0x1d1] sm:$0xff] %v944
    %1087 = vst [vmem:[%s986 + $0x1e1] sm:$0xff] %v945
    %1088 = vst [vmem:[%s986 + $0x1e9] sm:$0xff] %v946
    %1089 = vst [vmem:[%s986 + $0x1f9] sm:$0xff] %v947
    %1090 = vst [vmem:[%s986 + $0x201] sm:$0xff] %v948
    %1091 = vst [vmem:[%s986 + $0x211] sm:$0xff] %v949
    %1092 = vst [vmem:[%s986 + $0x219] sm:$0xff] %v950
    %1093 = vst [vmem:[%s986 + $0x229] sm:$0xff] %v951
    %1094 = vst [vmem:[%s986 + $0x231] sm:$0xff] %v952
    %1095 = vst [vmem:[%s986 + $0x241] sm:$0xff] %v953
    %1096 = vst [vmem:[%s986 + $0x249] sm:$0xff] %v954
    %1097 = vst [vmem:[%s986 + $0x259] sm:$0xff] %v955
    %1098 = vst [vmem:[%s986 + $0x261] sm:$0xff] %v956
    %1099 = vst [vmem:[%s986 + $0x271] sm:$0xff] %v957
    %1100 = vst [vmem:[%s986 + $0x279] sm:$0xff] %v958
    %1101 = vst [vmem:[%s986 + $0x289] sm:$0xff] %v959
    %1102 = vst [vmem:[%s986 + $0x291] sm:$0xff] %v960
    %1103 = vst [vmem:[%s986 + $0x2a1] sm:$0xff] %v961
    %1104 = vst [vmem:[%s986 + $0x2a9] sm:$0xff] %v962
    %1105 = vst [vmem:[%s986 + $0x2b9] sm:$0xff] %v963
    %1106 = vst [vmem:[%s986 + $0x2c1] sm:$0xff] %v964
    %1107 = vst [vmem:[%s986 + $0x2d1] sm:$0xff] %v965
    %1108 = vst [vmem:[%s986 + $0x2d9] sm:$0xff] %v966
    %1109 = vst [vmem:[%s986 + $0x2e9] sm:$0xff] %v967
    %1110 = vst [vmem:[%s986 + $0x2f1] sm:$0xff] %v968
    %1111 = vst [vmem:[%s986 + $0x301] sm:$0xff] %v969
    %1112 = vst [vmem:[%s986 + $0x309] sm:$0xff] %v970
    %1113 = vst [vmem:[%s986 + $0x319] sm:$0xff] %v971
    %1114 = vst [vmem:[%s986 + $0x321] sm:$0xff] %v972
    %v1115 = vld [vmem:[#allocation2] sm:$0xff]
    %v1116 = vld [vmem:[#allocation2 + $0x8] sm:$0xff]
    %v1117 = vld [vmem:[#allocation2 + $0x18] sm:$0xff]
    %v1118 = vld [vmem:[#allocation2 + $0x20] sm:$0xff]
    %v1119 = vld [vmem:[#allocation2 + $0x30] sm:$0xff]
    %v1120 = vld [vmem:[#allocation2 + $0x38] sm:$0xff]
    %v1121 = vld [vmem:[#allocation2 + $0x48] sm:$0xff]
    %v1122 = vld [vmem:[#allocation2 + $0x50] sm:$0xff]
    %v1123 = vld [vmem:[#allocation2 + $0x60] sm:$0xff]
    %v1124 = vld [vmem:[#allocation2 + $0x68] sm:$0xff]
    %v1125 = vld [vmem:[#allocation2 + $0x78] sm:$0xff]
    %v1126 = vld [vmem:[#allocation2 + $0x80] sm:$0xff]
    %v1127 = vld [vmem:[#allocation2 + $0x90] sm:$0xff]
    %v1128 = vld [vmem:[#allocation2 + $0x98] sm:$0xff]
    %v1129 = vld [vmem:[#allocation2 + $0xa8] sm:$0xff]
    %v1130 = vld [vmem:[#allocation2 + $0xb0] sm:$0xff]
    %v1131 = vld [vmem:[#allocation2 + $0xc0] sm:$0xff]
    %v1132 = vld [vmem:[#allocation2 + $0xc8] sm:$0xff]
    %v1133 = vld [vmem:[#allocation2 + $0xd8] sm:$0xff]
    %v1134 = vld [vmem:[#allocation2 + $0xe0] sm:$0xff]
    %v1135 = vld [vmem:[#allocation2 + $0xf0] sm:$0xff]
    %v1136 = vld [vmem:[#allocation2 + $0xf8] sm:$0xff]
    %v1137 = vld [vmem:[#allocation2 + $0x108] sm:$0xff]
    %v1138 = vld [vmem:[#allocation2 + $0x110] sm:$0xff]
    %v1139 = vld [vmem:[#allocation2 + $0x120] sm:$0xff]
    %v1140 = vld [vmem:[#allocation2 + $0x128] sm:$0xff]
    %v1141 = vld [vmem:[#allocation2 + $0x138] sm:$0xff]
    %v1142 = vld [vmem:[#allocation2 + $0x140] sm:$0xff]
    %v1143 = vld [vmem:[#allocation2 + $0x150] sm:$0xff]
    %v1144 = vld [vmem:[#allocation2 + $0x158] sm:$0xff]
    %v1145 = vld [vmem:[#allocation2 + $0x168] sm:$0xff]
    %v1146 = vld [vmem:[#allocation2 + $0x170] sm:$0xff]
    %v1147 = vld [vmem:[#allocation2 + $0x1b0] sm:$0xff]
    %v1148 = vld [vmem:[#allocation2 + $0x1b8] sm:$0xff]
    %v1149 = vld [vmem:[#allocation2 + $0x1c8] sm:$0xff]
    %v1150 = vld [vmem:[#allocation2 + $0x1d0] sm:$0xff]
    %v1151 = vld [vmem:[#allocation2 + $0x1e0] sm:$0xff]
    %v1152 = vld [vmem:[#allocation2 + $0x1e8] sm:$0xff]
    %v1153 = vld [vmem:[#allocation2 + $0x1f8] sm:$0xff]
    %v1154 = vld [vmem:[#allocation2 + $0x200] sm:$0xff]
    %v1155 = vld [vmem:[#allocation2 + $0x210] sm:$0xff]
    %v1156 = vld [vmem:[#allocation2 + $0x218] sm:$0xff]
    %v1157 = vld [vmem:[#allocation2 + $0x228] sm:$0xff]
    %v1158 = vld [vmem:[#allocation2 + $0x230] sm:$0xff]
    %v1159 = vld [vmem:[#allocation2 + $0x240] sm:$0xff]
    %v1160 = vld [vmem:[#allocation2 + $0x248] sm:$0xff]
    %v1161 = vld [vmem:[#allocation2 + $0x258] sm:$0xff]
    %v1162 = vld [vmem:[#allocation2 + $0x260] sm:$0xff]
    %v1163 = vld [vmem:[#allocation2 + $0x270] sm:$0xff]
    %v1164 = vld [vmem:[#allocation2 + $0x278] sm:$0xff]
    %v1165 = vld [vmem:[#allocation2 + $0x288] sm:$0xff]
    %v1166 = vld [vmem:[#allocation2 + $0x290] sm:$0xff]
    %v1167 = vld [vmem:[#allocation2 + $0x2a0] sm:$0xff]
    %v1168 = vld [vmem:[#allocation2 + $0x2a8] sm:$0xff]
    %v1169 = vld [vmem:[#allocation2 + $0x2b8] sm:$0xff]
    %v1170 = vld [vmem:[#allocation2 + $0x2c0] sm:$0xff]
    %v1171 = vld [vmem:[#allocation2 + $0x2d0] sm:$0xff]
    %v1172 = vld [vmem:[#allocation2 + $0x2d8] sm:$0xff]
    %v1173 = vld [vmem:[#allocation2 + $0x2e8] sm:$0xff]
    %v1174 = vld [vmem:[#allocation2 + $0x2f0] sm:$0xff]
    %v1175 = vld [vmem:[#allocation2 + $0x300] sm:$0xff]
    %v1176 = vld [vmem:[#allocation2 + $0x308] sm:$0xff]
    %v1177 = vld [vmem:[#allocation2 + $0x318] sm:$0xff]
    %v1178 = vld [vmem:[#allocation2 + $0x320] sm:$0xff]
    %v1179 = vld [vmem:[#allocation2 + $0x1] sm:$0xff]
    %v1180 = vld [vmem:[#allocation2 + $0x9] sm:$0xff]
    %v1181 = vld [vmem:[#allocation2 + $0x19] sm:$0xff]
    %v1182 = vld [vmem:[#allocation2 + $0x21] sm:$0xff]
    %v1183 = vld [vmem:[#allocation2 + $0x31] sm:$0xff]
    %v1184 = vld [vmem:[#allocation2 + $0x39] sm:$0xff]
    %v1185 = vld [vmem:[#allocation2 + $0x49] sm:$0xff]
    %v1186 = vld [vmem:[#allocation2 + $0x51] sm:$0xff]
    %v1187 = vld [vmem:[#allocation2 + $0x61] sm:$0xff]
    %v1188 = vld [vmem:[#allocation2 + $0x69] sm:$0xff]
    %v1189 = vld [vmem:[#allocation2 + $0x79] sm:$0xff]
    %v1190 = vld [vmem:[#allocation2 + $0x81] sm:$0xff]
    %v1191 = vld [vmem:[#allocation2 + $0x91] sm:$0xff]
    %v1192 = vld [vmem:[#allocation2 + $0x99] sm:$0xff]
    %v1193 = vld [vmem:[#allocation2 + $0xa9] sm:$0xff]
    %v1194 = vld [vmem:[#allocation2 + $0xb1] sm:$0xff]
    %v1195 = vld [vmem:[#allocation2 + $0xc1] sm:$0xff]
    %v1196 = vld [vmem:[#allocation2 + $0xc9] sm:$0xff]
    %v1197 = vld [vmem:[#allocation2 + $0xd9] sm:$0xff]
    %v1198 = vld [vmem:[#allocation2 + $0xe1] sm:$0xff]
    %v1199 = vld [vmem:[#allocation2 + $0xf1] sm:$0xff]
    %v1200 = vld [vmem:[#allocation2 + $0xf9] sm:$0xff]
    %v1201 = vld [vmem:[#allocation2 + $0x109] sm:$0xff]
    %v1202 = vld [vmem:[#allocation2 + $0x111] sm:$0xff]
    %v1203 = vld [vmem:[#allocation2 + $0x121] sm:$0xff]
    %v1204 = vld [vmem:[#allocation2 + $0x129] sm:$0xff]
    %v1205 = vld [vmem:[#allocation2 + $0x139] sm:$0xff]
    %v1206 = vld [vmem:[#allocation2 + $0x141] sm:$0xff]
    %v1207 = vld [vmem:[#allocation2 + $0x151] sm:$0xff]
    %v1208 = vld [vmem:[#allocation2 + $0x159] sm:$0xff]
    %v1209 = vld [vmem:[#allocation2 + $0x169] sm:$0xff]
    %v1210 = vld [vmem:[#allocation2 + $0x171] sm:$0xff]
    %v1211 = vld [vmem:[#allocation2 + $0x1b1] sm:$0xff]
    %v1212 = vld [vmem:[#allocation2 + $0x1b9] sm:$0xff]
    %v1213 = vld [vmem:[#allocation2 + $0x1c9] sm:$0xff]
    %v1214 = vld [vmem:[#allocation2 + $0x1d1] sm:$0xff]
    %v1215 = vld [vmem:[#allocation2 + $0x1e1] sm:$0xff]
    %v1216 = vld [vmem:[#allocation2 + $0x1e9] sm:$0xff]
    %v1217 = vld [vmem:[#allocation2 + $0x1f9] sm:$0xff]
    %v1218 = vld [vmem:[#allocation2 + $0x201] sm:$0xff]
    %v1219 = vld [vmem:[#allocation2 + $0x211] sm:$0xff]
    %v1220 = vld [vmem:[#allocation2 + $0x219] sm:$0xff]
    %v1221 = vld [vmem:[#allocation2 + $0x229] sm:$0xff]
    %v1222 = vld [vmem:[#allocation2 + $0x231] sm:$0xff]
    %v1223 = vld [vmem:[#allocation2 + $0x241] sm:$0xff]
    %v1224 = vld [vmem:[#allocation2 + $0x249] sm:$0xff]
    %v1225 = vld [vmem:[#allocation2 + $0x259] sm:$0xff]
    %v1226 = vld [vmem:[#allocation2 + $0x261] sm:$0xff]
    %v1227 = vld [vmem:[#allocation2 + $0x271] sm:$0xff]
    %v1228 = vld [vmem:[#allocation2 + $0x279] sm:$0xff]
    %v1229 = vld [vmem:[#allocation2 + $0x289] sm:$0xff]
    %v1230 = vld [vmem:[#allocation2 + $0x291] sm:$0xff]
    %v1231 = vld [vmem:[#allocation2 + $0x2a1] sm:$0xff]
    %v1232 = vld [vmem:[#allocation2 + $0x2a9] sm:$0xff]
    %v1233 = vld [vmem:[#allocation2 + $0x2b9] sm:$0xff]
    %v1234 = vld [vmem:[#allocation2 + $0x2c1] sm:$0xff]
    %v1235 = vld [vmem:[#allocation2 + $0x2d1] sm:$0xff]
    %v1236 = vld [vmem:[#allocation2 + $0x2d9] sm:$0xff]
    %v1237 = vld [vmem:[#allocation2 + $0x2e9] sm:$0xff]
    %v1238 = vld [vmem:[#allocation2 + $0x2f1] sm:$0xff]
    %v1239 = vld [vmem:[#allocation2 + $0x301] sm:$0xff]
    %v1240 = vld [vmem:[#allocation2 + $0x309] sm:$0xff]
    %v1241 = vld [vmem:[#allocation2 + $0x319] sm:$0xff]
    %v1242 = vld [vmem:[#allocation2 + $0x321] sm:$0xff]
    %v1243 = vld [vmem:[#allocation2 + $0x2] sm:$0xff]
    %v1244 = vld [vmem:[#allocation2 + $0xa] sm:$0xff]
    %v1245 = vld [vmem:[#allocation2 + $0x1a] sm:$0xff]
    %v1246 = vld [vmem:[#allocation2 + $0x22] sm:$0xff]
    %v1247 = vld [vmem:[#allocation2 + $0x32] sm:$0xff]
    %v1248 = vld [vmem:[#allocation2 + $0x3a] sm:$0xff]
    %v1249 = vld [vmem:[#allocation2 + $0x4a] sm:$0xff]
    %v1250 = vld [vmem:[#allocation2 + $0x52] sm:$0xff]
    %v1251 = vld [vmem:[#allocation2 + $0x62] sm:$0xff]
    %v1252 = vld [vmem:[#allocation2 + $0x6a] sm:$0xff]
    %v1253 = vld [vmem:[#allocation2 + $0x7a] sm:$0xff]
    %v1254 = vld [vmem:[#allocation2 + $0x82] sm:$0xff]
    %v1255 = vld [vmem:[#allocation2 + $0x92] sm:$0xff]
    %v1256 = vld [vmem:[#allocation2 + $0x9a] sm:$0xff]
    %v1257 = vld [vmem:[#allocation2 + $0xaa] sm:$0xff]
    %v1258 = vld [vmem:[#allocation2 + $0xb2] sm:$0xff]
    %v1259 = vld [vmem:[#allocation2 + $0xc2] sm:$0xff]
    %v1260 = vld [vmem:[#allocation2 + $0xca] sm:$0xff]
    %v1261 = vld [vmem:[#allocation2 + $0xda] sm:$0xff]
    %v1262 = vld [vmem:[#allocation2 + $0xe2] sm:$0xff]
    %v1263 = vld [vmem:[#allocation2 + $0xf2] sm:$0xff]
    %v1264 = vld [vmem:[#allocation2 + $0xfa] sm:$0xff]
    %v1265 = vld [vmem:[#allocation2 + $0x10a] sm:$0xff]
    %v1266 = vld [vmem:[#allocation2 + $0x112] sm:$0xff]
    %v1267 = vld [vmem:[#allocation2 + $0x122] sm:$0xff]
    %v1268 = vld [vmem:[#allocation2 + $0x12a] sm:$0xff]
    %v1269 = vld [vmem:[#allocation2 + $0x13a] sm:$0xff]
    %v1270 = vld [vmem:[#allocation2 + $0x142] sm:$0xff]
    %v1271 = vld [vmem:[#allocation2 + $0x152] sm:$0xff]
    %v1272 = vld [vmem:[#allocation2 + $0x15a] sm:$0xff]
    %v1273 = vld [vmem:[#allocation2 + $0x16a] sm:$0xff]
    %v1274 = vld [vmem:[#allocation2 + $0x172] sm:$0xff]
    %v1275 = vld [vmem:[#allocation2 + $0x1b2] sm:$0xff]
    %v1276 = vld [vmem:[#allocation2 + $0x1ba] sm:$0xff]
    %v1277 = vld [vmem:[#allocation2 + $0x1ca] sm:$0xff]
    %v1278 = vld [vmem:[#allocation2 + $0x1d2] sm:$0xff]
    %v1279 = vld [vmem:[#allocation2 + $0x1e2] sm:$0xff]
    %v1280 = vld [vmem:[#allocation2 + $0x1ea] sm:$0xff]
    %v1281 = vld [vmem:[#allocation2 + $0x1fa] sm:$0xff]
    %v1282 = vld [vmem:[#allocation2 + $0x202] sm:$0xff]
    %v1283 = vld [vmem:[#allocation2 + $0x212] sm:$0xff]
    %v1284 = vld [vmem:[#allocation2 + $0x21a] sm:$0xff]
    %v1285 = vld [vmem:[#allocation2 + $0x22a] sm:$0xff]
    %v1286 = vld [vmem:[#allocation2 + $0x232] sm:$0xff]
    %v1287 = vld [vmem:[#allocation2 + $0x242] sm:$0xff]
    %v1288 = vld [vmem:[#allocation2 + $0x24a] sm:$0xff]
    %v1289 = vld [vmem:[#allocation2 + $0x25a] sm:$0xff]
    %v1290 = vld [vmem:[#allocation2 + $0x262] sm:$0xff]
    %v1291 = vld [vmem:[#allocation2 + $0x272] sm:$0xff]
    %v1292 = vld [vmem:[#allocation2 + $0x27a] sm:$0xff]
    %v1293 = vld [vmem:[#allocation2 + $0x28a] sm:$0xff]
    %v1294 = vld [vmem:[#allocation2 + $0x292] sm:$0xff]
    %v1295 = vld [vmem:[#allocation2 + $0x2a2] sm:$0xff]
    %v1296 = vld [vmem:[#allocation2 + $0x2aa] sm:$0xff]
    %v1297 = vld [vmem:[#allocation2 + $0x2ba] sm:$0xff]
    %v1298 = vld [vmem:[#allocation2 + $0x2c2] sm:$0xff]
    %v1299 = vld [vmem:[#allocation2 + $0x2d2] sm:$0xff]
    %v1300 = vld [vmem:[#allocation2 + $0x2da] sm:$0xff]
    %v1301 = vld [vmem:[#allocation2 + $0x2ea] sm:$0xff]
    %v1302 = vld [vmem:[#allocation2 + $0x2f2] sm:$0xff]
    %v1303 = vld [vmem:[#allocation2 + $0x302] sm:$0xff]
    %v1304 = vld [vmem:[#allocation2 + $0x30a] sm:$0xff]
    %v1305 = vld [vmem:[#allocation2 + $0x31a] sm:$0xff]
    %v1306 = vld [vmem:[#allocation2 + $0x322] sm:$0xff]
    %v1307 = vld [vmem:[%s986] sm:$0xff]
    %v1308 = vld [vmem:[%s986 + $0x8] sm:$0xff]
    %v1309 = vld [vmem:[%s986 + $0x18] sm:$0xff]
    %v1310 = vld [vmem:[%s986 + $0x20] sm:$0xff]
    %v1311 = vld [vmem:[%s986 + $0x30] sm:$0xff]
    %v1312 = vld [vmem:[%s986 + $0x38] sm:$0xff]
    %v1313 = vld [vmem:[%s986 + $0x48] sm:$0xff]
    %v1314 = vld [vmem:[%s986 + $0x50] sm:$0xff]
    %v1315 = vld [vmem:[%s986 + $0x60] sm:$0xff]
    %v1316 = vld [vmem:[%s986 + $0x68] sm:$0xff]
    %v1317 = vld [vmem:[%s986 + $0x78] sm:$0xff]
    %v1318 = vld [vmem:[%s986 + $0x80] sm:$0xff]
    %v1319 = vld [vmem:[%s986 + $0x90] sm:$0xff]
    %v1320 = vld [vmem:[%s986 + $0x98] sm:$0xff]
    %v1321 = vld [vmem:[%s986 + $0xa8] sm:$0xff]
    %v1322 = vld [vmem:[%s986 + $0xb0] sm:$0xff]
    %v1323 = vld [vmem:[%s986 + $0xc0] sm:$0xff]
    %v1324 = vld [vmem:[%s986 + $0xc8] sm:$0xff]
    %v1325 = vld [vmem:[%s986 + $0xd8] sm:$0xff]
    %v1326 = vld [vmem:[%s986 + $0xe0] sm:$0xff]
    %v1327 = vld [vmem:[%s986 + $0xf0] sm:$0xff]
    %v1328 = vld [vmem:[%s986 + $0xf8] sm:$0xff]
    %v1329 = vld [vmem:[%s986 + $0x108] sm:$0xff]
    %v1330 = vld [vmem:[%s986 + $0x110] sm:$0xff]
    %v1331 = vld [vmem:[%s986 + $0x120] sm:$0xff]
    %v1332 = vld [vmem:[%s986 + $0x128] sm:$0xff]
    %v1333 = vld [vmem:[%s986 + $0x138] sm:$0xff]
    %v1334 = vld [vmem:[%s986 + $0x140] sm:$0xff]
    %v1335 = vld [vmem:[%s986 + $0x150] sm:$0xff]
    %v1336 = vld [vmem:[%s986 + $0x158] sm:$0xff]
    %v1337 = vld [vmem:[%s986 + $0x168] sm:$0xff]
    %v1338 = vld [vmem:[%s986 + $0x170] sm:$0xff]
    %v1339 = vld [vmem:[%s986 + $0x1b0] sm:$0xff]
    %v1340 = vld [vmem:[%s986 + $0x1b8] sm:$0xff]
    %v1341 = vld [vmem:[%s986 + $0x1c8] sm:$0xff]
    %v1342 = vld [vmem:[%s986 + $0x1d0] sm:$0xff]
    %v1343 = vld [vmem:[%s986 + $0x1e0] sm:$0xff]
    %v1344 = vld [vmem:[%s986 + $0x1e8] sm:$0xff]
    %v1345 = vld [vmem:[%s986 + $0x1f8] sm:$0xff]
    %v1346 = vld [vmem:[%s986 + $0x200] sm:$0xff]
    %v1347 = vld [vmem:[%s986 + $0x210] sm:$0xff]
    %v1348 = vld [vmem:[%s986 + $0x218] sm:$0xff]
    %v1349 = vld [vmem:[%s986 + $0x228] sm:$0xff]
    %v1350 = vld [vmem:[%s986 + $0x230] sm:$0xff]
    %v1351 = vld [vmem:[%s986 + $0x240] sm:$0xff]
    %v1352 = vld [vmem:[%s986 + $0x248] sm:$0xff]
    %v1353 = vld [vmem:[%s986 + $0x258] sm:$0xff]
    %v1354 = vld [vmem:[%s986 + $0x260] sm:$0xff]
    %v1355 = vld [vmem:[%s986 + $0x270] sm:$0xff]
    %v1356 = vld [vmem:[%s986 + $0x278] sm:$0xff]
    %v1357 = vld [vmem:[%s986 + $0x288] sm:$0xff]
    %v1358 = vld [vmem:[%s986 + $0x290] sm:$0xff]
    %v1359 = vld [vmem:[%s986 + $0x2a0] sm:$0xff]
    %v1360 = vld [vmem:[%s986 + $0x2a8] sm:$0xff]
    %v1361 = vld [vmem:[%s986 + $0x2b8] sm:$0xff]
    %v1362 = vld [vmem:[%s986 + $0x2c0] sm:$0xff]
    %v1363 = vld [vmem:[%s986 + $0x2d0] sm:$0xff]
    %v1364 = vld [vmem:[%s986 + $0x2d8] sm:$0xff]
    %v1365 = vld [vmem:[%s986 + $0x2e8] sm:$0xff]
    %v1366 = vld [vmem:[%s986 + $0x2f0] sm:$0xff]
    %v1367 = vld [vmem:[%s986 + $0x300] sm:$0xff]
    %v1368 = vld [vmem:[%s986 + $0x308] sm:$0xff]
    %v1369 = vld [vmem:[%s986 + $0x318] sm:$0xff]
    %v1370 = vld [vmem:[%s986 + $0x320] sm:$0xff]
    %v1371 = vld [vmem:[%s986 + $0x1] sm:$0xff]
    %v1372 = vld [vmem:[%s986 + $0x9] sm:$0xff]
    %v1373 = vld [vmem:[%s986 + $0x19] sm:$0xff]
    %v1374 = vld [vmem:[%s986 + $0x21] sm:$0xff]
    %v1375 = vld [vmem:[%s986 + $0x31] sm:$0xff]
    %v1376 = vld [vmem:[%s986 + $0x39] sm:$0xff]
    %v1377 = vld [vmem:[%s986 + $0x49] sm:$0xff]
    %v1378 = vld [vmem:[%s986 + $0x51] sm:$0xff]
    %v1379 = vld [vmem:[%s986 + $0x61] sm:$0xff]
    %v1380 = vld [vmem:[%s986 + $0x69] sm:$0xff]
    %v1381 = vld [vmem:[%s986 + $0x79] sm:$0xff]
    %v1382 = vld [vmem:[%s986 + $0x81] sm:$0xff]
    %v1383 = vld [vmem:[%s986 + $0x91] sm:$0xff]
    %v1384 = vld [vmem:[%s986 + $0x99] sm:$0xff]
    %v1385 = vld [vmem:[%s986 + $0xa9] sm:$0xff]
    %v1386 = vld [vmem:[%s986 + $0xb1] sm:$0xff]
    %v1387 = vld [vmem:[%s986 + $0xc1] sm:$0xff]
    %v1388 = vld [vmem:[%s986 + $0xc9] sm:$0xff]
    %v1389 = vld [vmem:[%s986 + $0xd9] sm:$0xff]
    %v1390 = vld [vmem:[%s986 + $0xe1] sm:$0xff]
    %v1391 = vld [vmem:[%s986 + $0xf1] sm:$0xff]
    %v1392 = vld [vmem:[%s986 + $0xf9] sm:$0xff]
    %v1393 = vld [vmem:[%s986 + $0x109] sm:$0xff]
    %v1394 = vld [vmem:[%s986 + $0x111] sm:$0xff]
    %v1395 = vld [vmem:[%s986 + $0x121] sm:$0xff]
    %v1396 = vld [vmem:[%s986 + $0x129] sm:$0xff]
    %v1397 = vld [vmem:[%s986 + $0x139] sm:$0xff]
    %v1398 = vld [vmem:[%s986 + $0x141] sm:$0xff]
    %v1399 = vld [vmem:[%s986 + $0x151] sm:$0xff]
    %v1400 = vld [vmem:[%s986 + $0x159] sm:$0xff]
    %v1401 = vld [vmem:[%s986 + $0x169] sm:$0xff]
    %v1402 = vld [vmem:[%s986 + $0x171] sm:$0xff]
    %v1403 = vld [vmem:[%s986 + $0x1b1] sm:$0xff]
    %v1404 = vld [vmem:[%s986 + $0x1b9] sm:$0xff]
    %v1405 = vld [vmem:[%s986 + $0x1c9] sm:$0xff]
    %v1406 = vld [vmem:[%s986 + $0x1d1] sm:$0xff]
    %v1407 = vld [vmem:[%s986 + $0x1e1] sm:$0xff]
    %v1408 = vld [vmem:[%s986 + $0x1e9] sm:$0xff]
    %v1409 = vld [vmem:[%s986 + $0x1f9] sm:$0xff]
    %v1410 = vld [vmem:[%s986 + $0x201] sm:$0xff]
    %v1411 = vld [vmem:[%s986 + $0x211] sm:$0xff]
    %v1412 = vld [vmem:[%s986 + $0x219] sm:$0xff]
    %v1413 = vld [vmem:[%s986 + $0x229] sm:$0xff]
    %v1414 = vld [vmem:[%s986 + $0x231] sm:$0xff]
    %v1415 = vld [vmem:[%s986 + $0x241] sm:$0xff]
    %v1416 = vld [vmem:[%s986 + $0x249] sm:$0xff]
    %v1417 = vld [vmem:[%s986 + $0x259] sm:$0xff]
    %v1418 = vld [vmem:[%s986 + $0x261] sm:$0xff]
    %v1419 = vld [vmem:[%s986 + $0x271] sm:$0xff]
    %v1420 = vld [vmem:[%s986 + $0x279] sm:$0xff]
    %v1421 = vld [vmem:[%s986 + $0x289] sm:$0xff]
    %v1422 = vld [vmem:[%s986 + $0x291] sm:$0xff]
    %v1423 = vld [vmem:[%s986 + $0x2a1] sm:$0xff]
    %v1424 = vld [vmem:[%s986 + $0x2a9] sm:$0xff]
    %v1425 = vld [vmem:[%s986 + $0x2b9] sm:$0xff]
    %v1426 = vld [vmem:[%s986 + $0x2c1] sm:$0xff]
    %v1427 = vld [vmem:[%s986 + $0x2d1] sm:$0xff]
    %v1428 = vld [vmem:[%s986 + $0x2d9] sm:$0xff]
    %v1429 = vld [vmem:[%s986 + $0x2e9] sm:$0xff]
    %v1430 = vld [vmem:[%s986 + $0x2f1] sm:$0xff]
    %v1431 = vld [vmem:[%s986 + $0x301] sm:$0xff]
    %v1432 = vld [vmem:[%s986 + $0x309] sm:$0xff]
    %v1433 = vld [vmem:[%s986 + $0x319] sm:$0xff]
    %v1434 = vld [vmem:[%s986 + $0x321] sm:$0xff]
    %v1435 = vld [vmem:[%s986 + $0x2] sm:$0xff]
    %v1436 = vld [vmem:[%s986 + $0xa] sm:$0xff]
    %v1437 = vld [vmem:[%s986 + $0x1a] sm:$0xff]
    %v1438 = vld [vmem:[%s986 + $0x22] sm:$0xff]
    %v1439 = vld [vmem:[%s986 + $0x32] sm:$0xff]
    %v1440 = vld [vmem:[%s986 + $0x3a] sm:$0xff]
    %v1441 = vld [vmem:[%s986 + $0x4a] sm:$0xff]
    %v1442 = vld [vmem:[%s986 + $0x52] sm:$0xff]
    %v1443 = vld [vmem:[%s986 + $0x62] sm:$0xff]
    %v1444 = vld [vmem:[%s986 + $0x6a] sm:$0xff]
    %v1445 = vld [vmem:[%s986 + $0x7a] sm:$0xff]
    %v1446 = vld [vmem:[%s986 + $0x82] sm:$0xff]
    %v1447 = vld [vmem:[%s986 + $0x92] sm:$0xff]
    %v1448 = vld [vmem:[%s986 + $0x9a] sm:$0xff]
    %v1449 = vld [vmem:[%s986 + $0xaa] sm:$0xff]
    %v1450 = vld [vmem:[%s986 + $0xb2] sm:$0xff]
    %v1451 = vld [vmem:[%s986 + $0xc2] sm:$0xff]
    %v1452 = vld [vmem:[%s986 + $0xca] sm:$0xff]
    %v1453 = vld [vmem:[%s986 + $0xda] sm:$0xff]
    %v1454 = vld [vmem:[%s986 + $0xe2] sm:$0xff]
    %v1455 = vld [vmem:[%s986 + $0xf2] sm:$0xff]
    %v1456 = vld [vmem:[%s986 + $0xfa] sm:$0xff]
    %v1457 = vld [vmem:[%s986 + $0x10a] sm:$0xff]
    %v1458 = vld [vmem:[%s986 + $0x112] sm:$0xff]
    %v1459 = vld [vmem:[%s986 + $0x122] sm:$0xff]
    %v1460 = vld [vmem:[%s986 + $0x12a] sm:$0xff]
    %v1461 = vld [vmem:[%s986 + $0x13a] sm:$0xff]
    %v1462 = vld [vmem:[%s986 + $0x142] sm:$0xff]
    %v1463 = vld [vmem:[%s986 + $0x152] sm:$0xff]
    %v1464 = vld [vmem:[%s986 + $0x15a] sm:$0xff]
    %v1465 = vld [vmem:[%s986 + $0x16a] sm:$0xff]
    %v1466 = vld [vmem:[%s986 + $0x172] sm:$0xff]
    %v1467 = vld [vmem:[%s986 + $0x1b2] sm:$0xff]
    %v1468 = vld [vmem:[%s986 + $0x1ba] sm:$0xff]
    %v1469 = vld [vmem:[%s986 + $0x1ca] sm:$0xff]
    %v1470 = vld [vmem:[%s986 + $0x1d2] sm:$0xff]
    %v1471 = vld [vmem:[%s986 + $0x1e2] sm:$0xff]
    %v1472 = vld [vmem:[%s986 + $0x1ea] sm:$0xff]
    %v1473 = vld [vmem:[%s986 + $0x1fa] sm:$0xff]
    %v1474 = vld [vmem:[%s986 + $0x202] sm:$0xff]
    %v1475 = vld [vmem:[%s986 + $0x212] sm:$0xff]
    %v1476 = vld [vmem:[%s986 + $0x21a] sm:$0xff]
    %v1477 = vld [vmem:[%s986 + $0x22a] sm:$0xff]
    %v1478 = vld [vmem:[%s986 + $0x232] sm:$0xff]
    %v1479 = vld [vmem:[%s986 + $0x242] sm:$0xff]
    %v1480 = vld [vmem:[%s986 + $0x24a] sm:$0xff]
    %v1481 = vld [vmem:[%s986 + $0x25a] sm:$0xff]
    %v1482 = vld [vmem:[%s986 + $0x262] sm:$0xff]
    %v1483 = vld [vmem:[%s986 + $0x272] sm:$0xff]
    %v1484 = vld [vmem:[%s986 + $0x27a] sm:$0xff]
    %v1485 = vld [vmem:[%s986 + $0x28a] sm:$0xff]
    %v1486 = vld [vmem:[%s986 + $0x292] sm:$0xff]
    %v1487 = vld [vmem:[%s986 + $0x2a2] sm:$0xff]
    %v1488 = vld [vmem:[%s986 + $0x2aa] sm:$0xff]
    %v1489 = vld [vmem:[%s986 + $0x2ba] sm:$0xff]
    %v1490 = vld [vmem:[%s986 + $0x2c2] sm:$0xff]
    %v1491 = vld [vmem:[%s986 + $0x2d2] sm:$0xff]
    %v1492 = vld [vmem:[%s986 + $0x2da] sm:$0xff]
    %v1493 = vld [vmem:[%s986 + $0x2ea] sm:$0xff]
    %v1494 = vld [vmem:[%s986 + $0x2f2] sm:$0xff]
    %v1495 = vld [vmem:[%s986 + $0x302] sm:$0xff]
    %v1496 = vld [vmem:[%s986 + $0x30a] sm:$0xff]
    %v1497 = vld [vmem:[%s986 + $0x31a] sm:$0xff]
    %v1498 = vld [vmem:[%s986 + $0x322] sm:$0xff]
    %s1499 = scalar_lea.vmem [#allocation2], 48
    %v1500 = vld [vmem:[%s1499] sm:$0xff]
    %v1501 = vld [vmem:[%s1499 + $0x8] sm:$0xff]
    %v1502 = vld [vmem:[%s1499 + $0x18] sm:$0xff]
    %v1503 = vld [vmem:[%s1499 + $0x20] sm:$0xff]
    %v1504 = vld [vmem:[%s1499 + $0x30] sm:$0xff]
    %v1505 = vld [vmem:[%s1499 + $0x38] sm:$0xff]
    %v1506 = vld [vmem:[%s1499 + $0x48] sm:$0xff]
    %v1507 = vld [vmem:[%s1499 + $0x50] sm:$0xff]
    %v1508 = vld [vmem:[%s1499 + $0x60] sm:$0xff]
    %v1509 = vld [vmem:[%s1499 + $0x68] sm:$0xff]
    %v1510 = vld [vmem:[%s1499 + $0x78] sm:$0xff]
    %v1511 = vld [vmem:[%s1499 + $0x80] sm:$0xff]
    %v1512 = vld [vmem:[%s1499 + $0x90] sm:$0xff]
    %v1513 = vld [vmem:[%s1499 + $0x98] sm:$0xff]
    %v1514 = vld [vmem:[%s1499 + $0xa8] sm:$0xff]
    %v1515 = vld [vmem:[%s1499 + $0xb0] sm:$0xff]
    %v1516 = vld [vmem:[%s1499 + $0xc0] sm:$0xff]
    %v1517 = vld [vmem:[%s1499 + $0xc8] sm:$0xff]
    %v1518 = vld [vmem:[%s1499 + $0xd8] sm:$0xff]
    %v1519 = vld [vmem:[%s1499 + $0xe0] sm:$0xff]
    %v1520 = vld [vmem:[%s1499 + $0xf0] sm:$0xff]
    %v1521 = vld [vmem:[%s1499 + $0xf8] sm:$0xff]
    %v1522 = vld [vmem:[%s1499 + $0x108] sm:$0xff]
    %v1523 = vld [vmem:[%s1499 + $0x110] sm:$0xff]
    %v1524 = vld [vmem:[%s1499 + $0x120] sm:$0xff]
    %v1525 = vld [vmem:[%s1499 + $0x128] sm:$0xff]
    %v1526 = vld [vmem:[%s1499 + $0x138] sm:$0xff]
    %v1527 = vld [vmem:[%s1499 + $0x140] sm:$0xff]
    %v1528 = vld [vmem:[%s1499 + $0x150] sm:$0xff]
    %v1529 = vld [vmem:[%s1499 + $0x158] sm:$0xff]
    %v1530 = vld [vmem:[%s1499 + $0x168] sm:$0xff]
    %v1531 = vld [vmem:[%s1499 + $0x170] sm:$0xff]
    %v1532 = vld [vmem:[%s1499 + $0x1b0] sm:$0xff]
    %v1533 = vld [vmem:[%s1499 + $0x1b8] sm:$0xff]
    %v1534 = vld [vmem:[%s1499 + $0x1c8] sm:$0xff]
    %v1535 = vld [vmem:[%s1499 + $0x1d0] sm:$0xff]
    %v1536 = vld [vmem:[%s1499 + $0x1e0] sm:$0xff]
    %v1537 = vld [vmem:[%s1499 + $0x1e8] sm:$0xff]
    %v1538 = vld [vmem:[%s1499 + $0x1f8] sm:$0xff]
    %v1539 = vld [vmem:[%s1499 + $0x200] sm:$0xff]
    %v1540 = vld [vmem:[%s1499 + $0x210] sm:$0xff]
    %v1541 = vld [vmem:[%s1499 + $0x218] sm:$0xff]
    %v1542 = vld [vmem:[%s1499 + $0x228] sm:$0xff]
    %v1543 = vld [vmem:[%s1499 + $0x230] sm:$0xff]
    %v1544 = vld [vmem:[%s1499 + $0x240] sm:$0xff]
    %v1545 = vld [vmem:[%s1499 + $0x248] sm:$0xff]
    %v1546 = vld [vmem:[%s1499 + $0x258] sm:$0xff]
    %v1547 = vld [vmem:[%s1499 + $0x260] sm:$0xff]
    %v1548 = vld [vmem:[%s1499 + $0x270] sm:$0xff]
    %v1549 = vld [vmem:[%s1499 + $0x278] sm:$0xff]
    %v1550 = vld [vmem:[%s1499 + $0x288] sm:$0xff]
    %v1551 = vld [vmem:[%s1499 + $0x290] sm:$0xff]
    %v1552 = vld [vmem:[%s1499 + $0x2a0] sm:$0xff]
    %v1553 = vld [vmem:[%s1499 + $0x2a8] sm:$0xff]
    %v1554 = vld [vmem:[%s1499 + $0x2b8] sm:$0xff]
    %v1555 = vld [vmem:[%s1499 + $0x2c0] sm:$0xff]
    %v1556 = vld [vmem:[%s1499 + $0x2d0] sm:$0xff]
    %v1557 = vld [vmem:[%s1499 + $0x2d8] sm:$0xff]
    %v1558 = vld [vmem:[%s1499 + $0x2e8] sm:$0xff]
    %v1559 = vld [vmem:[%s1499 + $0x2f0] sm:$0xff]
    %v1560 = vld [vmem:[%s1499 + $0x300] sm:$0xff]
    %v1561 = vld [vmem:[%s1499 + $0x308] sm:$0xff]
    %v1562 = vld [vmem:[%s1499 + $0x318] sm:$0xff]
    %v1563 = vld [vmem:[%s1499 + $0x320] sm:$0xff]
    %v1564 = vld [vmem:[%s1499 + $0x1] sm:$0xff]
    %v1565 = vld [vmem:[%s1499 + $0x9] sm:$0xff]
    %v1566 = vld [vmem:[%s1499 + $0x19] sm:$0xff]
    %v1567 = vld [vmem:[%s1499 + $0x21] sm:$0xff]
    %v1568 = vld [vmem:[%s1499 + $0x31] sm:$0xff]
    %v1569 = vld [vmem:[%s1499 + $0x39] sm:$0xff]
    %v1570 = vld [vmem:[%s1499 + $0x49] sm:$0xff]
    %v1571 = vld [vmem:[%s1499 + $0x51] sm:$0xff]
    %v1572 = vld [vmem:[%s1499 + $0x61] sm:$0xff]
    %v1573 = vld [vmem:[%s1499 + $0x69] sm:$0xff]
    %v1574 = vld [vmem:[%s1499 + $0x79] sm:$0xff]
    %v1575 = vld [vmem:[%s1499 + $0x81] sm:$0xff]
    %v1576 = vld [vmem:[%s1499 + $0x91] sm:$0xff]
    %v1577 = vld [vmem:[%s1499 + $0x99] sm:$0xff]
    %v1578 = vld [vmem:[%s1499 + $0xa9] sm:$0xff]
    %v1579 = vld [vmem:[%s1499 + $0xb1] sm:$0xff]
    %v1580 = vld [vmem:[%s1499 + $0xc1] sm:$0xff]
    %v1581 = vld [vmem:[%s1499 + $0xc9] sm:$0xff]
    %v1582 = vld [vmem:[%s1499 + $0xd9] sm:$0xff]
    %v1583 = vld [vmem:[%s1499 + $0xe1] sm:$0xff]
    %v1584 = vld [vmem:[%s1499 + $0xf1] sm:$0xff]
    %v1585 = vld [vmem:[%s1499 + $0xf9] sm:$0xff]
    %v1586 = vld [vmem:[%s1499 + $0x109] sm:$0xff]
    %v1587 = vld [vmem:[%s1499 + $0x111] sm:$0xff]
    %v1588 = vld [vmem:[%s1499 + $0x121] sm:$0xff]
    %v1589 = vld [vmem:[%s1499 + $0x129] sm:$0xff]
    %v1590 = vld [vmem:[%s1499 + $0x139] sm:$0xff]
    %v1591 = vld [vmem:[%s1499 + $0x141] sm:$0xff]
    %v1592 = vld [vmem:[%s1499 + $0x151] sm:$0xff]
    %v1593 = vld [vmem:[%s1499 + $0x159] sm:$0xff]
    %v1594 = vld [vmem:[%s1499 + $0x169] sm:$0xff]
    %v1595 = vld [vmem:[%s1499 + $0x171] sm:$0xff]
    %v1596 = vld [vmem:[%s1499 + $0x1b1] sm:$0xff]
    %v1597 = vld [vmem:[%s1499 + $0x1b9] sm:$0xff]
    %v1598 = vld [vmem:[%s1499 + $0x1c9] sm:$0xff]
    %v1599 = vld [vmem:[%s1499 + $0x1d1] sm:$0xff]
    %v1600 = vld [vmem:[%s1499 + $0x1e1] sm:$0xff]
    %v1601 = vld [vmem:[%s1499 + $0x1e9] sm:$0xff]
    %v1602 = vld [vmem:[%s1499 + $0x1f9] sm:$0xff]
    %v1603 = vld [vmem:[%s1499 + $0x201] sm:$0xff]
    %v1604 = vld [vmem:[%s1499 + $0x211] sm:$0xff]
    %v1605 = vld [vmem:[%s1499 + $0x219] sm:$0xff]
    %v1606 = vld [vmem:[%s1499 + $0x229] sm:$0xff]
    %v1607 = vld [vmem:[%s1499 + $0x231] sm:$0xff]
    %v1608 = vld [vmem:[%s1499 + $0x241] sm:$0xff]
    %v1609 = vld [vmem:[%s1499 + $0x249] sm:$0xff]
    %v1610 = vld [vmem:[%s1499 + $0x259] sm:$0xff]
    %v1611 = vld [vmem:[%s1499 + $0x261] sm:$0xff]
    %v1612 = vld [vmem:[%s1499 + $0x271] sm:$0xff]
    %v1613 = vld [vmem:[%s1499 + $0x279] sm:$0xff]
    %v1614 = vld [vmem:[%s1499 + $0x289] sm:$0xff]
    %v1615 = vld [vmem:[%s1499 + $0x291] sm:$0xff]
    %v1616 = vld [vmem:[%s1499 + $0x2a1] sm:$0xff]
    %v1617 = vld [vmem:[%s1499 + $0x2a9] sm:$0xff]
    %v1618 = vld [vmem:[%s1499 + $0x2b9] sm:$0xff]
    %v1619 = vld [vmem:[%s1499 + $0x2c1] sm:$0xff]
    %v1620 = vld [vmem:[%s1499 + $0x2d1] sm:$0xff]
    %v1621 = vld [vmem:[%s1499 + $0x2d9] sm:$0xff]
    %v1622 = vld [vmem:[%s1499 + $0x2e9] sm:$0xff]
    %v1623 = vld [vmem:[%s1499 + $0x2f1] sm:$0xff]
    %v1624 = vld [vmem:[%s1499 + $0x301] sm:$0xff]
    %v1625 = vld [vmem:[%s1499 + $0x309] sm:$0xff]
    %v1626 = vld [vmem:[%s1499 + $0x319] sm:$0xff]
    %v1627 = vld [vmem:[%s1499 + $0x321] sm:$0xff]
    %v1628 = vld [vmem:[%s1499 + $0x2] sm:$0xff]
    %v1629 = vld [vmem:[%s1499 + $0xa] sm:$0xff]
    %v1630 = vld [vmem:[%s1499 + $0x1a] sm:$0xff]
    %v1631 = vld [vmem:[%s1499 + $0x22] sm:$0xff]
    %v1632 = vld [vmem:[%s1499 + $0x32] sm:$0xff]
    %v1633 = vld [vmem:[%s1499 + $0x3a] sm:$0xff]
    %v1634 = vld [vmem:[%s1499 + $0x4a] sm:$0xff]
    %v1635 = vld [vmem:[%s1499 + $0x52] sm:$0xff]
    %v1636 = vld [vmem:[%s1499 + $0x62] sm:$0xff]
    %v1637 = vld [vmem:[%s1499 + $0x6a] sm:$0xff]
    %v1638 = vld [vmem:[%s1499 + $0x7a] sm:$0xff]
    %v1639 = vld [vmem:[%s1499 + $0x82] sm:$0xff]
    %v1640 = vld [vmem:[%s1499 + $0x92] sm:$0xff]
    %v1641 = vld [vmem:[%s1499 + $0x9a] sm:$0xff]
    %v1642 = vld [vmem:[%s1499 + $0xaa] sm:$0xff]
    %v1643 = vld [vmem:[%s1499 + $0xb2] sm:$0xff]
    %v1644 = vld [vmem:[%s1499 + $0xc2] sm:$0xff]
    %v1645 = vld [vmem:[%s1499 + $0xca] sm:$0xff]
    %v1646 = vld [vmem:[%s1499 + $0xda] sm:$0xff]
    %v1647 = vld [vmem:[%s1499 + $0xe2] sm:$0xff]
    %v1648 = vld [vmem:[%s1499 + $0xf2] sm:$0xff]
    %v1649 = vld [vmem:[%s1499 + $0xfa] sm:$0xff]
    %v1650 = vld [vmem:[%s1499 + $0x10a] sm:$0xff]
    %v1651 = vld [vmem:[%s1499 + $0x112] sm:$0xff]
    %v1652 = vld [vmem:[%s1499 + $0x122] sm:$0xff]
    %v1653 = vld [vmem:[%s1499 + $0x12a] sm:$0xff]
    %v1654 = vld [vmem:[%s1499 + $0x13a] sm:$0xff]
    %v1655 = vld [vmem:[%s1499 + $0x142] sm:$0xff]
    %v1656 = vld [vmem:[%s1499 + $0x152] sm:$0xff]
    %v1657 = vld [vmem:[%s1499 + $0x15a] sm:$0xff]
    %v1658 = vld [vmem:[%s1499 + $0x16a] sm:$0xff]
    %v1659 = vld [vmem:[%s1499 + $0x172] sm:$0xff]
    %v1660 = vld [vmem:[%s1499 + $0x1b2] sm:$0xff]
    %v1661 = vld [vmem:[%s1499 + $0x1ba] sm:$0xff]
    %v1662 = vld [vmem:[%s1499 + $0x1ca] sm:$0xff]
    %v1663 = vld [vmem:[%s1499 + $0x1d2] sm:$0xff]
    %v1664 = vld [vmem:[%s1499 + $0x1e2] sm:$0xff]
    %v1665 = vld [vmem:[%s1499 + $0x1ea] sm:$0xff]
    %v1666 = vld [vmem:[%s1499 + $0x1fa] sm:$0xff]
    %v1667 = vld [vmem:[%s1499 + $0x202] sm:$0xff]
    %v1668 = vld [vmem:[%s1499 + $0x212] sm:$0xff]
    %v1669 = vld [vmem:[%s1499 + $0x21a] sm:$0xff]
    %v1670 = vld [vmem:[%s1499 + $0x22a] sm:$0xff]
    %v1671 = vld [vmem:[%s1499 + $0x232] sm:$0xff]
    %v1672 = vld [vmem:[%s1499 + $0x242] sm:$0xff]
    %v1673 = vld [vmem:[%s1499 + $0x24a] sm:$0xff]
    %v1674 = vld [vmem:[%s1499 + $0x25a] sm:$0xff]
    %v1675 = vld [vmem:[%s1499 + $0x262] sm:$0xff]
    %v1676 = vld [vmem:[%s1499 + $0x272] sm:$0xff]
    %v1677 = vld [vmem:[%s1499 + $0x27a] sm:$0xff]
    %v1678 = vld [vmem:[%s1499 + $0x28a] sm:$0xff]
    %v1679 = vld [vmem:[%s1499 + $0x292] sm:$0xff]
    %v1680 = vld [vmem:[%s1499 + $0x2a2] sm:$0xff]
    %v1681 = vld [vmem:[%s1499 + $0x2aa] sm:$0xff]
    %v1682 = vld [vmem:[%s1499 + $0x2ba] sm:$0xff]
    %v1683 = vld [vmem:[%s1499 + $0x2c2] sm:$0xff]
    %v1684 = vld [vmem:[%s1499 + $0x2d2] sm:$0xff]
    %v1685 = vld [vmem:[%s1499 + $0x2da] sm:$0xff]
    %v1686 = vld [vmem:[%s1499 + $0x2ea] sm:$0xff]
    %v1687 = vld [vmem:[%s1499 + $0x2f2] sm:$0xff]
    %v1688 = vld [vmem:[%s1499 + $0x302] sm:$0xff]
    %v1689 = vld [vmem:[%s1499 + $0x30a] sm:$0xff]
    %v1690 = vld [vmem:[%s1499 + $0x31a] sm:$0xff]
    %v1691 = vld [vmem:[%s1499 + $0x322] sm:$0xff]
    %v1692 = vld [vmem:[#allocation8] sm:$0xff]
    %v1693 = vld [vmem:[#allocation8 + $0x8] sm:$0xff]
    %v1694 = vld [vmem:[#allocation8 + $0x10] sm:$0xff]
    %v1695 = vld [vmem:[#allocation8 + $0x18] sm:$0xff]
    %v1696 = vld [vmem:[#allocation8 + $0x20] sm:$0xff]
    %v1697 = vld [vmem:[#allocation8 + $0x28] sm:$0xff]
    %v1698 = vld [vmem:[#allocation8 + $0x30] sm:$0xff]
    %v1699 = vld [vmem:[#allocation8 + $0x38] sm:$0xff]
    %v1700 = vld [vmem:[#allocation8 + $0x40] sm:$0xff]
    %v1701 = vld [vmem:[#allocation8 + $0x48] sm:$0xff]
    %v1702 = vld [vmem:[#allocation8 + $0x50] sm:$0xff]
    %v1703 = vld [vmem:[#allocation8 + $0x58] sm:$0xff]
    %v1704 = vld [vmem:[#allocation8 + $0x60] sm:$0xff]
    %v1705 = vld [vmem:[#allocation8 + $0x68] sm:$0xff]
    %v1706 = vld [vmem:[#allocation8 + $0x70] sm:$0xff]
    %v1707 = vld [vmem:[#allocation8 + $0x78] sm:$0xff]
    %v1708 = vld [vmem:[#allocation8 + $0x80] sm:$0xff]
    %v1709 = vld [vmem:[#allocation8 + $0x88] sm:$0xff]
    %v1710 = vld [vmem:[#allocation8 + $0x90] sm:$0xff]
    %v1711 = vld [vmem:[#allocation8 + $0x98] sm:$0xff]
    %v1712 = vld [vmem:[#allocation8 + $0xa0] sm:$0xff]
    %v1713 = vld [vmem:[#allocation8 + $0xa8] sm:$0xff]
    %v1714 = vld [vmem:[#allocation8 + $0xb0] sm:$0xff]
    %v1715 = vld [vmem:[#allocation8 + $0xb8] sm:$0xff]
    %v1716 = vld [vmem:[#allocation8 + $0xc0] sm:$0xff]
    %v1717 = vld [vmem:[#allocation8 + $0xc8] sm:$0xff]
    %v1718 = vld [vmem:[#allocation8 + $0xd0] sm:$0xff]
    %v1719 = vld [vmem:[#allocation8 + $0xd8] sm:$0xff]
    %v1720 = vld [vmem:[#allocation8 + $0xe0] sm:$0xff]
    %v1721 = vld [vmem:[#allocation8 + $0xe8] sm:$0xff]
    %v1722 = vld [vmem:[#allocation8 + $0xf0] sm:$0xff]
    %v1723 = vld [vmem:[#allocation8 + $0xf8] sm:$0xff]
    %v1724 = vld [vmem:[#allocation8 + $0x100] sm:$0xff]
    %v1725 = vld [vmem:[#allocation8 + $0x108] sm:$0xff]
    %v1726 = vld [vmem:[#allocation8 + $0x110] sm:$0xff]
    %v1727 = vld [vmem:[#allocation8 + $0x118] sm:$0xff]
    %v1728 = vld [vmem:[#allocation8 + $0x120] sm:$0xff]
    %v1729 = vld [vmem:[#allocation8 + $0x128] sm:$0xff]
    %v1730 = vld [vmem:[#allocation8 + $0x130] sm:$0xff]
    %v1731 = vld [vmem:[#allocation8 + $0x138] sm:$0xff]
    %v1732 = vld [vmem:[#allocation8 + $0x140] sm:$0xff]
    %v1733 = vld [vmem:[#allocation8 + $0x148] sm:$0xff]
    %v1734 = vld [vmem:[#allocation8 + $0x150] sm:$0xff]
    %v1735 = vld [vmem:[#allocation8 + $0x158] sm:$0xff]
    %v1736 = vld [vmem:[#allocation8 + $0x160] sm:$0xff]
    %v1737 = vld [vmem:[#allocation8 + $0x168] sm:$0xff]
    %v1738 = vld [vmem:[#allocation8 + $0x170] sm:$0xff]
    %v1739 = vld [vmem:[#allocation8 + $0x178] sm:$0xff]
    %v1740 = vld [vmem:[#allocation8 + $0x180] sm:$0xff]
    %v1741 = vld [vmem:[#allocation8 + $0x188] sm:$0xff]
    %v1742 = vld [vmem:[#allocation8 + $0x190] sm:$0xff]
    %v1743 = vld [vmem:[#allocation8 + $0x198] sm:$0xff]
    %v1744 = vld [vmem:[#allocation8 + $0x1a0] sm:$0xff]
    %v1745 = vld [vmem:[#allocation8 + $0x1a8] sm:$0xff]
    %v1746 = vld [vmem:[#allocation8 + $0x1b0] sm:$0xff]
    %v1747 = vld [vmem:[#allocation8 + $0x1b8] sm:$0xff]
    %v1748 = vld [vmem:[#allocation8 + $0x1c0] sm:$0xff]
    %v1749 = vld [vmem:[#allocation8 + $0x1c8] sm:$0xff]
    %v1750 = vld [vmem:[#allocation8 + $0x1d0] sm:$0xff]
    %v1751 = vld [vmem:[#allocation8 + $0x1d8] sm:$0xff]
    %v1752 = vld [vmem:[#allocation8 + $0x1e0] sm:$0xff]
    %v1753 = vld [vmem:[#allocation8 + $0x1e8] sm:$0xff]
    %v1754 = vld [vmem:[#allocation8 + $0x1f0] sm:$0xff]
    %v1755 = vld [vmem:[#allocation8 + $0x1f8] sm:$0xff]
    %v1756 = vld [vmem:[#allocation8 + $0x200] sm:$0xff]
    %v1757 = vld [vmem:[#allocation8 + $0x208] sm:$0xff]
    %v1758 = vld [vmem:[#allocation8 + $0x210] sm:$0xff]
    %v1759 = vld [vmem:[#allocation8 + $0x218] sm:$0xff]
    %v1760 = vld [vmem:[#allocation8 + $0x220] sm:$0xff]
    %v1761 = vld [vmem:[#allocation8 + $0x228] sm:$0xff]
    %v1762 = vld [vmem:[#allocation8 + $0x230] sm:$0xff]
    %v1763 = vld [vmem:[#allocation8 + $0x238] sm:$0xff]
    %v1764 = vld [vmem:[#allocation8 + $0x240] sm:$0xff]
    %v1765 = vld [vmem:[#allocation8 + $0x248] sm:$0xff]
    %v1766 = vld [vmem:[#allocation8 + $0x250] sm:$0xff]
    %v1767 = vld [vmem:[#allocation8 + $0x258] sm:$0xff]
    %v1768 = vld [vmem:[#allocation8 + $0x260] sm:$0xff]
    %v1769 = vld [vmem:[#allocation8 + $0x268] sm:$0xff]
    %v1770 = vld [vmem:[#allocation8 + $0x270] sm:$0xff]
    %v1771 = vld [vmem:[#allocation8 + $0x278] sm:$0xff]
    %v1772 = vld [vmem:[#allocation8 + $0x280] sm:$0xff]
    %v1773 = vld [vmem:[#allocation8 + $0x288] sm:$0xff]
    %v1774 = vld [vmem:[#allocation8 + $0x290] sm:$0xff]
    %v1775 = vld [vmem:[#allocation8 + $0x298] sm:$0xff]
    %v1776 = vld [vmem:[#allocation8 + $0x2a0] sm:$0xff]
    %v1777 = vld [vmem:[#allocation8 + $0x2a8] sm:$0xff]
    %v1778 = vld [vmem:[#allocation8 + $0x2b0] sm:$0xff]
    %v1779 = vld [vmem:[#allocation8 + $0x2b8] sm:$0xff]
    %v1780 = vld [vmem:[#allocation8 + $0x2c0] sm:$0xff]
    %v1781 = vld [vmem:[#allocation8 + $0x2c8] sm:$0xff]
    %v1782 = vld [vmem:[#allocation8 + $0x2d0] sm:$0xff]
    %v1783 = vld [vmem:[#allocation8 + $0x2d8] sm:$0xff]
    %v1784 = vld [vmem:[#allocation8 + $0x2e0] sm:$0xff]
    %v1785 = vld [vmem:[#allocation8 + $0x2e8] sm:$0xff]
    %v1786 = vld [vmem:[#allocation8 + $0x2f0] sm:$0xff]
    %v1787 = vld [vmem:[#allocation8 + $0x2f8] sm:$0xff]
    %v1788 = vld [vmem:[#allocation8 + $0x300] sm:$0xff]
    %v1789 = vld [vmem:[#allocation8 + $0x308] sm:$0xff]
    %v1790 = vld [vmem:[#allocation8 + $0x310] sm:$0xff]
    %v1791 = vld [vmem:[#allocation8 + $0x318] sm:$0xff]
    %v1792 = vld [vmem:[#allocation8 + $0x320] sm:$0xff]
    %v1793 = vld [vmem:[#allocation8 + $0x328] sm:$0xff]
    %v1794 = vld [vmem:[#allocation8 + $0x330] sm:$0xff]
    %v1795 = vld [vmem:[#allocation8 + $0x338] sm:$0xff]
    %v1796 = vld [vmem:[#allocation8 + $0x340] sm:$0xff]
    %v1797 = vld [vmem:[#allocation8 + $0x348] sm:$0xff]
    %v1798 = vld [vmem:[#allocation8 + $0x350] sm:$0xff]
    %v1799 = vld [vmem:[#allocation8 + $0x358] sm:$0xff]
    %v1800 = vld [vmem:[#allocation8 + $0x360] sm:$0xff]
    %v1801 = vld [vmem:[#allocation8 + $0x368] sm:$0xff]
    %v1802 = vld [vmem:[#allocation8 + $0x370] sm:$0xff]
    %v1803 = vld [vmem:[#allocation8 + $0x378] sm:$0xff]
    %v1804 = vld [vmem:[#allocation8 + $0x380] sm:$0xff]
    %v1805 = vld [vmem:[#allocation8 + $0x388] sm:$0xff]
    %v1806 = vld [vmem:[#allocation8 + $0x390] sm:$0xff]
    %v1807 = vld [vmem:[#allocation8 + $0x398] sm:$0xff]
    %v1808 = vld [vmem:[#allocation8 + $0x3a0] sm:$0xff]
    %v1809 = vld [vmem:[#allocation8 + $0x3a8] sm:$0xff]
    %v1810 = vld [vmem:[#allocation8 + $0x3b0] sm:$0xff]
    %v1811 = vld [vmem:[#allocation8 + $0x3b8] sm:$0xff]
    %v1812 = vld [vmem:[#allocation8 + $0x3c0] sm:$0xff]
    %v1813 = vld [vmem:[#allocation8 + $0x3c8] sm:$0xff]
    %v1814 = vld [vmem:[#allocation8 + $0x3d0] sm:$0xff]
    %v1815 = vld [vmem:[#allocation8 + $0x3d8] sm:$0xff]
    %v1816 = vld [vmem:[#allocation8 + $0x3e0] sm:$0xff]
    %v1817 = vld [vmem:[#allocation8 + $0x3e8] sm:$0xff]
    %v1818 = vld [vmem:[#allocation8 + $0x3f0] sm:$0xff]
    %v1819 = vld [vmem:[#allocation8 + $0x3f8] sm:$0xff]
    %v1820 = vld [vmem:[#allocation8 + $0x400] sm:$0xff]
    %v1821 = vld [vmem:[#allocation8 + $0x408] sm:$0xff]
    %v1822 = vld [vmem:[#allocation8 + $0x410] sm:$0xff]
    %v1823 = vld [vmem:[#allocation8 + $0x418] sm:$0xff]
    %v1824 = vld [vmem:[#allocation8 + $0x420] sm:$0xff]
    %v1825 = vld [vmem:[#allocation8 + $0x428] sm:$0xff]
    %v1826 = vld [vmem:[#allocation8 + $0x430] sm:$0xff]
    %v1827 = vld [vmem:[#allocation8 + $0x438] sm:$0xff]
    %v1828 = vld [vmem:[#allocation8 + $0x440] sm:$0xff]
    %v1829 = vld [vmem:[#allocation8 + $0x448] sm:$0xff]
    %v1830 = vld [vmem:[#allocation8 + $0x450] sm:$0xff]
    %v1831 = vld [vmem:[#allocation8 + $0x458] sm:$0xff]
    %v1832 = vld [vmem:[#allocation8 + $0x460] sm:$0xff]
    %v1833 = vld [vmem:[#allocation8 + $0x468] sm:$0xff]
    %v1834 = vld [vmem:[#allocation8 + $0x470] sm:$0xff]
    %v1835 = vld [vmem:[#allocation8 + $0x478] sm:$0xff]
    %1836 = vmatprep.subr.mxu0 0.0
    %1837 = vmatpush1.msra.mxu0 %v1692
    %1838 = vmatprep.subr.mxu0 0.0
    %1839 = vmatpush1.msra.mxu0 %v1693
    %1840 = vmatprep.subr.mxu0 0.0
    %1841 = vmatpush1.msra.mxu0 %v1694
    %1842 = vmatprep.subr.mxu0 0.0
    %1843 = vmatpush1.msra.mxu0 %v1695
    %1844 = vmatprep.subr.mxu0 0.0
    %1845 = vmatpush1.msra.mxu0 %v1696
    %1846 = vmatprep.subr.mxu0 0.0
    %1847 = vmatpush1.msra.mxu0 %v1697
    %1848 = vmatprep.subr.mxu0 0.0
    %1849 = vmatpush1.msra.mxu0 %v1698
    %1850 = vmatprep.subr.mxu0 0.0
    %1851 = vmatpush1.msra.mxu0 %v1699
    %1852 = vmatprep.subr.mxu0 0.0
    %1853 = vmatpush1.msra.mxu0 %v1700
    %1854 = vmatprep.subr.mxu0 0.0
    %1855 = vmatpush1.msra.mxu0 %v1701
    %1856 = vmatprep.subr.mxu0 0.0
    %1857 = vmatpush1.msra.mxu0 %v1702
    %1858 = vmatprep.subr.mxu0 0.0
    %1859 = vmatpush1.msra.mxu0 %v1703
    %1860 = vmatprep.subr.mxu0 0.0
    %1861 = vmatpush1.msra.mxu0 %v1704
    %1862 = vmatprep.subr.mxu0 0.0
    %1863 = vmatpush1.msra.mxu0 %v1705
    %1864 = vmatprep.subr.mxu0 0.0
    %1865 = vmatpush1.msra.mxu0 %v1706
    %1866 = vmatprep.subr.mxu0 0.0
    %1867 = vmatpush1.msra.mxu0 %v1707
    %1868 = vmatprep.subr.mxu0 0.0
    %1869 = vmatpush1.msra.mxu0 %v1708
    %1870 = vmatprep.subr.mxu0 0.0
    %1871 = vmatpush1.msra.mxu0 %v1709
    %1872 = vmatprep.subr.mxu0 0.0
    %1873 = vmatpush1.msra.mxu0 %v1710
    %1874 = vmatprep.subr.mxu0 0.0
    %1875 = vmatpush1.msra.mxu0 %v1711
    %1876 = vmatprep.subr.mxu0 0.0
    %1877 = vmatpush1.msra.mxu0 %v1712
    %1878 = vmatprep.subr.mxu0 0.0
    %1879 = vmatpush1.msra.mxu0 %v1713
    %1880 = vmatprep.subr.mxu0 0.0
    %1881 = vmatpush1.msra.mxu0 %v1714
    %1882 = vmatprep.subr.mxu0 0.0
    %1883 = vmatpush1.msra.mxu0 %v1715
    %1884 = vmatprep.subr.mxu0 0.0
    %1885 = vmatpush1.msra.mxu0 %v1716
    %1886 = vmatprep.subr.mxu0 0.0
    %1887 = vmatpush1.msra.mxu0 %v1717
    %1888 = vmatprep.subr.mxu0 0.0
    %1889 = vmatpush1.msra.mxu0 %v1718
    %1890 = vmatprep.subr.mxu0 0.0
    %1891 = vmatpush1.msra.mxu0 %v1719
    %1892 = vmatprep.subr.mxu0 0.0
    %1893 = vmatpush1.msra.mxu0 %v1720
    %1894 = vmatprep.subr.mxu0 0.0
    %1895 = vmatpush1.msra.mxu0 %v1721
    %1896 = vmatprep.subr.mxu0 0.0
    %1897 = vmatpush1.msra.mxu0 %v1722
    %1898 = vmatprep.subr.mxu0 0.0
    %1899 = vmatpush1.msra.mxu0 %v1723
    %1900 = vmatprep.mubr.f32.mxu0 %v1179
    %1901 = vmatmul.mubr.f32.gmra.mrb[0].mxu0 %v1115
    %v1902 = vpop.f32.mrb[0].mxu0
    %v1903 = vadd.f32 0.0, %v1902
    %v1904 = vpop.f32.mrb[0].mxu0
    %1905 = vmatprep.mubr.f32.mxu0 %v1180
    %1906 = vmatmul.mubr.f32.gmra.mrb[0].mxu0 %v1116
    %v1907 = vpop.f32.mrb[0].mxu0
    %v1908 = vadd.f32 0.0, %v1907
    %v1909 = vpop.f32.mrb[0].mxu0
    %1910 = vmatprep.mubr.f32.mxu0 %v1181
    %1911 = vmatmul.mubr.f32.gmra.mrb[0].mxu0 %v1117
    %v1912 = vpop.f32.mrb[0].mxu0
    %v1913 = vadd.f32 0.0, %v1912
    %v1914 = vpop.f32.mrb[0].mxu0
    %1915 = vmatprep.mubr.f32.mxu0 %v1182
    %1916 = vmatmul.mubr.f32.gmra.mrb[0].mxu0 %v1118
    %v1917 = vpop.f32.mrb[0].mxu0
    %v1918 = vadd.f32 0.0, %v1917
    %v1919 = vpop.f32.mrb[0].mxu0
    %1920 = vmatprep.mubr.f32.mxu0 %v1183
    %1921 = vmatmul.mubr.f32.gmra.mrb[0].mxu0 %v1119
    %v1922 = vpop.f32.mrb[0].mxu0
    %v1923 = vadd.f32 0.0, %v1922
    %v1924 = vpop.f32.mrb[0].mxu0
    %1925 = vmatprep.mubr.f32.mxu0 %v1184
    %1926 = vmatmul.mubr.f32.gmra.mrb[0].mxu0 %v1120
    %v1927 = vpop.f32.mrb[0].mxu0
    %v1928 = vadd.f32 0.0, %v1927
    %v1929 = vpop.f32.mrb[0].mxu0
    %1930 = vmatprep.mubr.f32.mxu0 %v1185
    %1931 = vmatmul.mubr.f32.gmra.mrb[0].mxu0 %v1121
    %v1932 = vpop.f32.mrb[0].mxu0
    %v1933 = vadd.f32 0.0, %v1932
    %v1934 = vpop.f32.mrb[0].mxu0
    %1935 = vmatprep.mubr.f32.mxu0 %v1186
    %1936 = vmatmul.mubr.f32.gmra.mrb[0].mxu0 %v1122
    %v1937 = vpop.f32.mrb[0].mxu0
    %v1938 = vadd.f32 0.0, %v1937
    %v1939 = vpop.f32.mrb[0].mxu0
    %1940 = vmatprep.mubr.f32.mxu0 %v1187
    %1941 = vmatmul.mubr.f32.gmra.mrb[0].mxu0 %v1123
    %v1942 = vpop.f32.mrb[0].mxu0
    %v1943 = vadd.f32 0.0, %v1942
    %v1944 = vpop.f32.mrb[0].mxu0
    %1945 = vmatprep.mubr.f32.mxu0 %v1188
    %1946 = vmatmul.mubr.f32.gmra.mrb[0].mxu0 %v1124
    %v1947 = vpop.f32.mrb[0].mxu0
    %v1948 = vadd.f32 0.0, %v1947
    %v1949 = vpop.f32.mrb[0].mxu0
    %1950 = vmatprep.mubr.f32.mxu0 %v1189
    %1951 = vmatmul.mubr.f32.gmra.mrb[0].mxu0 %v1125
    %v1952 = vpop.f32.mrb[0].mxu0
    %v1953 = vadd.f32 0.0, %v1952
    %v1954 = vpop.f32.mrb[0].mxu0
    %1955 = vmatprep.mubr.f32.mxu0 %v1190
    %1956 = vmatmul.mubr.f32.gmra.mrb[0].mxu0 %v1126
    %v1957 = vpop.f32.mrb[0].mxu0
    %v1958 = vadd.f32 0.0, %v1957
    %v1959 = vpop.f32.mrb[0].mxu0
    %1960 = vmatprep.mubr.f32.mxu0 %v1191
    %1961 = vmatmul.mubr.f32.gmra.mrb[0].mxu0 %v1127
    %v1962 = vpop.f32.mrb[0].mxu0
    %v1963 = vadd.f32 0.0, %v1962
    %v1964 = vpop.f32.mrb[0].mxu0
    %1965 = vmatprep.mubr.f32.mxu0 %v1192
    %1966 = vmatmul.mubr.f32.gmra.mrb[0].mxu0 %v1128
    %v1967 = vpop.f32.mrb[0].mxu0
    %v1968 = vadd.f32 0.0, %v1967
    %v1969 = vpop.f32.mrb[0].mxu0
    %1970 = vmatprep.mubr.f32.mxu0 %v1193
    %1971 = vmatmul.mubr.f32.gmra.mrb[0].mxu0 %v1129
    %v1972 = vpop.f32.mrb[0].mxu0
    %v1973 = vadd.f32 0.0, %v1972
    %v1974 = vpop.f32.mrb[0].mxu0
    %1975 = vmatprep.mubr.f32.mxu0 %v1194
    %1976 = vmatmul.mubr.f32.gmra.mrb[0].mxu0 %v1130
    %v1977 = vpop.f32.mrb[0].mxu0
    %v1978 = vadd.f32 0.0, %v1977
    %v1979 = vpop.f32.mrb[0].mxu0
    %1980 = vmatprep.mubr.f32.mxu0 %v1195
    %1981 = vmatmul.mubr.f32.gmra.mrb[0].mxu0 %v1131
    %v1982 = vpop.f32.mrb[0].mxu0
    %v1983 = vadd.f32 0.0, %v1982
    %v1984 = vpop.f32.mrb[0].mxu0
    %1985 = vmatprep.mubr.f32.mxu0 %v1196
    %1986 = vmatmul.mubr.f32.gmra.mrb[0].mxu0 %v1132
    %v1987 = vpop.f32.mrb[0].mxu0
    %v1988 = vadd.f32 0.0, %v1987
    %v1989 = vpop.f32.mrb[0].mxu0
    %1990 = vmatprep.mubr.f32.mxu0 %v1197
    %1991 = vmatmul.mubr.f32.gmra.mrb[0].mxu0 %v1133
    %v1992 = vpop.f32.mrb[0].mxu0
    %v1993 = vadd.f32 0.0, %v1992
    %v1994 = vpop.f32.mrb[0].mxu0
    %1995 = vmatprep.mubr.f32.mxu0 %v1198
    %1996 = vmatmul.mubr.f32.gmra.mrb[0].mxu0 %v1134
    %v1997 = vpop.f32.mrb[0].mxu0
    %v1998 = vadd.f32 0.0, %v1997
    %v1999 = vpop.f32.mrb[0].mxu0
    %2000 = vmatprep.mubr.f32.mxu0 %v1199
    %2001 = vmatmul.mubr.f32.gmra.mrb[0].mxu0 %v1135
    %v2002 = vpop.f32.mrb[0].mxu0
    %v2003 = vadd.f32 0.0, %v2002
    %v2004 = vpop.f32.mrb[0].mxu0
    %2005 = vmatprep.mubr.f32.mxu0 %v1200
    %2006 = vmatmul.mubr.f32.gmra.mrb[0].mxu0 %v1136
    %v2007 = vpop.f32.mrb[0].mxu0
    %v2008 = vadd.f32 0.0, %v2007
    %v2009 = vpop.f32.mrb[0].mxu0
    %2010 = vmatprep.mubr.f32.mxu0 %v1201
    %2011 = vmatmul.mubr.f32.gmra.mrb[0].mxu0 %v1137
    %v2012 = vpop.f32.mrb[0].mxu0
    %v2013 = vadd.f32 0.0, %v2012
    %v2014 = vpop.f32.mrb[0].mxu0
    %2015 = vmatprep.mubr.f32.mxu0 %v1202
    %2016 = vmatmul.mubr.f32.gmra.mrb[0].mxu0 %v1138
    %v2017 = vpop.f32.mrb[0].mxu0
    %v2018 = vadd.f32 0.0, %v2017
    %v2019 = vpop.f32.mrb[0].mxu0
    %2020 = vmatprep.mubr.f32.mxu0 %v1203
    %2021 = vmatmul.mubr.f32.gmra.mrb[0].mxu0 %v1139
    %v2022 = vpop.f32.mrb[0].mxu0
    %v2023 = vadd.f32 0.0, %v2022
    %v2024 = vpop.f32.mrb[0].mxu0
    %2025 = vmatprep.mubr.f32.mxu0 %v1204
    %2026 = vmatmul.mubr.f32.gmra.mrb[0].mxu0 %v1140
    %v2027 = vpop.f32.mrb[0].mxu0
    %v2028 = vadd.f32 0.0, %v2027
    %v2029 = vpop.f32.mrb[0].mxu0
    %2030 = vmatprep.mubr.f32.mxu0 %v1205
    %2031 = vmatmul.mubr.f32.gmra.mrb[0].mxu0 %v1141
    %v2032 = vpop.f32.mrb[0].mxu0
    %v2033 = vadd.f32 0.0, %v2032
    %v2034 = vpop.f32.mrb[0].mxu0
    %2035 = vmatprep.mubr.f32.mxu0 %v1206
    %2036 = vmatmul.mubr.f32.gmra.mrb[0].mxu0 %v1142
    %v2037 = vpop.f32.mrb[0].mxu0
    %v2038 = vadd.f32 0.0, %v2037
    %v2039 = vpop.f32.mrb[0].mxu0
    %2040 = vmatprep.mubr.f32.mxu0 %v1207
    %2041 = vmatmul.mubr.f32.gmra.mrb[0].mxu0 %v1143
    %v2042 = vpop.f32.mrb[0].mxu0
    %v2043 = vadd.f32 0.0, %v2042
    %v2044 = vpop.f32.mrb[0].mxu0
    %2045 = vmatprep.mubr.f32.mxu0 %v1208
    %2046 = vmatmul.mubr.f32.gmra.mrb[0].mxu0 %v1144
    %v2047 = vpop.f32.mrb[0].mxu0
    %v2048 = vadd.f32 0.0, %v2047
    %v2049 = vpop.f32.mrb[0].mxu0
    %2050 = vmatprep.mubr.f32.mxu0 %v1209
    %2051 = vmatmul.mubr.f32.gmra.mrb[0].mxu0 %v1145
    %v2052 = vpop.f32.mrb[0].mxu0
    %v2053 = vadd.f32 0.0, %v2052
    %v2054 = vpop.f32.mrb[0].mxu0
    %2055 = vmatprep.mubr.f32.mxu0 %v1210
    %2056 = vmatmul.mubr.f32.gmra.mrb[0].mxu0 %v1146
    %v2057 = vpop.f32.mrb[0].mxu0
    %v2058 = vadd.f32 0.0, %v2057
    %v2059 = vpop.f32.mrb[0].mxu0
    %2060 = vmatprep.mubr.f32.mxu0 %v1211
    %2061 = vmatmul.mubr.f32.gmra.mrb[0].mxu0 %v1147
    %v2062 = vpop.f32.mrb[0].mxu0
    %v2063 = vadd.f32 0.0, %v2062
    %v2064 = vpop.f32.mrb[0].mxu0
    %2065 = vmatprep.mubr.f32.mxu0 %v1212
    %2066 = vmatmul.mubr.f32.gmra.mrb[0].mxu0 %v1148
    %v2067 = vpop.f32.mrb[0].mxu0
    %v2068 = vadd.f32 0.0, %v2067
    %v2069 = vpop.f32.mrb[0].mxu0
    %2070 = vmatprep.mubr.f32.mxu0 %v1213
    %2071 = vmatmul.mubr.f32.gmra.mrb[0].mxu0 %v1149
    %v2072 = vpop.f32.mrb[0].mxu0
    %v2073 = vadd.f32 0.0, %v2072
    %v2074 = vpop.f32.mrb[0].mxu0
    %2075 = vmatprep.mubr.f32.mxu0 %v1214
    %2076 = vmatmul.mubr.f32.gmra.mrb[0].mxu0 %v1150
    %v2077 = vpop.f32.mrb[0].mxu0
    %v2078 = vadd.f32 0.0, %v2077
    %v2079 = vpop.f32.mrb[0].mxu0
    %2080 = vmatprep.mubr.f32.mxu0 %v1215
    %2081 = vmatmul.mubr.f32.gmra.mrb[0].mxu0 %v1151
    %v2082 = vpop.f32.mrb[0].mxu0
    %v2083 = vadd.f32 0.0, %v2082
    %v2084 = vpop.f32.mrb[0].mxu0
    %2085 = vmatprep.mubr.f32.mxu0 %v1216
    %2086 = vmatmul.mubr.f32.gmra.mrb[0].mxu0 %v1152
    %v2087 = vpop.f32.mrb[0].mxu0
    %v2088 = vadd.f32 0.0, %v2087
    %v2089 = vpop.f32.mrb[0].mxu0
    %2090 = vmatprep.mubr.f32.mxu0 %v1217
    %2091 = vmatmul.mubr.f32.gmra.mrb[0].mxu0 %v1153
    %v2092 = vpop.f32.mrb[0].mxu0
    %v2093 = vadd.f32 0.0, %v2092
    %v2094 = vpop.f32.mrb[0].mxu0
    %2095 = vmatprep.mubr.f32.mxu0 %v1218
    %2096 = vmatmul.mubr.f32.gmra.mrb[0].mxu0 %v1154
    %v2097 = vpop.f32.mrb[0].mxu0
    %v2098 = vadd.f32 0.0, %v2097
    %v2099 = vpop.f32.mrb[0].mxu0
    %2100 = vmatprep.mubr.f32.mxu0 %v1219
    %2101 = vmatmul.mubr.f32.gmra.mrb[0].mxu0 %v1155
    %v2102 = vpop.f32.mrb[0].mxu0
    %v2103 = vadd.f32 0.0, %v2102
    %v2104 = vpop.f32.mrb[0].mxu0
    %2105 = vmatprep.mubr.f32.mxu0 %v1220
    %2106 = vmatmul.mubr.f32.gmra.mrb[0].mxu0 %v1156
    %v2107 = vpop.f32.mrb[0].mxu0
    %v2108 = vadd.f32 0.0, %v2107
    %v2109 = vpop.f32.mrb[0].mxu0
    %2110 = vmatprep.mubr.f32.mxu0 %v1221
    %2111 = vmatmul.mubr.f32.gmra.mrb[0].mxu0 %v1157
    %v2112 = vpop.f32.mrb[0].mxu0
    %v2113 = vadd.f32 0.0, %v2112
    %v2114 = vpop.f32.mrb[0].mxu0
    %2115 = vmatprep.mubr.f32.mxu0 %v1222
    %2116 = vmatmul.mubr.f32.gmra.mrb[0].mxu0 %v1158
    %v2117 = vpop.f32.mrb[0].mxu0
    %v2118 = vadd.f32 0.0, %v2117
    %v2119 = vpop.f32.mrb[0].mxu0
    %2120 = vmatprep.mubr.f32.mxu0 %v1223
    %2121 = vmatmul.mubr.f32.gmra.mrb[0].mxu0 %v1159
    %v2122 = vpop.f32.mrb[0].mxu0
    %v2123 = vadd.f32 0.0, %v2122
    %v2124 = vpop.f32.mrb[0].mxu0
    %2125 = vmatprep.mubr.f32.mxu0 %v1224
    %2126 = vmatmul.mubr.f32.gmra.mrb[0].mxu0 %v1160
    %v2127 = vpop.f32.mrb[0].mxu0
    %v2128 = vadd.f32 0.0, %v2127
    %v2129 = vpop.f32.mrb[0].mxu0
    %2130 = vmatprep.mubr.f32.mxu0 %v1225
    %2131 = vmatmul.mubr.f32.gmra.mrb[0].mxu0 %v1161
    %v2132 = vpop.f32.mrb[0].mxu0
    %v2133 = vadd.f32 0.0, %v2132
    %v2134 = vpop.f32.mrb[0].mxu0
    %2135 = vmatprep.mubr.f32.mxu0 %v1226
    %2136 = vmatmul.mubr.f32.gmra.mrb[0].mxu0 %v1162
    %v2137 = vpop.f32.mrb[0].mxu0
    %v2138 = vadd.f32 0.0, %v2137
    %v2139 = vpop.f32.mrb[0].mxu0
    %2140 = vmatprep.mubr.f32.mxu0 %v1227
    %2141 = vmatmul.mubr.f32.gmra.mrb[0].mxu0 %v1163
    %v2142 = vpop.f32.mrb[0].mxu0
    %v2143 = vadd.f32 0.0, %v2142
    %v2144 = vpop.f32.mrb[0].mxu0
    %2145 = vmatprep.mubr.f32.mxu0 %v1228
    %2146 = vmatmul.mubr.f32.gmra.mrb[0].mxu0 %v1164
    %v2147 = vpop.f32.mrb[0].mxu0
    %v2148 = vadd.f32 0.0, %v2147
    %v2149 = vpop.f32.mrb[0].mxu0
    %2150 = vmatprep.mubr.f32.mxu0 %v1229
    %2151 = vmatmul.mubr.f32.gmra.mrb[0].mxu0 %v1165
    %v2152 = vpop.f32.mrb[0].mxu0
    %v2153 = vadd.f32 0.0, %v2152
    %v2154 = vpop.f32.mrb[0].mxu0
    %2155 = vmatprep.mubr.f32.mxu0 %v1230
    %2156 = vmatmul.mubr.f32.gmra.mrb[0].mxu0 %v1166
    %v2157 = vpop.f32.mrb[0].mxu0
    %v2158 = vadd.f32 0.0, %v2157
    %v2159 = vpop.f32.mrb[0].mxu0
    %2160 = vmatprep.mubr.f32.mxu0 %v1231
    %2161 = vmatmul.mubr.f32.gmra.mrb[0].mxu0 %v1167
    %v2162 = vpop.f32.mrb[0].mxu0
    %v2163 = vadd.f32 0.0, %v2162
    %v2164 = vpop.f32.mrb[0].mxu0
    %2165 = vmatprep.mubr.f32.mxu0 %v1232
    %2166 = vmatmul.mubr.f32.gmra.mrb[0].mxu0 %v1168
    %v2167 = vpop.f32.mrb[0].mxu0
    %v2168 = vadd.f32 0.0, %v2167
    %v2169 = vpop.f32.mrb[0].mxu0
    %2170 = vmatprep.mubr.f32.mxu0 %v1233
    %2171 = vmatmul.mubr.f32.gmra.mrb[0].mxu0 %v1169
    %v2172 = vpop.f32.mrb[0].mxu0
    %v2173 = vadd.f32 0.0, %v2172
    %v2174 = vpop.f32.mrb[0].mxu0
    %2175 = vmatprep.mubr.f32.mxu0 %v1234
    %2176 = vmatmul.mubr.f32.gmra.mrb[0].mxu0 %v1170
    %v2177 = vpop.f32.mrb[0].mxu0
    %v2178 = vadd.f32 0.0, %v2177
    %v2179 = vpop.f32.mrb[0].mxu0
    %2180 = vmatprep.mubr.f32.mxu0 %v1235
    %2181 = vmatmul.mubr.f32.gmra.mrb[0].mxu0 %v1171
    %v2182 = vpop.f32.mrb[0].mxu0
    %v2183 = vadd.f32 0.0, %v2182
    %v2184 = vpop.f32.mrb[0].mxu0
    %2185 = vmatprep.mubr.f32.mxu0 %v1236
    %2186 = vmatmul.mubr.f32.gmra.mrb[0].mxu0 %v1172
    %v2187 = vpop.f32.mrb[0].mxu0
    %v2188 = vadd.f32 0.0, %v2187
    %v2189 = vpop.f32.mrb[0].mxu0
    %2190 = vmatprep.mubr.f32.mxu0 %v1237
    %2191 = vmatmul.mubr.f32.gmra.mrb[0].mxu0 %v1173
    %v2192 = vpop.f32.mrb[0].mxu0
    %v2193 = vadd.f32 0.0, %v2192
    %v2194 = vpop.f32.mrb[0].mxu0
    %2195 = vmatprep.mubr.f32.mxu0 %v1238
    %2196 = vmatmul.mubr.f32.gmra.mrb[0].mxu0 %v1174
    %v2197 = vpop.f32.mrb[0].mxu0
    %v2198 = vadd.f32 0.0, %v2197
    %v2199 = vpop.f32.mrb[0].mxu0
    %2200 = vmatprep.mubr.f32.mxu0 %v1239
    %2201 = vmatmul.mubr.f32.gmra.mrb[0].mxu0 %v1175
    %v2202 = vpop.f32.mrb[0].mxu0
    %v2203 = vadd.f32 0.0, %v2202
    %v2204 = vpop.f32.mrb[0].mxu0
    %2205 = vmatprep.mubr.f32.mxu0 %v1240
    %2206 = vmatmul.mubr.f32.gmra.mrb[0].mxu0 %v1176
    %v2207 = vpop.f32.mrb[0].mxu0
    %v2208 = vadd.f32 0.0, %v2207
    %v2209 = vpop.f32.mrb[0].mxu0
    %2210 = vmatprep.mubr.f32.mxu0 %v1241
    %2211 = vmatmul.mubr.f32.gmra.mrb[0].mxu0 %v1177
    %v2212 = vpop.f32.mrb[0].mxu0
    %v2213 = vadd.f32 0.0, %v2212
    %v2214 = vpop.f32.mrb[0].mxu0
    %2215 = vmatprep.mubr.f32.mxu0 %v1242
    %2216 = vmatmul.mubr.f32.gmra.mrb[0].mxu0 %v1178
    %v2217 = vpop.f32.mrb[0].mxu0
    %v2218 = vadd.f32 0.0, %v2217
    %v2219 = vpop.f32.mrb[0].mxu0
    %2220 = vdwg.mxu0
    %2221 = vmatprep.subr.mxu0 0.0
    %2222 = vmatpush1.msra.mxu0 %v1724
    %2223 = vmatprep.subr.mxu0 0.0
    %2224 = vmatpush1.msra.mxu0 %v1725
    %2225 = vmatprep.subr.mxu0 0.0
    %2226 = vmatpush1.msra.mxu0 %v1726
    %2227 = vmatprep.subr.mxu0 0.0
    %2228 = vmatpush1.msra.mxu0 %v1727
    %2229 = vmatprep.subr.mxu0 0.0
    %2230 = vmatpush1.msra.mxu0 %v1728
    %2231 = vmatprep.subr.mxu0 0.0
    %2232 = vmatpush1.msra.mxu0 %v1729
    %2233 = vmatprep.subr.mxu0 0.0
    %2234 = vmatpush1.msra.mxu0 %v1730
    %2235 = vmatprep.subr.mxu0 0.0
    %2236 = vmatpush1.msra.mxu0 %v1731
    %2237 = vmatprep.subr.mxu0 0.0
    %2238 = vmatpush1.msra.mxu0 %v1732
    %2239 = vmatprep.subr.mxu0 0.0
    %2240 = vmatpush1.msra.mxu0 %v1733
    %2241 = vmatprep.subr.mxu0 0.0
    %2242 = vmatpush1.msra.mxu0 %v1734
    %2243 = vmatprep.subr.mxu0 0.0
    %2244 = vmatpush1.msra.mxu0 %v1735
    %2245 = vmatprep.subr.mxu0 0.0
    %2246 = vmatpush1.msra.mxu0 %v1736
    %2247 = vmatprep.subr.mxu0 0.0
    %2248 = vmatpush1.msra.mxu0 %v1737
    %2249 = vmatprep.subr.mxu0 0.0
    %2250 = vmatpush1.msra.mxu0 %v1738
    %2251 = vmatprep.subr.mxu0 0.0
    %2252 = vmatpush1.msra.mxu0 %v1739
    %2253 = vmatprep.subr.mxu0 0.0
    %2254 = vmatpush1.msra.mxu0 %v1740
    %2255 = vmatprep.subr.mxu0 0.0
    %2256 = vmatpush1.msra.mxu0 %v1741
    %2257 = vmatprep.subr.mxu0 0.0
    %2258 = vmatpush1.msra.mxu0 %v1742
    %2259 = vmatprep.subr.mxu0 0.0
    %2260 = vmatpush1.msra.mxu0 %v1743
    %2261 = vmatprep.subr.mxu0 0.0
    %2262 = vmatpush1.msra.mxu0 %v1744
    %2263 = vmatprep.subr.mxu0 0.0
    %2264 = vmatpush1.msra.mxu0 %v1745
    %2265 = vmatprep.subr.mxu0 0.0
    %2266 = vmatpush1.msra.mxu0 %v1746
    %2267 = vmatprep.subr.mxu0 0.0
    %2268 = vmatpush1.msra.mxu0 %v1747
    %2269 = vmatprep.subr.mxu0 0.0
    %2270 = vmatpush1.msra.mxu0 %v1748
    %2271 = vmatprep.subr.mxu0 0.0
    %2272 = vmatpush1.msra.mxu0 %v1749
    %2273 = vmatprep.subr.mxu0 0.0
    %2274 = vmatpush1.msra.mxu0 %v1750
    %2275 = vmatprep.subr.mxu0 0.0
    %2276 = vmatpush1.msra.mxu0 %v1751
    %2277 = vmatprep.subr.mxu0 0.0
    %2278 = vmatpush1.msra.mxu0 %v1752
    %2279 = vmatprep.subr.mxu0 0.0
    %2280 = vmatpush1.msra.mxu0 %v1753
    %2281 = vmatprep.subr.mxu0 0.0
    %2282 = vmatpush1.msra.mxu0 %v1754
    %2283 = vmatprep.subr.mxu0 0.0
    %2284 = vmatpush1.msra.mxu0 %v1755
    %2285 = vmatprep.mubr.f32.mxu0 %v1307
    %2286 = vmatmul.mubr.f32.gmra.mrb[0].mxu0 %v1243
    %v2287 = vpop.f32.mrb[0].mxu0
    %v2288 = vadd.f32 %v1903, %v2287
    %v2289 = vpop.f32.mrb[0].mxu0
    %2290 = vmatprep.mubr.f32.mxu0 %v1308
    %2291 = vmatmul.mubr.f32.gmra.mrb[0].mxu0 %v1244
    %v2292 = vpop.f32.mrb[0].mxu0
    %v2293 = vadd.f32 %v1908, %v2292
    %v2294 = vpop.f32.mrb[0].mxu0
    %2295 = vmatprep.mubr.f32.mxu0 %v1309
    %2296 = vmatmul.mubr.f32.gmra.mrb[0].mxu0 %v1245
    %v2297 = vpop.f32.mrb[0].mxu0
    %v2298 = vadd.f32 %v1913, %v2297
    %v2299 = vpop.f32.mrb[0].mxu0
    %2300 = vmatprep.mubr.f32.mxu0 %v1310
    %2301 = vmatmul.mubr.f32.gmra.mrb[0].mxu0 %v1246
    %v2302 = vpop.f32.mrb[0].mxu0
    %v2303 = vadd.f32 %v1918, %v2302
    %v2304 = vpop.f32.mrb[0].mxu0
    %2305 = vmatprep.mubr.f32.mxu0 %v1311
    %2306 = vmatmul.mubr.f32.gmra.mrb[0].mxu0 %v1247
    %v2307 = vpop.f32.mrb[0].mxu0
    %v2308 = vadd.f32 %v1923, %v2307
    %v2309 = vpop.f32.mrb[0].mxu0
    %2310 = vmatprep.mubr.f32.mxu0 %v1312
    %2311 = vmatmul.mubr.f32.gmra.mrb[0].mxu0 %v1248
    %v2312 = vpop.f32.mrb[0].mxu0
    %v2313 = vadd.f32 %v1928, %v2312
    %v2314 = vpop.f32.mrb[0].mxu0
    %2315 = vmatprep.mubr.f32.mxu0 %v1313
    %2316 = vmatmul.mubr.f32.gmra.mrb[0].mxu0 %v1249
    %v2317 = vpop.f32.mrb[0].mxu0
    %v2318 = vadd.f32 %v1933, %v2317
    %v2319 = vpop.f32.mrb[0].mxu0
    %2320 = vmatprep.mubr.f32.mxu0 %v1314
    %2321 = vmatmul.mubr.f32.gmra.mrb[0].mxu0 %v1250
    %v2322 = vpop.f32.mrb[0].mxu0
    %v2323 = vadd.f32 %v1938, %v2322
    %v2324 = vpop.f32.mrb[0].mxu0
    %2325 = vmatprep.mubr.f32.mxu0 %v1315
    %2326 = vmatmul.mubr.f32.gmra.mrb[0].mxu0 %v1251
    %v2327 = vpop.f32.mrb[0].mxu0
    %v2328 = vadd.f32 %v1943, %v2327
    %v2329 = vpop.f32.mrb[0].mxu0
    %2330 = vmatprep.mubr.f32.mxu0 %v1316
    %2331 = vmatmul.mubr.f32.gmra.mrb[0].mxu0 %v1252
    %v2332 = vpop.f32.mrb[0].mxu0
    %v2333 = vadd.f32 %v1948, %v2332
    %v2334 = vpop.f32.mrb[0].mxu0
    %2335 = vmatprep.mubr.f32.mxu0 %v1317
    %2336 = vmatmul.mubr.f32.gmra.mrb[0].mxu0 %v1253
    %v2337 = vpop.f32.mrb[0].mxu0
    %v2338 = vadd.f32 %v1953, %v2337
    %v2339 = vpop.f32.mrb[0].mxu0
    %2340 = vmatprep.mubr.f32.mxu0 %v1318
    %2341 = vmatmul.mubr.f32.gmra.mrb[0].mxu0 %v1254
    %v2342 = vpop.f32.mrb[0].mxu0
    %v2343 = vadd.f32 %v1958, %v2342
    %v2344 = vpop.f32.mrb[0].mxu0
    %2345 = vmatprep.mubr.f32.mxu0 %v1319
    %2346 = vmatmul.mubr.f32.gmra.mrb[0].mxu0 %v1255
    %v2347 = vpop.f32.mrb[0].mxu0
    %v2348 = vadd.f32 %v1963, %v2347
    %v2349 = vpop.f32.mrb[0].mxu0
    %2350 = vmatprep.mubr.f32.mxu0 %v1320
    %2351 = vmatmul.mubr.f32.gmra.mrb[0].mxu0 %v1256
    %v2352 = vpop.f32.mrb[0].mxu0
    %v2353 = vadd.f32 %v1968, %v2352
    %v2354 = vpop.f32.mrb[0].mxu0
    %2355 = vmatprep.mubr.f32.mxu0 %v1321
    %2356 = vmatmul.mubr.f32.gmra.mrb[0].mxu0 %v1257
    %v2357 = vpop.f32.mrb[0].mxu0
    %v2358 = vadd.f32 %v1973, %v2357
    %v2359 = vpop.f32.mrb[0].mxu0
    %2360 = vmatprep.mubr.f32.mxu0 %v1322
    %2361 = vmatmul.mubr.f32.gmra.mrb[0].mxu0 %v1258
    %v2362 = vpop.f32.mrb[0].mxu0
    %v2363 = vadd.f32 %v1978, %v2362
    %v2364 = vpop.f32.mrb[0].mxu0
    %2365 = vmatprep.mubr.f32.mxu0 %v1323
    %2366 = vmatmul.mubr.f32.gmra.mrb[0].mxu0 %v1259
    %v2367 = vpop.f32.mrb[0].mxu0
    %v2368 = vadd.f32 %v1983, %v2367
    %v2369 = vpop.f32.mrb[0].mxu0
    %2370 = vmatprep.mubr.f32.mxu0 %v1324
    %2371 = vmatmul.mubr.f32.gmra.mrb[0].mxu0 %v1260
    %v2372 = vpop.f32.mrb[0].mxu0
    %v2373 = vadd.f32 %v1988, %v2372
    %v2374 = vpop.f32.mrb[0].mxu0
    %2375 = vmatprep.mubr.f32.mxu0 %v1325
    %2376 = vmatmul.mubr.f32.gmra.mrb[0].mxu0 %v1261
    %v2377 = vpop.f32.mrb[0].mxu0
    %v2378 = vadd.f32 %v1993, %v2377
    %v2379 = vpop.f32.mrb[0].mxu0
    %2380 = vmatprep.mubr.f32.mxu0 %v1326
    %2381 = vmatmul.mubr.f32.gmra.mrb[0].mxu0 %v1262
    %v2382 = vpop.f32.mrb[0].mxu0
    %v2383 = vadd.f32 %v1998, %v2382
    %v2384 = vpop.f32.mrb[0].mxu0
    %2385 = vmatprep.mubr.f32.mxu0 %v1327
    %2386 = vmatmul.mubr.f32.gmra.mrb[0].mxu0 %v1263
    %v2387 = vpop.f32.mrb[0].mxu0
    %v2388 = vadd.f32 %v2003, %v2387
    %v2389 = vpop.f32.mrb[0].mxu0
    %2390 = vmatprep.mubr.f32.mxu0 %v1328
    %2391 = vmatmul.mubr.f32.gmra.mrb[0].mxu0 %v1264
    %v2392 = vpop.f32.mrb[0].mxu0
    %v2393 = vadd.f32 %v2008, %v2392
    %v2394 = vpop.f32.mrb[0].mxu0
    %2395 = vmatprep.mubr.f32.mxu0 %v1329
    %2396 = vmatmul.mubr.f32.gmra.mrb[0].mxu0 %v1265
    %v2397 = vpop.f32.mrb[0].mxu0
    %v2398 = vadd.f32 %v2013, %v2397
    %v2399 = vpop.f32.mrb[0].mxu0
    %2400 = vmatprep.mubr.f32.mxu0 %v1330
    %2401 = vmatmul.mubr.f32.gmra.mrb[0].mxu0 %v1266
    %v2402 = vpop.f32.mrb[0].mxu0
    %v2403 = vadd.f32 %v2018, %v2402
    %v2404 = vpop.f32.mrb[0].mxu0
    %2405 = vmatprep.mubr.f32.mxu0 %v1331
    %2406 = vmatmul.mubr.f32.gmra.mrb[0].mxu0 %v1267
    %v2407 = vpop.f32.mrb[0].mxu0
    %v2408 = vadd.f32 %v2023, %v2407
    %v2409 = vpop.f32.mrb[0].mxu0
    %2410 = vmatprep.mubr.f32.mxu0 %v1332
    %2411 = vmatmul.mubr.f32.gmra.mrb[0].mxu0 %v1268
    %v2412 = vpop.f32.mrb[0].mxu0
    %v2413 = vadd.f32 %v2028, %v2412
    %v2414 = vpop.f32.mrb[0].mxu0
    %2415 = vmatprep.mubr.f32.mxu0 %v1333
    %2416 = vmatmul.mubr.f32.gmra.mrb[0].mxu0 %v1269
    %v2417 = vpop.f32.mrb[0].mxu0
    %v2418 = vadd.f32 %v2033, %v2417
    %v2419 = vpop.f32.mrb[0].mxu0
    %2420 = vmatprep.mubr.f32.mxu0 %v1334
    %2421 = vmatmul.mubr.f32.gmra.mrb[0].mxu0 %v1270
    %v2422 = vpop.f32.mrb[0].mxu0
    %v2423 = vadd.f32 %v2038, %v2422
    %v2424 = vpop.f32.mrb[0].mxu0
    %2425 = vmatprep.mubr.f32.mxu0 %v1335
    %2426 = vmatmul.mubr.f32.gmra.mrb[0].mxu0 %v1271
    %v2427 = vpop.f32.mrb[0].mxu0
    %v2428 = vadd.f32 %v2043, %v2427
    %v2429 = vpop.f32.mrb[0].mxu0
    %2430 = vmatprep.mubr.f32.mxu0 %v1336
    %2431 = vmatmul.mubr.f32.gmra.mrb[0].mxu0 %v1272
    %v2432 = vpop.f32.mrb[0].mxu0
    %v2433 = vadd.f32 %v2048, %v2432
    %v2434 = vpop.f32.mrb[0].mxu0
    %2435 = vmatprep.mubr.f32.mxu0 %v1337
    %2436 = vmatmul.mubr.f32.gmra.mrb[0].mxu0 %v1273
    %v2437 = vpop.f32.mrb[0].mxu0
    %v2438 = vadd.f32 %v2053, %v2437
    %v2439 = vpop.f32.mrb[0].mxu0
    %2440 = vmatprep.mubr.f32.mxu0 %v1338
    %2441 = vmatmul.mubr.f32.gmra.mrb[0].mxu0 %v1274
    %v2442 = vpop.f32.mrb[0].mxu0
    %v2443 = vadd.f32 %v2058, %v2442
    %v2444 = vpop.f32.mrb[0].mxu0
    %2445 = vmatprep.mubr.f32.mxu0 %v1339
    %2446 = vmatmul.mubr.f32.gmra.mrb[0].mxu0 %v1275
    %v2447 = vpop.f32.mrb[0].mxu0
    %v2448 = vadd.f32 %v2063, %v2447
    %v2449 = vpop.f32.mrb[0].mxu0
    %2450 = vmatprep.mubr.f32.mxu0 %v1340
    %2451 = vmatmul.mubr.f32.gmra.mrb[0].mxu0 %v1276
    %v2452 = vpop.f32.mrb[0].mxu0
    %v2453 = vadd.f32 %v2068, %v2452
    %v2454 = vpop.f32.mrb[0].mxu0
    %2455 = vmatprep.mubr.f32.mxu0 %v1341
    %2456 = vmatmul.mubr.f32.gmra.mrb[0].mxu0 %v1277
    %v2457 = vpop.f32.mrb[0].mxu0
    %v2458 = vadd.f32 %v2073, %v2457
    %v2459 = vpop.f32.mrb[0].mxu0
    %2460 = vmatprep.mubr.f32.mxu0 %v1342
    %2461 = vmatmul.mubr.f32.gmra.mrb[0].mxu0 %v1278
    %v2462 = vpop.f32.mrb[0].mxu0
    %v2463 = vadd.f32 %v2078, %v2462
    %v2464 = vpop.f32.mrb[0].mxu0
    %2465 = vmatprep.mubr.f32.mxu0 %v1343
    %2466 = vmatmul.mubr.f32.gmra.mrb[0].mxu0 %v1279
    %v2467 = vpop.f32.mrb[0].mxu0
    %v2468 = vadd.f32 %v2083, %v2467
    %v2469 = vpop.f32.mrb[0].mxu0
    %2470 = vmatprep.mubr.f32.mxu0 %v1344
    %2471 = vmatmul.mubr.f32.gmra.mrb[0].mxu0 %v1280
    %v2472 = vpop.f32.mrb[0].mxu0
    %v2473 = vadd.f32 %v2088, %v2472
    %v2474 = vpop.f32.mrb[0].mxu0
    %2475 = vmatprep.mubr.f32.mxu0 %v1345
    %2476 = vmatmul.mubr.f32.gmra.mrb[0].mxu0 %v1281
    %v2477 = vpop.f32.mrb[0].mxu0
    %v2478 = vadd.f32 %v2093, %v2477
    %v2479 = vpop.f32.mrb[0].mxu0
    %2480 = vmatprep.mubr.f32.mxu0 %v1346
    %2481 = vmatmul.mubr.f32.gmra.mrb[0].mxu0 %v1282
    %v2482 = vpop.f32.mrb[0].mxu0
    %v2483 = vadd.f32 %v2098, %v2482
    %v2484 = vpop.f32.mrb[0].mxu0
    %2485 = vmatprep.mubr.f32.mxu0 %v1347
    %2486 = vmatmul.mubr.f32.gmra.mrb[0].mxu0 %v1283
    %v2487 = vpop.f32.mrb[0].mxu0
    %v2488 = vadd.f32 %v2103, %v2487
    %v2489 = vpop.f32.mrb[0].mxu0
    %2490 = vmatprep.mubr.f32.mxu0 %v1348
    %2491 = vmatmul.mubr.f32.gmra.mrb[0].mxu0 %v1284
    %v2492 = vpop.f32.mrb[0].mxu0
    %v2493 = vadd.f32 %v2108, %v2492
    %v2494 = vpop.f32.mrb[0].mxu0
    %2495 = vmatprep.mubr.f32.mxu0 %v1349
    %2496 = vmatmul.mubr.f32.gmra.mrb[0].mxu0 %v1285
    %v2497 = vpop.f32.mrb[0].mxu0
    %v2498 = vadd.f32 %v2113, %v2497
    %v2499 = vpop.f32.mrb[0].mxu0
    %2500 = vmatprep.mubr.f32.mxu0 %v1350
    %2501 = vmatmul.mubr.f32.gmra.mrb[0].mxu0 %v1286
    %v2502 = vpop.f32.mrb[0].mxu0
    %v2503 = vadd.f32 %v2118, %v2502
    %v2504 = vpop.f32.mrb[0].mxu0
    %2505 = vmatprep.mubr.f32.mxu0 %v1351
    %2506 = vmatmul.mubr.f32.gmra.mrb[0].mxu0 %v1287
    %v2507 = vpop.f32.mrb[0].mxu0
    %v2508 = vadd.f32 %v2123, %v2507
    %v2509 = vpop.f32.mrb[0].mxu0
    %2510 = vmatprep.mubr.f32.mxu0 %v1352
    %2511 = vmatmul.mubr.f32.gmra.mrb[0].mxu0 %v1288
    %v2512 = vpop.f32.mrb[0].mxu0
    %v2513 = vadd.f32 %v2128, %v2512
    %v2514 = vpop.f32.mrb[0].mxu0
    %2515 = vmatprep.mubr.f32.mxu0 %v1353
    %2516 = vmatmul.mubr.f32.gmra.mrb[0].mxu0 %v1289
    %v2517 = vpop.f32.mrb[0].mxu0
    %v2518 = vadd.f32 %v2133, %v2517
    %v2519 = vpop.f32.mrb[0].mxu0
    %2520 = vmatprep.mubr.f32.mxu0 %v1354
    %2521 = vmatmul.mubr.f32.gmra.mrb[0].mxu0 %v1290
    %v2522 = vpop.f32.mrb[0].mxu0
    %v2523 = vadd.f32 %v2138, %v2522
    %v2524 = vpop.f32.mrb[0].mxu0
    %2525 = vmatprep.mubr.f32.mxu0 %v1355
    %2526 = vmatmul.mubr.f32.gmra.mrb[0].mxu0 %v1291
    %v2527 = vpop.f32.mrb[0].mxu0
    %v2528 = vadd.f32 %v2143, %v2527
    %v2529 = vpop.f32.mrb[0].mxu0
    %2530 = vmatprep.mubr.f32.mxu0 %v1356
    %2531 = vmatmul.mubr.f32.gmra.mrb[0].mxu0 %v1292
    %v2532 = vpop.f32.mrb[0].mxu0
    %v2533 = vadd.f32 %v2148, %v2532
    %v2534 = vpop.f32.mrb[0].mxu0
    %2535 = vmatprep.mubr.f32.mxu0 %v1357
    %2536 = vmatmul.mubr.f32.gmra.mrb[0].mxu0 %v1293
    %v2537 = vpop.f32.mrb[0].mxu0
    %v2538 = vadd.f32 %v2153, %v2537
    %v2539 = vpop.f32.mrb[0].mxu0
    %2540 = vmatprep.mubr.f32.mxu0 %v1358
    %2541 = vmatmul.mubr.f32.gmra.mrb[0].mxu0 %v1294
    %v2542 = vpop.f32.mrb[0].mxu0
    %v2543 = vadd.f32 %v2158, %v2542
    %v2544 = vpop.f32.mrb[0].mxu0
    %2545 = vmatprep.mubr.f32.mxu0 %v1359
    %2546 = vmatmul.mubr.f32.gmra.mrb[0].mxu0 %v1295
    %v2547 = vpop.f32.mrb[0].mxu0
    %v2548 = vadd.f32 %v2163, %v2547
    %v2549 = vpop.f32.mrb[0].mxu0
    %2550 = vmatprep.mubr.f32.mxu0 %v1360
    %2551 = vmatmul.mubr.f32.gmra.mrb[0].mxu0 %v1296
    %v2552 = vpop.f32.mrb[0].mxu0
    %v2553 = vadd.f32 %v2168, %v2552
    %v2554 = vpop.f32.mrb[0].mxu0
    %2555 = vmatprep.mubr.f32.mxu0 %v1361
    %2556 = vmatmul.mubr.f32.gmra.mrb[0].mxu0 %v1297
    %v2557 = vpop.f32.mrb[0].mxu0
    %v2558 = vadd.f32 %v2173, %v2557
    %v2559 = vpop.f32.mrb[0].mxu0
    %2560 = vmatprep.mubr.f32.mxu0 %v1362
    %2561 = vmatmul.mubr.f32.gmra.mrb[0].mxu0 %v1298
    %v2562 = vpop.f32.mrb[0].mxu0
    %v2563 = vadd.f32 %v2178, %v2562
    %v2564 = vpop.f32.mrb[0].mxu0
    %2565 = vmatprep.mubr.f32.mxu0 %v1363
    %2566 = vmatmul.mubr.f32.gmra.mrb[0].mxu0 %v1299
    %v2567 = vpop.f32.mrb[0].mxu0
    %v2568 = vadd.f32 %v2183, %v2567
    %v2569 = vpop.f32.mrb[0].mxu0
    %2570 = vmatprep.mubr.f32.mxu0 %v1364
    %2571 = vmatmul.mubr.f32.gmra.mrb[0].mxu0 %v1300
    %v2572 = vpop.f32.mrb[0].mxu0
    %v2573 = vadd.f32 %v2188, %v2572
    %v2574 = vpop.f32.mrb[0].mxu0
    %2575 = vmatprep.mubr.f32.mxu0 %v1365
    %2576 = vmatmul.mubr.f32.gmra.mrb[0].mxu0 %v1301
    %v2577 = vpop.f32.mrb[0].mxu0
    %v2578 = vadd.f32 %v2193, %v2577
    %v2579 = vpop.f32.mrb[0].mxu0
    %2580 = vmatprep.mubr.f32.mxu0 %v1366
    %2581 = vmatmul.mubr.f32.gmra.mrb[0].mxu0 %v1302
    %v2582 = vpop.f32.mrb[0].mxu0
    %v2583 = vadd.f32 %v2198, %v2582
    %v2584 = vpop.f32.mrb[0].mxu0
    %2585 = vmatprep.mubr.f32.mxu0 %v1367
    %2586 = vmatmul.mubr.f32.gmra.mrb[0].mxu0 %v1303
    %v2587 = vpop.f32.mrb[0].mxu0
    %v2588 = vadd.f32 %v2203, %v2587
    %v2589 = vpop.f32.mrb[0].mxu0
    %2590 = vmatprep.mubr.f32.mxu0 %v1368
    %2591 = vmatmul.mubr.f32.gmra.mrb[0].mxu0 %v1304
    %v2592 = vpop.f32.mrb[0].mxu0
    %v2593 = vadd.f32 %v2208, %v2592
    %v2594 = vpop.f32.mrb[0].mxu0
    %2595 = vmatprep.mubr.f32.mxu0 %v1369
    %2596 = vmatmul.mubr.f32.gmra.mrb[0].mxu0 %v1305
    %v2597 = vpop.f32.mrb[0].mxu0
    %v2598 = vadd.f32 %v2213, %v2597
    %v2599 = vpop.f32.mrb[0].mxu0
    %2600 = vmatprep.mubr.f32.mxu0 %v1370
    %2601 = vmatmul.mubr.f32.gmra.mrb[0].mxu0 %v1306
    %v2602 = vpop.f32.mrb[0].mxu0
    %v2603 = vadd.f32 %v2218, %v2602
    %v2604 = vpop.f32.mrb[0].mxu0
    %2605 = vdwg.mxu0
    %2606 = vmatprep.subr.mxu0 0.0
    %2607 = vmatpush1.msra.mxu0 %v1756
    %2608 = vmatprep.subr.mxu0 0.0
    %2609 = vmatpush1.msra.mxu0 %v1757
    %2610 = vmatprep.subr.mxu0 0.0
    %2611 = vmatpush1.msra.mxu0 %v1758
    %2612 = vmatprep.subr.mxu0 0.0
    %2613 = vmatpush1.msra.mxu0 %v1759
    %2614 = vmatprep.subr.mxu0 0.0
    %2615 = vmatpush1.msra.mxu0 %v1760
    %2616 = vmatprep.subr.mxu0 0.0
    %2617 = vmatpush1.msra.mxu0 %v1761
    %2618 = vmatprep.subr.mxu0 0.0
    %2619 = vmatpush1.msra.mxu0 %v1762
    %2620 = vmatprep.subr.mxu0 0.0
    %2621 = vmatpush1.msra.mxu0 %v1763
    %2622 = vmatprep.subr.mxu0 0.0
    %2623 = vmatpush1.msra.mxu0 %v1764
    %2624 = vmatprep.subr.mxu0 0.0
    %2625 = vmatpush1.msra.mxu0 %v1765
    %2626 = vmatprep.subr.mxu0 0.0
    %2627 = vmatpush1.msra.mxu0 %v1766
    %2628 = vmatprep.subr.mxu0 0.0
    %2629 = vmatpush1.msra.mxu0 %v1767
    %2630 = vmatprep.subr.mxu0 0.0
    %2631 = vmatpush1.msra.mxu0 %v1768
    %2632 = vmatprep.subr.mxu0 0.0
    %2633 = vmatpush1.msra.mxu0 %v1769
    %2634 = vmatprep.subr.mxu0 0.0
    %2635 = vmatpush1.msra.mxu0 %v1770
    %2636 = vmatprep.subr.mxu0 0.0
    %2637 = vmatpush1.msra.mxu0 %v1771
    %2638 = vmatprep.subr.mxu0 0.0
    %2639 = vmatpush1.msra.mxu0 %v1772
    %2640 = vmatprep.subr.mxu0 0.0
    %2641 = vmatpush1.msra.mxu0 %v1773
    %2642 = vmatprep.subr.mxu0 0.0
    %2643 = vmatpush1.msra.mxu0 %v1774
    %2644 = vmatprep.subr.mxu0 0.0
    %2645 = vmatpush1.msra.mxu0 %v1775
    %2646 = vmatprep.subr.mxu0 0.0
    %2647 = vmatpush1.msra.mxu0 %v1776
    %2648 = vmatprep.subr.mxu0 0.0
    %2649 = vmatpush1.msra.mxu0 %v1777
    %2650 = vmatprep.subr.mxu0 0.0
    %2651 = vmatpush1.msra.mxu0 %v1778
    %2652 = vmatprep.subr.mxu0 0.0
    %2653 = vmatpush1.msra.mxu0 %v1779
    %2654 = vmatprep.subr.mxu0 0.0
    %2655 = vmatpush1.msra.mxu0 %v1780
    %2656 = vmatprep.subr.mxu0 0.0
    %2657 = vmatpush1.msra.mxu0 %v1781
    %2658 = vmatprep.subr.mxu0 0.0
    %2659 = vmatpush1.msra.mxu0 %v1782
    %2660 = vmatprep.subr.mxu0 0.0
    %2661 = vmatpush1.msra.mxu0 %v1783
    %2662 = vmatprep.subr.mxu0 0.0
    %2663 = vmatpush1.msra.mxu0 %v1784
    %2664 = vmatprep.subr.mxu0 0.0
    %2665 = vmatpush1.msra.mxu0 %v1785
    %2666 = vmatprep.subr.mxu0 0.0
    %2667 = vmatpush1.msra.mxu0 %v1786
    %2668 = vmatprep.subr.mxu0 0.0
    %2669 = vmatpush1.msra.mxu0 %v1787
    %2670 = vmatprep.mubr.f32.mxu0 %v1435
    %2671 = vmatmul.mubr.f32.gmra.mrb[0].mxu0 %v1371
    %v2672 = vpop.f32.mrb[0].mxu0
    %v2673 = vadd.f32 %v2288, %v2672
    %v2674 = vpop.f32.mrb[0].mxu0
    %2675 = vmatprep.mubr.f32.mxu0 %v1436
    %2676 = vmatmul.mubr.f32.gmra.mrb[0].mxu0 %v1372
    %v2677 = vpop.f32.mrb[0].mxu0
    %v2678 = vadd.f32 %v2293, %v2677
    %v2679 = vpop.f32.mrb[0].mxu0
    %2680 = vmatprep.mubr.f32.mxu0 %v1437
    %2681 = vmatmul.mubr.f32.gmra.mrb[0].mxu0 %v1373
    %v2682 = vpop.f32.mrb[0].mxu0
    %v2683 = vadd.f32 %v2298, %v2682
    %v2684 = vpop.f32.mrb[0].mxu0
    %2685 = vmatprep.mubr.f32.mxu0 %v1438
    %2686 = vmatmul.mubr.f32.gmra.mrb[0].mxu0 %v1374
    %v2687 = vpop.f32.mrb[0].mxu0
    %v2688 = vadd.f32 %v2303, %v2687
    %v2689 = vpop.f32.mrb[0].mxu0
    %2690 = vmatprep.mubr.f32.mxu0 %v1439
    %2691 = vmatmul.mubr.f32.gmra.mrb[0].mxu0 %v1375
    %v2692 = vpop.f32.mrb[0].mxu0
    %v2693 = vadd.f32 %v2308, %v2692
    %v2694 = vpop.f32.mrb[0].mxu0
    %2695 = vmatprep.mubr.f32.mxu0 %v1440
    %2696 = vmatmul.mubr.f32.gmra.mrb[0].mxu0 %v1376
    %v2697 = vpop.f32.mrb[0].mxu0
    %v2698 = vadd.f32 %v2313, %v2697
    %v2699 = vpop.f32.mrb[0].mxu0
    %2700 = vmatprep.mubr.f32.mxu0 %v1441
    %2701 = vmatmul.mubr.f32.gmra.mrb[0].mxu0 %v1377
    %v2702 = vpop.f32.mrb[0].mxu0
    %v2703 = vadd.f32 %v2318, %v2702
    %v2704 = vpop.f32.mrb[0].mxu0
    %2705 = vmatprep.mubr.f32.mxu0 %v1442
    %2706 = vmatmul.mubr.f32.gmra.mrb[0].mxu0 %v1378
    %v2707 = vpop.f32.mrb[0].mxu0
    %v2708 = vadd.f32 %v2323, %v2707
    %v2709 = vpop.f32.mrb[0].mxu0
    %2710 = vmatprep.mubr.f32.mxu0 %v1443
    %2711 = vmatmul.mubr.f32.gmra.mrb[0].mxu0 %v1379
    %v2712 = vpop.f32.mrb[0].mxu0
    %v2713 = vadd.f32 %v2328, %v2712
    %v2714 = vpop.f32.mrb[0].mxu0
    %2715 = vmatprep.mubr.f32.mxu0 %v1444
    %2716 = vmatmul.mubr.f32.gmra.mrb[0].mxu0 %v1380
    %v2717 = vpop.f32.mrb[0].mxu0
    %v2718 = vadd.f32 %v2333, %v2717
    %v2719 = vpop.f32.mrb[0].mxu0
    %2720 = vmatprep.mubr.f32.mxu0 %v1445
    %2721 = vmatmul.mubr.f32.gmra.mrb[0].mxu0 %v1381
    %v2722 = vpop.f32.mrb[0].mxu0
    %v2723 = vadd.f32 %v2338, %v2722
    %v2724 = vpop.f32.mrb[0].mxu0
    %2725 = vmatprep.mubr.f32.mxu0 %v1446
    %2726 = vmatmul.mubr.f32.gmra.mrb[0].mxu0 %v1382
    %v2727 = vpop.f32.mrb[0].mxu0
    %v2728 = vadd.f32 %v2343, %v2727
    %v2729 = vpop.f32.mrb[0].mxu0
    %2730 = vmatprep.mubr.f32.mxu0 %v1447
    %2731 = vmatmul.mubr.f32.gmra.mrb[0].mxu0 %v1383
    %v2732 = vpop.f32.mrb[0].mxu0
    %v2733 = vadd.f32 %v2348, %v2732
    %v2734 = vpop.f32.mrb[0].mxu0
    %2735 = vmatprep.mubr.f32.mxu0 %v1448
    %2736 = vmatmul.mubr.f32.gmra.mrb[0].mxu0 %v1384
    %v2737 = vpop.f32.mrb[0].mxu0
    %v2738 = vadd.f32 %v2353, %v2737
    %v2739 = vpop.f32.mrb[0].mxu0
    %2740 = vmatprep.mubr.f32.mxu0 %v1449
    %2741 = vmatmul.mubr.f32.gmra.mrb[0].mxu0 %v1385
    %v2742 = vpop.f32.mrb[0].mxu0
    %v2743 = vadd.f32 %v2358, %v2742
    %v2744 = vpop.f32.mrb[0].mxu0
    %2745 = vmatprep.mubr.f32.mxu0 %v1450
    %2746 = vmatmul.mubr.f32.gmra.mrb[0].mxu0 %v1386
    %v2747 = vpop.f32.mrb[0].mxu0
    %v2748 = vadd.f32 %v2363, %v2747
    %v2749 = vpop.f32.mrb[0].mxu0
    %2750 = vmatprep.mubr.f32.mxu0 %v1451
    %2751 = vmatmul.mubr.f32.gmra.mrb[0].mxu0 %v1387
    %v2752 = vpop.f32.mrb[0].mxu0
    %v2753 = vadd.f32 %v2368, %v2752
    %v2754 = vpop.f32.mrb[0].mxu0
    %2755 = vmatprep.mubr.f32.mxu0 %v1452
    %2756 = vmatmul.mubr.f32.gmra.mrb[0].mxu0 %v1388
    %v2757 = vpop.f32.mrb[0].mxu0
    %v2758 = vadd.f32 %v2373, %v2757
    %v2759 = vpop.f32.mrb[0].mxu0
    %2760 = vmatprep.mubr.f32.mxu0 %v1453
    %2761 = vmatmul.mubr.f32.gmra.mrb[0].mxu0 %v1389
    %v2762 = vpop.f32.mrb[0].mxu0
    %v2763 = vadd.f32 %v2378, %v2762
    %v2764 = vpop.f32.mrb[0].mxu0
    %2765 = vmatprep.mubr.f32.mxu0 %v1454
    %2766 = vmatmul.mubr.f32.gmra.mrb[0].mxu0 %v1390
    %v2767 = vpop.f32.mrb[0].mxu0
    %v2768 = vadd.f32 %v2383, %v2767
    %v2769 = vpop.f32.mrb[0].mxu0
    %2770 = vmatprep.mubr.f32.mxu0 %v1455
    %2771 = vmatmul.mubr.f32.gmra.mrb[0].mxu0 %v1391
    %v2772 = vpop.f32.mrb[0].mxu0
    %v2773 = vadd.f32 %v2388, %v2772
    %v2774 = vpop.f32.mrb[0].mxu0
    %2775 = vmatprep.mubr.f32.mxu0 %v1456
    %2776 = vmatmul.mubr.f32.gmra.mrb[0].mxu0 %v1392
    %v2777 = vpop.f32.mrb[0].mxu0
    %v2778 = vadd.f32 %v2393, %v2777
    %v2779 = vpop.f32.mrb[0].mxu0
    %2780 = vmatprep.mubr.f32.mxu0 %v1457
    %2781 = vmatmul.mubr.f32.gmra.mrb[0].mxu0 %v1393
    %v2782 = vpop.f32.mrb[0].mxu0
    %v2783 = vadd.f32 %v2398, %v2782
    %v2784 = vpop.f32.mrb[0].mxu0
    %2785 = vmatprep.mubr.f32.mxu0 %v1458
    %2786 = vmatmul.mubr.f32.gmra.mrb[0].mxu0 %v1394
    %v2787 = vpop.f32.mrb[0].mxu0
    %v2788 = vadd.f32 %v2403, %v2787
    %v2789 = vpop.f32.mrb[0].mxu0
    %2790 = vmatprep.mubr.f32.mxu0 %v1459
    %2791 = vmatmul.mubr.f32.gmra.mrb[0].mxu0 %v1395
    %v2792 = vpop.f32.mrb[0].mxu0
    %v2793 = vadd.f32 %v2408, %v2792
    %v2794 = vpop.f32.mrb[0].mxu0
    %2795 = vmatprep.mubr.f32.mxu0 %v1460
    %2796 = vmatmul.mubr.f32.gmra.mrb[0].mxu0 %v1396
    %v2797 = vpop.f32.mrb[0].mxu0
    %v2798 = vadd.f32 %v2413, %v2797
    %v2799 = vpop.f32.mrb[0].mxu0
    %2800 = vmatprep.mubr.f32.mxu0 %v1461
    %2801 = vmatmul.mubr.f32.gmra.mrb[0].mxu0 %v1397
    %v2802 = vpop.f32.mrb[0].mxu0
    %v2803 = vadd.f32 %v2418, %v2802
    %v2804 = vpop.f32.mrb[0].mxu0
    %2805 = vmatprep.mubr.f32.mxu0 %v1462
    %2806 = vmatmul.mubr.f32.gmra.mrb[0].mxu0 %v1398
    %v2807 = vpop.f32.mrb[0].mxu0
    %v2808 = vadd.f32 %v2423, %v2807
    %v2809 = vpop.f32.mrb[0].mxu0
    %2810 = vmatprep.mubr.f32.mxu0 %v1463
    %2811 = vmatmul.mubr.f32.gmra.mrb[0].mxu0 %v1399
    %v2812 = vpop.f32.mrb[0].mxu0
    %v2813 = vadd.f32 %v2428, %v2812
    %v2814 = vpop.f32.mrb[0].mxu0
    %2815 = vmatprep.mubr.f32.mxu0 %v1464
    %2816 = vmatmul.mubr.f32.gmra.mrb[0].mxu0 %v1400
    %v2817 = vpop.f32.mrb[0].mxu0
    %v2818 = vadd.f32 %v2433, %v2817
    %v2819 = vpop.f32.mrb[0].mxu0
    %2820 = vmatprep.mubr.f32.mxu0 %v1465
    %2821 = vmatmul.mubr.f32.gmra.mrb[0].mxu0 %v1401
    %v2822 = vpop.f32.mrb[0].mxu0
    %v2823 = vadd.f32 %v2438, %v2822
    %v2824 = vpop.f32.mrb[0].mxu0
    %2825 = vmatprep.mubr.f32.mxu0 %v1466
    %2826 = vmatmul.mubr.f32.gmra.mrb[0].mxu0 %v1402
    %v2827 = vpop.f32.mrb[0].mxu0
    %v2828 = vadd.f32 %v2443, %v2827
    %v2829 = vpop.f32.mrb[0].mxu0
    %2830 = vmatprep.mubr.f32.mxu0 %v1467
    %2831 = vmatmul.mubr.f32.gmra.mrb[0].mxu0 %v1403
    %v2832 = vpop.f32.mrb[0].mxu0
    %v2833 = vadd.f32 %v2448, %v2832
    %v2834 = vpop.f32.mrb[0].mxu0
    %2835 = vmatprep.mubr.f32.mxu0 %v1468
    %2836 = vmatmul.mubr.f32.gmra.mrb[0].mxu0 %v1404
    %v2837 = vpop.f32.mrb[0].mxu0
    %v2838 = vadd.f32 %v2453, %v2837
    %v2839 = vpop.f32.mrb[0].mxu0
    %2840 = vmatprep.mubr.f32.mxu0 %v1469
    %2841 = vmatmul.mubr.f32.gmra.mrb[0].mxu0 %v1405
    %v2842 = vpop.f32.mrb[0].mxu0
    %v2843 = vadd.f32 %v2458, %v2842
    %v2844 = vpop.f32.mrb[0].mxu0
    %2845 = vmatprep.mubr.f32.mxu0 %v1470
    %2846 = vmatmul.mubr.f32.gmra.mrb[0].mxu0 %v1406
    %v2847 = vpop.f32.mrb[0].mxu0
    %v2848 = vadd.f32 %v2463, %v2847
    %v2849 = vpop.f32.mrb[0].mxu0
    %2850 = vmatprep.mubr.f32.mxu0 %v1471
    %2851 = vmatmul.mubr.f32.gmra.mrb[0].mxu0 %v1407
    %v2852 = vpop.f32.mrb[0].mxu0
    %v2853 = vadd.f32 %v2468, %v2852
    %v2854 = vpop.f32.mrb[0].mxu0
    %2855 = vmatprep.mubr.f32.mxu0 %v1472
    %2856 = vmatmul.mubr.f32.gmra.mrb[0].mxu0 %v1408
    %v2857 = vpop.f32.mrb[0].mxu0
    %v2858 = vadd.f32 %v2473, %v2857
    %v2859 = vpop.f32.mrb[0].mxu0
    %2860 = vmatprep.mubr.f32.mxu0 %v1473
    %2861 = vmatmul.mubr.f32.gmra.mrb[0].mxu0 %v1409
    %v2862 = vpop.f32.mrb[0].mxu0
    %v2863 = vadd.f32 %v2478, %v2862
    %v2864 = vpop.f32.mrb[0].mxu0
    %2865 = vmatprep.mubr.f32.mxu0 %v1474
    %2866 = vmatmul.mubr.f32.gmra.mrb[0].mxu0 %v1410
    %v2867 = vpop.f32.mrb[0].mxu0
    %v2868 = vadd.f32 %v2483, %v2867
    %v2869 = vpop.f32.mrb[0].mxu0
    %2870 = vmatprep.mubr.f32.mxu0 %v1475
    %2871 = vmatmul.mubr.f32.gmra.mrb[0].mxu0 %v1411
    %v2872 = vpop.f32.mrb[0].mxu0
    %v2873 = vadd.f32 %v2488, %v2872
    %v2874 = vpop.f32.mrb[0].mxu0
    %2875 = vmatprep.mubr.f32.mxu0 %v1476
    %2876 = vmatmul.mubr.f32.gmra.mrb[0].mxu0 %v1412
    %v2877 = vpop.f32.mrb[0].mxu0
    %v2878 = vadd.f32 %v2493, %v2877
    %v2879 = vpop.f32.mrb[0].mxu0
    %2880 = vmatprep.mubr.f32.mxu0 %v1477
    %2881 = vmatmul.mubr.f32.gmra.mrb[0].mxu0 %v1413
    %v2882 = vpop.f32.mrb[0].mxu0
    %v2883 = vadd.f32 %v2498, %v2882
    %v2884 = vpop.f32.mrb[0].mxu0
    %2885 = vmatprep.mubr.f32.mxu0 %v1478
    %2886 = vmatmul.mubr.f32.gmra.mrb[0].mxu0 %v1414
    %v2887 = vpop.f32.mrb[0].mxu0
    %v2888 = vadd.f32 %v2503, %v2887
    %v2889 = vpop.f32.mrb[0].mxu0
    %2890 = vmatprep.mubr.f32.mxu0 %v1479
    %2891 = vmatmul.mubr.f32.gmra.mrb[0].mxu0 %v1415
    %v2892 = vpop.f32.mrb[0].mxu0
    %v2893 = vadd.f32 %v2508, %v2892
    %v2894 = vpop.f32.mrb[0].mxu0
    %2895 = vmatprep.mubr.f32.mxu0 %v1480
    %2896 = vmatmul.mubr.f32.gmra.mrb[0].mxu0 %v1416
    %v2897 = vpop.f32.mrb[0].mxu0
    %v2898 = vadd.f32 %v2513, %v2897
    %v2899 = vpop.f32.mrb[0].mxu0
    %2900 = vmatprep.mubr.f32.mxu0 %v1481
    %2901 = vmatmul.mubr.f32.gmra.mrb[0].mxu0 %v1417
    %v2902 = vpop.f32.mrb[0].mxu0
    %v2903 = vadd.f32 %v2518, %v2902
    %v2904 = vpop.f32.mrb[0].mxu0
    %2905 = vmatprep.mubr.f32.mxu0 %v1482
    %2906 = vmatmul.mubr.f32.gmra.mrb[0].mxu0 %v1418
    %v2907 = vpop.f32.mrb[0].mxu0
    %v2908 = vadd.f32 %v2523, %v2907
    %v2909 = vpop.f32.mrb[0].mxu0
    %2910 = vmatprep.mubr.f32.mxu0 %v1483
    %2911 = vmatmul.mubr.f32.gmra.mrb[0].mxu0 %v1419
    %v2912 = vpop.f32.mrb[0].mxu0
    %v2913 = vadd.f32 %v2528, %v2912
    %v2914 = vpop.f32.mrb[0].mxu0
    %2915 = vmatprep.mubr.f32.mxu0 %v1484
    %2916 = vmatmul.mubr.f32.gmra.mrb[0].mxu0 %v1420
    %v2917 = vpop.f32.mrb[0].mxu0
    %v2918 = vadd.f32 %v2533, %v2917
    %v2919 = vpop.f32.mrb[0].mxu0
    %2920 = vmatprep.mubr.f32.mxu0 %v1485
    %2921 = vmatmul.mubr.f32.gmra.mrb[0].mxu0 %v1421
    %v2922 = vpop.f32.mrb[0].mxu0
    %v2923 = vadd.f32 %v2538, %v2922
    %v2924 = vpop.f32.mrb[0].mxu0
    %2925 = vmatprep.mubr.f32.mxu0 %v1486
    %2926 = vmatmul.mubr.f32.gmra.mrb[0].mxu0 %v1422
    %v2927 = vpop.f32.mrb[0].mxu0
    %v2928 = vadd.f32 %v2543, %v2927
    %v2929 = vpop.f32.mrb[0].mxu0
    %2930 = vmatprep.mubr.f32.mxu0 %v1487
    %2931 = vmatmul.mubr.f32.gmra.mrb[0].mxu0 %v1423
    %v2932 = vpop.f32.mrb[0].mxu0
    %v2933 = vadd.f32 %v2548, %v2932
    %v2934 = vpop.f32.mrb[0].mxu0
    %2935 = vmatprep.mubr.f32.mxu0 %v1488
    %2936 = vmatmul.mubr.f32.gmra.mrb[0].mxu0 %v1424
    %v2937 = vpop.f32.mrb[0].mxu0
    %v2938 = vadd.f32 %v2553, %v2937
    %v2939 = vpop.f32.mrb[0].mxu0
    %2940 = vmatprep.mubr.f32.mxu0 %v1489
    %2941 = vmatmul.mubr.f32.gmra.mrb[0].mxu0 %v1425
    %v2942 = vpop.f32.mrb[0].mxu0
    %v2943 = vadd.f32 %v2558, %v2942
    %v2944 = vpop.f32.mrb[0].mxu0
    %2945 = vmatprep.mubr.f32.mxu0 %v1490
    %2946 = vmatmul.mubr.f32.gmra.mrb[0].mxu0 %v1426
    %v2947 = vpop.f32.mrb[0].mxu0
    %v2948 = vadd.f32 %v2563, %v2947
    %v2949 = vpop.f32.mrb[0].mxu0
    %2950 = vmatprep.mubr.f32.mxu0 %v1491
    %2951 = vmatmul.mubr.f32.gmra.mrb[0].mxu0 %v1427
    %v2952 = vpop.f32.mrb[0].mxu0
    %v2953 = vadd.f32 %v2568, %v2952
    %v2954 = vpop.f32.mrb[0].mxu0
    %2955 = vmatprep.mubr.f32.mxu0 %v1492
    %2956 = vmatmul.mubr.f32.gmra.mrb[0].mxu0 %v1428
    %v2957 = vpop.f32.mrb[0].mxu0
    %v2958 = vadd.f32 %v2573, %v2957
    %v2959 = vpop.f32.mrb[0].mxu0
    %2960 = vmatprep.mubr.f32.mxu0 %v1493
    %2961 = vmatmul.mubr.f32.gmra.mrb[0].mxu0 %v1429
    %v2962 = vpop.f32.mrb[0].mxu0
    %v2963 = vadd.f32 %v2578, %v2962
    %v2964 = vpop.f32.mrb[0].mxu0
    %2965 = vmatprep.mubr.f32.mxu0 %v1494
    %2966 = vmatmul.mubr.f32.gmra.mrb[0].mxu0 %v1430
    %v2967 = vpop.f32.mrb[0].mxu0
    %v2968 = vadd.f32 %v2583, %v2967
    %v2969 = vpop.f32.mrb[0].mxu0
    %2970 = vmatprep.mubr.f32.mxu0 %v1495
    %2971 = vmatmul.mubr.f32.gmra.mrb[0].mxu0 %v1431
    %v2972 = vpop.f32.mrb[0].mxu0
    %v2973 = vadd.f32 %v2588, %v2972
    %v2974 = vpop.f32.mrb[0].mxu0
    %2975 = vmatprep.mubr.f32.mxu0 %v1496
    %2976 = vmatmul.mubr.f32.gmra.mrb[0].mxu0 %v1432
    %v2977 = vpop.f32.mrb[0].mxu0
    %v2978 = vadd.f32 %v2593, %v2977
    %v2979 = vpop.f32.mrb[0].mxu0
    %2980 = vmatprep.mubr.f32.mxu0 %v1497
    %2981 = vmatmul.mubr.f32.gmra.mrb[0].mxu0 %v1433
    %v2982 = vpop.f32.mrb[0].mxu0
    %v2983 = vadd.f32 %v2598, %v2982
    %v2984 = vpop.f32.mrb[0].mxu0
    %2985 = vmatprep.mubr.f32.mxu0 %v1498
    %2986 = vmatmul.mubr.f32.gmra.mrb[0].mxu0 %v1434
    %v2987 = vpop.f32.mrb[0].mxu0
    %v2988 = vadd.f32 %v2603, %v2987
    %v2989 = vpop.f32.mrb[0].mxu0
    %2990 = vdwg.mxu0
    %2991 = vmatprep.subr.mxu0 0.0
    %2992 = vmatpush1.msra.mxu0 %v1788
    %2993 = vmatprep.subr.mxu0 0.0
    %2994 = vmatpush1.msra.mxu0 %v1789
    %2995 = vmatprep.subr.mxu0 0.0
    %2996 = vmatpush1.msra.mxu0 %v1790
    %2997 = vmatprep.subr.mxu0 0.0
    %2998 = vmatpush1.msra.mxu0 %v1791
    %2999 = vmatprep.subr.mxu0 0.0
    %3000 = vmatpush1.msra.mxu0 %v1792
    %3001 = vmatprep.subr.mxu0 0.0
    %3002 = vmatpush1.msra.mxu0 %v1793
    %3003 = vmatprep.subr.mxu0 0.0
    %3004 = vmatpush1.msra.mxu0 %v1794
    %3005 = vmatprep.subr.mxu0 0.0
    %3006 = vmatpush1.msra.mxu0 %v1795
    %3007 = vmatprep.subr.mxu0 0.0
    %3008 = vmatpush1.msra.mxu0 %v1796
    %3009 = vmatprep.subr.mxu0 0.0
    %3010 = vmatpush1.msra.mxu0 %v1797
    %3011 = vmatprep.subr.mxu0 0.0
    %3012 = vmatpush1.msra.mxu0 %v1798
    %3013 = vmatprep.subr.mxu0 0.0
    %3014 = vmatpush1.msra.mxu0 %v1799
    %3015 = vmatprep.subr.mxu0 0.0
    %3016 = vmatpush1.msra.mxu0 %v1800
    %3017 = vmatprep.subr.mxu0 0.0
    %3018 = vmatpush1.msra.mxu0 %v1801
    %3019 = vmatprep.subr.mxu0 0.0
    %3020 = vmatpush1.msra.mxu0 %v1802
    %3021 = vmatprep.subr.mxu0 0.0
    %3022 = vmatpush1.msra.mxu0 %v1803
    %3023 = vmatprep.subr.mxu0 0.0
    %3024 = vmatpush1.msra.mxu0 %v1804
    %3025 = vmatprep.subr.mxu0 0.0
    %3026 = vmatpush1.msra.mxu0 %v1805
    %3027 = vmatprep.subr.mxu0 0.0
    %3028 = vmatpush1.msra.mxu0 %v1806
    %3029 = vmatprep.subr.mxu0 0.0
    %3030 = vmatpush1.msra.mxu0 %v1807
    %3031 = vmatprep.subr.mxu0 0.0
    %3032 = vmatpush1.msra.mxu0 %v1808
    %3033 = vmatprep.subr.mxu0 0.0
    %3034 = vmatpush1.msra.mxu0 %v1809
    %3035 = vmatprep.subr.mxu0 0.0
    %3036 = vmatpush1.msra.mxu0 %v1810
    %3037 = vmatprep.subr.mxu0 0.0
    %3038 = vmatpush1.msra.mxu0 %v1811
    %3039 = vmatprep.subr.mxu0 0.0
    %3040 = vmatpush1.msra.mxu0 %v1812
    %3041 = vmatprep.subr.mxu0 0.0
    %3042 = vmatpush1.msra.mxu0 %v1813
    %3043 = vmatprep.subr.mxu0 0.0
    %3044 = vmatpush1.msra.mxu0 %v1814
    %3045 = vmatprep.subr.mxu0 0.0
    %3046 = vmatpush1.msra.mxu0 %v1815
    %3047 = vmatprep.subr.mxu0 0.0
    %3048 = vmatpush1.msra.mxu0 %v1816
    %3049 = vmatprep.subr.mxu0 0.0
    %3050 = vmatpush1.msra.mxu0 %v1817
    %3051 = vmatprep.subr.mxu0 0.0
    %3052 = vmatpush1.msra.mxu0 %v1818
    %3053 = vmatprep.subr.mxu0 0.0
    %3054 = vmatpush1.msra.mxu0 %v1819
    %3055 = vmatprep.mubr.f32.mxu0 %v1564
    %3056 = vmatmul.mubr.f32.gmra.mrb[0].mxu0 %v1500
    %v3057 = vpop.f32.mrb[0].mxu0
    %v3058 = vadd.f32 %v2673, %v3057
    %v3059 = vpop.f32.mrb[0].mxu0
    %3060 = vmatprep.mubr.f32.mxu0 %v1565
    %3061 = vmatmul.mubr.f32.gmra.mrb[0].mxu0 %v1501
    %v3062 = vpop.f32.mrb[0].mxu0
    %v3063 = vadd.f32 %v2678, %v3062
    %v3064 = vpop.f32.mrb[0].mxu0
    %3065 = vmatprep.mubr.f32.mxu0 %v1566
    %3066 = vmatmul.mubr.f32.gmra.mrb[0].mxu0 %v1502
    %v3067 = vpop.f32.mrb[0].mxu0
    %v3068 = vadd.f32 %v2683, %v3067
    %v3069 = vpop.f32.mrb[0].mxu0
    %3070 = vmatprep.mubr.f32.mxu0 %v1567
    %3071 = vmatmul.mubr.f32.gmra.mrb[0].mxu0 %v1503
    %v3072 = vpop.f32.mrb[0].mxu0
    %v3073 = vadd.f32 %v2688, %v3072
    %v3074 = vpop.f32.mrb[0].mxu0
    %3075 = vmatprep.mubr.f32.mxu0 %v1568
    %3076 = vmatmul.mubr.f32.gmra.mrb[0].mxu0 %v1504
    %v3077 = vpop.f32.mrb[0].mxu0
    %v3078 = vadd.f32 %v2693, %v3077
    %v3079 = vpop.f32.mrb[0].mxu0
    %3080 = vmatprep.mubr.f32.mxu0 %v1569
    %3081 = vmatmul.mubr.f32.gmra.mrb[0].mxu0 %v1505
    %v3082 = vpop.f32.mrb[0].mxu0
    %v3083 = vadd.f32 %v2698, %v3082
    %v3084 = vpop.f32.mrb[0].mxu0
    %3085 = vmatprep.mubr.f32.mxu0 %v1570
    %3086 = vmatmul.mubr.f32.gmra.mrb[0].mxu0 %v1506
    %v3087 = vpop.f32.mrb[0].mxu0
    %v3088 = vadd.f32 %v2703, %v3087
    %v3089 = vpop.f32.mrb[0].mxu0
    %3090 = vmatprep.mubr.f32.mxu0 %v1571
    %3091 = vmatmul.mubr.f32.gmra.mrb[0].mxu0 %v1507
    %v3092 = vpop.f32.mrb[0].mxu0
    %v3093 = vadd.f32 %v2708, %v3092
    %v3094 = vpop.f32.mrb[0].mxu0
    %3095 = vmatprep.mubr.f32.mxu0 %v1572
    %3096 = vmatmul.mubr.f32.gmra.mrb[0].mxu0 %v1508
    %v3097 = vpop.f32.mrb[0].mxu0
    %v3098 = vadd.f32 %v2713, %v3097
    %v3099 = vpop.f32.mrb[0].mxu0
    %3100 = vmatprep.mubr.f32.mxu0 %v1573
    %3101 = vmatmul.mubr.f32.gmra.mrb[0].mxu0 %v1509
    %v3102 = vpop.f32.mrb[0].mxu0
    %v3103 = vadd.f32 %v2718, %v3102
    %v3104 = vpop.f32.mrb[0].mxu0
    %3105 = vmatprep.mubr.f32.mxu0 %v1574
    %3106 = vmatmul.mubr.f32.gmra.mrb[0].mxu0 %v1510
    %v3107 = vpop.f32.mrb[0].mxu0
    %v3108 = vadd.f32 %v2723, %v3107
    %v3109 = vpop.f32.mrb[0].mxu0
    %3110 = vmatprep.mubr.f32.mxu0 %v1575
    %3111 = vmatmul.mubr.f32.gmra.mrb[0].mxu0 %v1511
    %v3112 = vpop.f32.mrb[0].mxu0
    %v3113 = vadd.f32 %v2728, %v3112
    %v3114 = vpop.f32.mrb[0].mxu0
    %3115 = vmatprep.mubr.f32.mxu0 %v1576
    %3116 = vmatmul.mubr.f32.gmra.mrb[0].mxu0 %v1512
    %v3117 = vpop.f32.mrb[0].mxu0
    %v3118 = vadd.f32 %v2733, %v3117
    %v3119 = vpop.f32.mrb[0].mxu0
    %3120 = vmatprep.mubr.f32.mxu0 %v1577
    %3121 = vmatmul.mubr.f32.gmra.mrb[0].mxu0 %v1513
    %v3122 = vpop.f32.mrb[0].mxu0
    %v3123 = vadd.f32 %v2738, %v3122
    %v3124 = vpop.f32.mrb[0].mxu0
    %3125 = vmatprep.mubr.f32.mxu0 %v1578
    %3126 = vmatmul.mubr.f32.gmra.mrb[0].mxu0 %v1514
    %v3127 = vpop.f32.mrb[0].mxu0
    %v3128 = vadd.f32 %v2743, %v3127
    %v3129 = vpop.f32.mrb[0].mxu0
    %3130 = vmatprep.mubr.f32.mxu0 %v1579
    %3131 = vmatmul.mubr.f32.gmra.mrb[0].mxu0 %v1515
    %v3132 = vpop.f32.mrb[0].mxu0
    %v3133 = vadd.f32 %v2748, %v3132
    %v3134 = vpop.f32.mrb[0].mxu0
    %3135 = vmatprep.mubr.f32.mxu0 %v1580
    %3136 = vmatmul.mubr.f32.gmra.mrb[0].mxu0 %v1516
    %v3137 = vpop.f32.mrb[0].mxu0
    %v3138 = vadd.f32 %v2753, %v3137
    %v3139 = vpop.f32.mrb[0].mxu0
    %3140 = vmatprep.mubr.f32.mxu0 %v1581
    %3141 = vmatmul.mubr.f32.gmra.mrb[0].mxu0 %v1517
    %v3142 = vpop.f32.mrb[0].mxu0
    %v3143 = vadd.f32 %v2758, %v3142
    %v3144 = vpop.f32.mrb[0].mxu0
    %3145 = vmatprep.mubr.f32.mxu0 %v1582
    %3146 = vmatmul.mubr.f32.gmra.mrb[0].mxu0 %v1518
    %v3147 = vpop.f32.mrb[0].mxu0
    %v3148 = vadd.f32 %v2763, %v3147
    %v3149 = vpop.f32.mrb[0].mxu0
    %3150 = vmatprep.mubr.f32.mxu0 %v1583
    %3151 = vmatmul.mubr.f32.gmra.mrb[0].mxu0 %v1519
    %v3152 = vpop.f32.mrb[0].mxu0
    %v3153 = vadd.f32 %v2768, %v3152
    %v3154 = vpop.f32.mrb[0].mxu0
    %3155 = vmatprep.mubr.f32.mxu0 %v1584
    %3156 = vmatmul.mubr.f32.gmra.mrb[0].mxu0 %v1520
    %v3157 = vpop.f32.mrb[0].mxu0
    %v3158 = vadd.f32 %v2773, %v3157
    %v3159 = vpop.f32.mrb[0].mxu0
    %3160 = vmatprep.mubr.f32.mxu0 %v1585
    %3161 = vmatmul.mubr.f32.gmra.mrb[0].mxu0 %v1521
    %v3162 = vpop.f32.mrb[0].mxu0
    %v3163 = vadd.f32 %v2778, %v3162
    %v3164 = vpop.f32.mrb[0].mxu0
    %3165 = vmatprep.mubr.f32.mxu0 %v1586
    %3166 = vmatmul.mubr.f32.gmra.mrb[0].mxu0 %v1522
    %v3167 = vpop.f32.mrb[0].mxu0
    %v3168 = vadd.f32 %v2783, %v3167
    %v3169 = vpop.f32.mrb[0].mxu0
    %3170 = vmatprep.mubr.f32.mxu0 %v1587
    %3171 = vmatmul.mubr.f32.gmra.mrb[0].mxu0 %v1523
    %v3172 = vpop.f32.mrb[0].mxu0
    %v3173 = vadd.f32 %v2788, %v3172
    %v3174 = vpop.f32.mrb[0].mxu0
    %3175 = vmatprep.mubr.f32.mxu0 %v1588
    %3176 = vmatmul.mubr.f32.gmra.mrb[0].mxu0 %v1524
    %v3177 = vpop.f32.mrb[0].mxu0
    %v3178 = vadd.f32 %v2793, %v3177
    %v3179 = vpop.f32.mrb[0].mxu0
    %3180 = vmatprep.mubr.f32.mxu0 %v1589
    %3181 = vmatmul.mubr.f32.gmra.mrb[0].mxu0 %v1525
    %v3182 = vpop.f32.mrb[0].mxu0
    %v3183 = vadd.f32 %v2798, %v3182
    %v3184 = vpop.f32.mrb[0].mxu0
    %3185 = vmatprep.mubr.f32.mxu0 %v1590
    %3186 = vmatmul.mubr.f32.gmra.mrb[0].mxu0 %v1526
    %v3187 = vpop.f32.mrb[0].mxu0
    %v3188 = vadd.f32 %v2803, %v3187
    %v3189 = vpop.f32.mrb[0].mxu0
    %3190 = vmatprep.mubr.f32.mxu0 %v1591
    %3191 = vmatmul.mubr.f32.gmra.mrb[0].mxu0 %v1527
    %v3192 = vpop.f32.mrb[0].mxu0
    %v3193 = vadd.f32 %v2808, %v3192
    %v3194 = vpop.f32.mrb[0].mxu0
    %3195 = vmatprep.mubr.f32.mxu0 %v1592
    %3196 = vmatmul.mubr.f32.gmra.mrb[0].mxu0 %v1528
    %v3197 = vpop.f32.mrb[0].mxu0
    %v3198 = vadd.f32 %v2813, %v3197
    %v3199 = vpop.f32.mrb[0].mxu0
    %3200 = vmatprep.mubr.f32.mxu0 %v1593
    %3201 = vmatmul.mubr.f32.gmra.mrb[0].mxu0 %v1529
    %v3202 = vpop.f32.mrb[0].mxu0
    %v3203 = vadd.f32 %v2818, %v3202
    %v3204 = vpop.f32.mrb[0].mxu0
    %3205 = vmatprep.mubr.f32.mxu0 %v1594
    %3206 = vmatmul.mubr.f32.gmra.mrb[0].mxu0 %v1530
    %v3207 = vpop.f32.mrb[0].mxu0
    %v3208 = vadd.f32 %v2823, %v3207
    %v3209 = vpop.f32.mrb[0].mxu0
    %3210 = vmatprep.mubr.f32.mxu0 %v1595
    %3211 = vmatmul.mubr.f32.gmra.mrb[0].mxu0 %v1531
    %v3212 = vpop.f32.mrb[0].mxu0
    %v3213 = vadd.f32 %v2828, %v3212
    %v3214 = vpop.f32.mrb[0].mxu0
    %3215 = vmatprep.mubr.f32.mxu0 %v1596
    %3216 = vmatmul.mubr.f32.gmra.mrb[0].mxu0 %v1532
    %v3217 = vpop.f32.mrb[0].mxu0
    %v3218 = vadd.f32 %v2833, %v3217
    %v3219 = vpop.f32.mrb[0].mxu0
    %3220 = vmatprep.mubr.f32.mxu0 %v1597
    %3221 = vmatmul.mubr.f32.gmra.mrb[0].mxu0 %v1533
    %v3222 = vpop.f32.mrb[0].mxu0
    %v3223 = vadd.f32 %v2838, %v3222
    %v3224 = vpop.f32.mrb[0].mxu0
    %3225 = vmatprep.mubr.f32.mxu0 %v1598
    %3226 = vmatmul.mubr.f32.gmra.mrb[0].mxu0 %v1534
    %v3227 = vpop.f32.mrb[0].mxu0
    %v3228 = vadd.f32 %v2843, %v3227
    %v3229 = vpop.f32.mrb[0].mxu0
    %3230 = vmatprep.mubr.f32.mxu0 %v1599
    %3231 = vmatmul.mubr.f32.gmra.mrb[0].mxu0 %v1535
    %v3232 = vpop.f32.mrb[0].mxu0
    %v3233 = vadd.f32 %v2848, %v3232
    %v3234 = vpop.f32.mrb[0].mxu0
    %3235 = vmatprep.mubr.f32.mxu0 %v1600
    %3236 = vmatmul.mubr.f32.gmra.mrb[0].mxu0 %v1536
    %v3237 = vpop.f32.mrb[0].mxu0
    %v3238 = vadd.f32 %v2853, %v3237
    %v3239 = vpop.f32.mrb[0].mxu0
    %3240 = vmatprep.mubr.f32.mxu0 %v1601
    %3241 = vmatmul.mubr.f32.gmra.mrb[0].mxu0 %v1537
    %v3242 = vpop.f32.mrb[0].mxu0
    %v3243 = vadd.f32 %v2858, %v3242
    %v3244 = vpop.f32.mrb[0].mxu0
    %3245 = vmatprep.mubr.f32.mxu0 %v1602
    %3246 = vmatmul.mubr.f32.gmra.mrb[0].mxu0 %v1538
    %v3247 = vpop.f32.mrb[0].mxu0
    %v3248 = vadd.f32 %v2863, %v3247
    %v3249 = vpop.f32.mrb[0].mxu0
    %3250 = vmatprep.mubr.f32.mxu0 %v1603
    %3251 = vmatmul.mubr.f32.gmra.mrb[0].mxu0 %v1539
    %v3252 = vpop.f32.mrb[0].mxu0
    %v3253 = vadd.f32 %v2868, %v3252
    %v3254 = vpop.f32.mrb[0].mxu0
    %3255 = vmatprep.mubr.f32.mxu0 %v1604
    %3256 = vmatmul.mubr.f32.gmra.mrb[0].mxu0 %v1540
    %v3257 = vpop.f32.mrb[0].mxu0
    %v3258 = vadd.f32 %v2873, %v3257
    %v3259 = vpop.f32.mrb[0].mxu0
    %3260 = vmatprep.mubr.f32.mxu0 %v1605
    %3261 = vmatmul.mubr.f32.gmra.mrb[0].mxu0 %v1541
    %v3262 = vpop.f32.mrb[0].mxu0
    %v3263 = vadd.f32 %v2878, %v3262
    %v3264 = vpop.f32.mrb[0].mxu0
    %3265 = vmatprep.mubr.f32.mxu0 %v1606
    %3266 = vmatmul.mubr.f32.gmra.mrb[0].mxu0 %v1542
    %v3267 = vpop.f32.mrb[0].mxu0
    %v3268 = vadd.f32 %v2883, %v3267
    %v3269 = vpop.f32.mrb[0].mxu0
    %3270 = vmatprep.mubr.f32.mxu0 %v1607
    %3271 = vmatmul.mubr.f32.gmra.mrb[0].mxu0 %v1543
    %v3272 = vpop.f32.mrb[0].mxu0
    %v3273 = vadd.f32 %v2888, %v3272
    %v3274 = vpop.f32.mrb[0].mxu0
    %3275 = vmatprep.mubr.f32.mxu0 %v1608
    %3276 = vmatmul.mubr.f32.gmra.mrb[0].mxu0 %v1544
    %v3277 = vpop.f32.mrb[0].mxu0
    %v3278 = vadd.f32 %v2893, %v3277
    %v3279 = vpop.f32.mrb[0].mxu0
    %3280 = vmatprep.mubr.f32.mxu0 %v1609
    %3281 = vmatmul.mubr.f32.gmra.mrb[0].mxu0 %v1545
    %v3282 = vpop.f32.mrb[0].mxu0
    %v3283 = vadd.f32 %v2898, %v3282
    %v3284 = vpop.f32.mrb[0].mxu0
    %3285 = vmatprep.mubr.f32.mxu0 %v1610
    %3286 = vmatmul.mubr.f32.gmra.mrb[0].mxu0 %v1546
    %v3287 = vpop.f32.mrb[0].mxu0
    %v3288 = vadd.f32 %v2903, %v3287
    %v3289 = vpop.f32.mrb[0].mxu0
    %3290 = vmatprep.mubr.f32.mxu0 %v1611
    %3291 = vmatmul.mubr.f32.gmra.mrb[0].mxu0 %v1547
    %v3292 = vpop.f32.mrb[0].mxu0
    %v3293 = vadd.f32 %v2908, %v3292
    %v3294 = vpop.f32.mrb[0].mxu0
    %3295 = vmatprep.mubr.f32.mxu0 %v1612
    %3296 = vmatmul.mubr.f32.gmra.mrb[0].mxu0 %v1548
    %v3297 = vpop.f32.mrb[0].mxu0
    %v3298 = vadd.f32 %v2913, %v3297
    %v3299 = vpop.f32.mrb[0].mxu0
    %3300 = vmatprep.mubr.f32.mxu0 %v1613
    %3301 = vmatmul.mubr.f32.gmra.mrb[0].mxu0 %v1549
    %v3302 = vpop.f32.mrb[0].mxu0
    %v3303 = vadd.f32 %v2918, %v3302
    %v3304 = vpop.f32.mrb[0].mxu0
    %3305 = vmatprep.mubr.f32.mxu0 %v1614
    %3306 = vmatmul.mubr.f32.gmra.mrb[0].mxu0 %v1550
    %v3307 = vpop.f32.mrb[0].mxu0
    %v3308 = vadd.f32 %v2923, %v3307
    %v3309 = vpop.f32.mrb[0].mxu0
    %3310 = vmatprep.mubr.f32.mxu0 %v1615
    %3311 = vmatmul.mubr.f32.gmra.mrb[0].mxu0 %v1551
    %v3312 = vpop.f32.mrb[0].mxu0
    %v3313 = vadd.f32 %v2928, %v3312
    %v3314 = vpop.f32.mrb[0].mxu0
    %3315 = vmatprep.mubr.f32.mxu0 %v1616
    %3316 = vmatmul.mubr.f32.gmra.mrb[0].mxu0 %v1552
    %v3317 = vpop.f32.mrb[0].mxu0
    %v3318 = vadd.f32 %v2933, %v3317
    %v3319 = vpop.f32.mrb[0].mxu0
    %3320 = vmatprep.mubr.f32.mxu0 %v1617
    %3321 = vmatmul.mubr.f32.gmra.mrb[0].mxu0 %v1553
    %v3322 = vpop.f32.mrb[0].mxu0
    %v3323 = vadd.f32 %v2938, %v3322
    %v3324 = vpop.f32.mrb[0].mxu0
    %3325 = vmatprep.mubr.f32.mxu0 %v1618
    %3326 = vmatmul.mubr.f32.gmra.mrb[0].mxu0 %v1554
    %v3327 = vpop.f32.mrb[0].mxu0
    %v3328 = vadd.f32 %v2943, %v3327
    %v3329 = vpop.f32.mrb[0].mxu0
    %3330 = vmatprep.mubr.f32.mxu0 %v1619
    %3331 = vmatmul.mubr.f32.gmra.mrb[0].mxu0 %v1555
    %v3332 = vpop.f32.mrb[0].mxu0
    %v3333 = vadd.f32 %v2948, %v3332
    %v3334 = vpop.f32.mrb[0].mxu0
    %3335 = vmatprep.mubr.f32.mxu0 %v1620
    %3336 = vmatmul.mubr.f32.gmra.mrb[0].mxu0 %v1556
    %v3337 = vpop.f32.mrb[0].mxu0
    %v3338 = vadd.f32 %v2953, %v3337
    %v3339 = vpop.f32.mrb[0].mxu0
    %3340 = vmatprep.mubr.f32.mxu0 %v1621
    %3341 = vmatmul.mubr.f32.gmra.mrb[0].mxu0 %v1557
    %v3342 = vpop.f32.mrb[0].mxu0
    %v3343 = vadd.f32 %v2958, %v3342
    %v3344 = vpop.f32.mrb[0].mxu0
    %3345 = vmatprep.mubr.f32.mxu0 %v1622
    %3346 = vmatmul.mubr.f32.gmra.mrb[0].mxu0 %v1558
    %v3347 = vpop.f32.mrb[0].mxu0
    %v3348 = vadd.f32 %v2963, %v3347
    %v3349 = vpop.f32.mrb[0].mxu0
    %3350 = vmatprep.mubr.f32.mxu0 %v1623
    %3351 = vmatmul.mubr.f32.gmra.mrb[0].mxu0 %v1559
    %v3352 = vpop.f32.mrb[0].mxu0
    %v3353 = vadd.f32 %v2968, %v3352
    %v3354 = vpop.f32.mrb[0].mxu0
    %3355 = vmatprep.mubr.f32.mxu0 %v1624
    %3356 = vmatmul.mubr.f32.gmra.mrb[0].mxu0 %v1560
    %v3357 = vpop.f32.mrb[0].mxu0
    %v3358 = vadd.f32 %v2973, %v3357
    %v3359 = vpop.f32.mrb[0].mxu0
    %3360 = vmatprep.mubr.f32.mxu0 %v1625
    %3361 = vmatmul.mubr.f32.gmra.mrb[0].mxu0 %v1561
    %v3362 = vpop.f32.mrb[0].mxu0
    %v3363 = vadd.f32 %v2978, %v3362
    %v3364 = vpop.f32.mrb[0].mxu0
    %3365 = vmatprep.mubr.f32.mxu0 %v1626
    %3366 = vmatmul.mubr.f32.gmra.mrb[0].mxu0 %v1562
    %v3367 = vpop.f32.mrb[0].mxu0
    %v3368 = vadd.f32 %v2983, %v3367
    %v3369 = vpop.f32.mrb[0].mxu0
    %3370 = vmatprep.mubr.f32.mxu0 %v1627
    %3371 = vmatmul.mubr.f32.gmra.mrb[0].mxu0 %v1563
    %v3372 = vpop.f32.mrb[0].mxu0
    %v3373 = vadd.f32 %v2988, %v3372
    %v3374 = vpop.f32.mrb[0].mxu0
    %3375 = vdwg.mxu0
    %3376 = vmatprep.subr.mxu0 0.0
    %3377 = vmatpush1.msra.mxu0 %v1820
    %3378 = vmatprep.subr.mxu0 0.0
    %3379 = vmatpush1.msra.mxu0 %v1821
    %3380 = vmatprep.subr.mxu0 0.0
    %3381 = vmatpush1.msra.mxu0 %v1822
    %3382 = vmatprep.subr.mxu0 0.0
    %3383 = vmatpush1.msra.mxu0 %v1823
    %3384 = vmatprep.subr.mxu0 0.0
    %3385 = vmatpush1.msra.mxu0 %v1824
    %3386 = vmatprep.subr.mxu0 0.0
    %3387 = vmatpush1.msra.mxu0 %v1825
    %3388 = vmatprep.subr.mxu0 0.0
    %3389 = vmatpush1.msra.mxu0 %v1826
    %3390 = vmatprep.subr.mxu0 0.0
    %3391 = vmatpush1.msra.mxu0 %v1827
    %3392 = vmatprep.subr.mxu0 0.0
    %3393 = vmatpush1.msra.mxu0 %v1828
    %3394 = vmatprep.subr.mxu0 0.0
    %3395 = vmatpush1.msra.mxu0 %v1829
    %3396 = vmatprep.subr.mxu0 0.0
    %3397 = vmatpush1.msra.mxu0 %v1830
    %3398 = vmatprep.subr.mxu0 0.0
    %3399 = vmatpush1.msra.mxu0 %v1831
    %3400 = vmatprep.subr.mxu0 0.0
    %3401 = vmatpush1.msra.mxu0 %v1832
    %3402 = vmatprep.subr.mxu0 0.0
    %3403 = vmatpush1.msra.mxu0 %v1833
    %3404 = vmatprep.subr.mxu0 0.0
    %3405 = vmatpush1.msra.mxu0 %v1834
    %3406 = vmatprep.subr.mxu0 0.0
    %3407 = vmatpush1.msra.mxu0 %v1835
    %3408 = vmatprep.subr.mxu0 0.0
    %3409 = vmatpush1.msra.mxu0 0.0
    %3410 = vmatprep.subr.mxu0 0.0
    %3411 = vmatpush1.msra.mxu0 0.0
    %3412 = vmatprep.subr.mxu0 0.0
    %3413 = vmatpush1.msra.mxu0 0.0
    %3414 = vmatprep.subr.mxu0 0.0
    %3415 = vmatpush1.msra.mxu0 0.0
    %3416 = vmatprep.subr.mxu0 0.0
    %3417 = vmatpush1.msra.mxu0 0.0
    %3418 = vmatprep.subr.mxu0 0.0
    %3419 = vmatpush1.msra.mxu0 0.0
    %3420 = vmatprep.subr.mxu0 0.0
    %3421 = vmatpush1.msra.mxu0 0.0
    %3422 = vmatprep.subr.mxu0 0.0
    %3423 = vmatpush1.msra.mxu0 0.0
    %3424 = vmatprep.subr.mxu0 0.0
    %3425 = vmatpush1.msra.mxu0 0.0
    %3426 = vmatprep.subr.mxu0 0.0
    %3427 = vmatpush1.msra.mxu0 0.0
    %3428 = vmatprep.subr.mxu0 0.0
    %3429 = vmatpush1.msra.mxu0 0.0
    %3430 = vmatprep.subr.mxu0 0.0
    %3431 = vmatpush1.msra.mxu0 0.0
    %3432 = vmatprep.subr.mxu0 0.0
    %3433 = vmatpush1.msra.mxu0 0.0
    %3434 = vmatprep.subr.mxu0 0.0
    %3435 = vmatpush1.msra.mxu0 0.0
    %3436 = vmatprep.subr.mxu0 0.0
    %3437 = vmatpush1.msra.mxu0 0.0
    %3438 = vmatprep.subr.mxu0 0.0
    %3439 = vmatpush1.msra.mxu0 0.0
    %3440 = vmatprep.mubr.f32.mxu0 0.0
    %3441 = vmatmul.mubr.f32.gmra.mrb[0].mxu0 %v1628
    %v3442 = vpop.f32.mrb[0].mxu0
    %v3443 = vadd.f32 %v3058, %v3442
    %v3444 = vpop.f32.mrb[0].mxu0
    %3445 = vmatprep.mubr.f32.mxu0 0.0
    %3446 = vmatmul.mubr.f32.gmra.mrb[0].mxu0 %v1629
    %v3447 = vpop.f32.mrb[0].mxu0
    %v3448 = vadd.f32 %v3063, %v3447
    %v3449 = vpop.f32.mrb[0].mxu0
    %3450 = vmatprep.mubr.f32.mxu0 0.0
    %3451 = vmatmul.mubr.f32.gmra.mrb[0].mxu0 %v1630
    %v3452 = vpop.f32.mrb[0].mxu0
    %v3453 = vadd.f32 %v3068, %v3452
    %v3454 = vpop.f32.mrb[0].mxu0
    %3455 = vmatprep.mubr.f32.mxu0 0.0
    %3456 = vmatmul.mubr.f32.gmra.mrb[0].mxu0 %v1631
    %v3457 = vpop.f32.mrb[0].mxu0
    %v3458 = vadd.f32 %v3073, %v3457
    %v3459 = vpop.f32.mrb[0].mxu0
    %3460 = vmatprep.mubr.f32.mxu0 0.0
    %3461 = vmatmul.mubr.f32.gmra.mrb[0].mxu0 %v1632
    %v3462 = vpop.f32.mrb[0].mxu0
    %v3463 = vadd.f32 %v3078, %v3462
    %v3464 = vpop.f32.mrb[0].mxu0
    %3465 = vmatprep.mubr.f32.mxu0 0.0
    %3466 = vmatmul.mubr.f32.gmra.mrb[0].mxu0 %v1633
    %v3467 = vpop.f32.mrb[0].mxu0
    %v3468 = vadd.f32 %v3083, %v3467
    %v3469 = vpop.f32.mrb[0].mxu0
    %3470 = vmatprep.mubr.f32.mxu0 0.0
    %3471 = vmatmul.mubr.f32.gmra.mrb[0].mxu0 %v1634
    %v3472 = vpop.f32.mrb[0].mxu0
    %v3473 = vadd.f32 %v3088, %v3472
    %v3474 = vpop.f32.mrb[0].mxu0
    %3475 = vmatprep.mubr.f32.mxu0 0.0
    %3476 = vmatmul.mubr.f32.gmra.mrb[0].mxu0 %v1635
    %v3477 = vpop.f32.mrb[0].mxu0
    %v3478 = vadd.f32 %v3093, %v3477
    %v3479 = vpop.f32.mrb[0].mxu0
    %3480 = vmatprep.mubr.f32.mxu0 0.0
    %3481 = vmatmul.mubr.f32.gmra.mrb[0].mxu0 %v1636
    %v3482 = vpop.f32.mrb[0].mxu0
    %v3483 = vadd.f32 %v3098, %v3482
    %v3484 = vpop.f32.mrb[0].mxu0
    %3485 = vmatprep.mubr.f32.mxu0 0.0
    %3486 = vmatmul.mubr.f32.gmra.mrb[0].mxu0 %v1637
    %v3487 = vpop.f32.mrb[0].mxu0
    %v3488 = vadd.f32 %v3103, %v3487
    %v3489 = vpop.f32.mrb[0].mxu0
    %3490 = vmatprep.mubr.f32.mxu0 0.0
    %3491 = vmatmul.mubr.f32.gmra.mrb[0].mxu0 %v1638
    %v3492 = vpop.f32.mrb[0].mxu0
    %v3493 = vadd.f32 %v3108, %v3492
    %v3494 = vpop.f32.mrb[0].mxu0
    %3495 = vmatprep.mubr.f32.mxu0 0.0
    %3496 = vmatmul.mubr.f32.gmra.mrb[0].mxu0 %v1639
    %v3497 = vpop.f32.mrb[0].mxu0
    %v3498 = vadd.f32 %v3113, %v3497
    %v3499 = vpop.f32.mrb[0].mxu0
    %3500 = vmatprep.mubr.f32.mxu0 0.0
    %3501 = vmatmul.mubr.f32.gmra.mrb[0].mxu0 %v1640
    %v3502 = vpop.f32.mrb[0].mxu0
    %v3503 = vadd.f32 %v3118, %v3502
    %v3504 = vpop.f32.mrb[0].mxu0
    %3505 = vmatprep.mubr.f32.mxu0 0.0
    %3506 = vmatmul.mubr.f32.gmra.mrb[0].mxu0 %v1641
    %v3507 = vpop.f32.mrb[0].mxu0
    %v3508 = vadd.f32 %v3123, %v3507
    %v3509 = vpop.f32.mrb[0].mxu0
    %3510 = vmatprep.mubr.f32.mxu0 0.0
    %3511 = vmatmul.mubr.f32.gmra.mrb[0].mxu0 %v1642
    %v3512 = vpop.f32.mrb[0].mxu0
    %v3513 = vadd.f32 %v3128, %v3512
    %v3514 = vpop.f32.mrb[0].mxu0
    %3515 = vmatprep.mubr.f32.mxu0 0.0
    %3516 = vmatmul.mubr.f32.gmra.mrb[0].mxu0 %v1643
    %v3517 = vpop.f32.mrb[0].mxu0
    %v3518 = vadd.f32 %v3133, %v3517
    %v3519 = vpop.f32.mrb[0].mxu0
    %3520 = vmatprep.mubr.f32.mxu0 0.0
    %3521 = vmatmul.mubr.f32.gmra.mrb[0].mxu0 %v1644
    %v3522 = vpop.f32.mrb[0].mxu0
    %v3523 = vadd.f32 %v3138, %v3522
    %v3524 = vpop.f32.mrb[0].mxu0
    %3525 = vmatprep.mubr.f32.mxu0 0.0
    %3526 = vmatmul.mubr.f32.gmra.mrb[0].mxu0 %v1645
    %v3527 = vpop.f32.mrb[0].mxu0
    %v3528 = vadd.f32 %v3143, %v3527
    %v3529 = vpop.f32.mrb[0].mxu0
    %3530 = vmatprep.mubr.f32.mxu0 0.0
    %3531 = vmatmul.mubr.f32.gmra.mrb[0].mxu0 %v1646
    %v3532 = vpop.f32.mrb[0].mxu0
    %v3533 = vadd.f32 %v3148, %v3532
    %v3534 = vpop.f32.mrb[0].mxu0
    %3535 = vmatprep.mubr.f32.mxu0 0.0
    %3536 = vmatmul.mubr.f32.gmra.mrb[0].mxu0 %v1647
    %v3537 = vpop.f32.mrb[0].mxu0
    %v3538 = vadd.f32 %v3153, %v3537
    %v3539 = vpop.f32.mrb[0].mxu0
    %3540 = vmatprep.mubr.f32.mxu0 0.0
    %3541 = vmatmul.mubr.f32.gmra.mrb[0].mxu0 %v1648
    %v3542 = vpop.f32.mrb[0].mxu0
    %v3543 = vadd.f32 %v3158, %v3542
    %v3544 = vpop.f32.mrb[0].mxu0
    %3545 = vmatprep.mubr.f32.mxu0 0.0
    %3546 = vmatmul.mubr.f32.gmra.mrb[0].mxu0 %v1649
    %v3547 = vpop.f32.mrb[0].mxu0
    %v3548 = vadd.f32 %v3163, %v3547
    %v3549 = vpop.f32.mrb[0].mxu0
    %3550 = vmatprep.mubr.f32.mxu0 0.0
    %3551 = vmatmul.mubr.f32.gmra.mrb[0].mxu0 %v1650
    %v3552 = vpop.f32.mrb[0].mxu0
    %v3553 = vadd.f32 %v3168, %v3552
    %v3554 = vpop.f32.mrb[0].mxu0
    %3555 = vmatprep.mubr.f32.mxu0 0.0
    %3556 = vmatmul.mubr.f32.gmra.mrb[0].mxu0 %v1651
    %v3557 = vpop.f32.mrb[0].mxu0
    %v3558 = vadd.f32 %v3173, %v3557
    %v3559 = vpop.f32.mrb[0].mxu0
    %3560 = vmatprep.mubr.f32.mxu0 0.0
    %3561 = vmatmul.mubr.f32.gmra.mrb[0].mxu0 %v1652
    %v3562 = vpop.f32.mrb[0].mxu0
    %v3563 = vadd.f32 %v3178, %v3562
    %v3564 = vpop.f32.mrb[0].mxu0
    %3565 = vmatprep.mubr.f32.mxu0 0.0
    %3566 = vmatmul.mubr.f32.gmra.mrb[0].mxu0 %v1653
    %v3567 = vpop.f32.mrb[0].mxu0
    %v3568 = vadd.f32 %v3183, %v3567
    %v3569 = vpop.f32.mrb[0].mxu0
    %3570 = vmatprep.mubr.f32.mxu0 0.0
    %3571 = vmatmul.mubr.f32.gmra.mrb[0].mxu0 %v1654
    %v3572 = vpop.f32.mrb[0].mxu0
    %v3573 = vadd.f32 %v3188, %v3572
    %v3574 = vpop.f32.mrb[0].mxu0
    %3575 = vmatprep.mubr.f32.mxu0 0.0
    %3576 = vmatmul.mubr.f32.gmra.mrb[0].mxu0 %v1655
    %v3577 = vpop.f32.mrb[0].mxu0
    %v3578 = vadd.f32 %v3193, %v3577
    %v3579 = vpop.f32.mrb[0].mxu0
    %3580 = vmatprep.mubr.f32.mxu0 0.0
    %3581 = vmatmul.mubr.f32.gmra.mrb[0].mxu0 %v1656
    %v3582 = vpop.f32.mrb[0].mxu0
    %v3583 = vadd.f32 %v3198, %v3582
    %v3584 = vpop.f32.mrb[0].mxu0
    %3585 = vmatprep.mubr.f32.mxu0 0.0
    %3586 = vmatmul.mubr.f32.gmra.mrb[0].mxu0 %v1657
    %v3587 = vpop.f32.mrb[0].mxu0
    %v3588 = vadd.f32 %v3203, %v3587
    %v3589 = vpop.f32.mrb[0].mxu0
    %3590 = vmatprep.mubr.f32.mxu0 0.0
    %3591 = vmatmul.mubr.f32.gmra.mrb[0].mxu0 %v1658
    %v3592 = vpop.f32.mrb[0].mxu0
    %v3593 = vadd.f32 %v3208, %v3592
    %v3594 = vpop.f32.mrb[0].mxu0
    %3595 = vmatprep.mubr.f32.mxu0 0.0
    %3596 = vmatmul.mubr.f32.gmra.mrb[0].mxu0 %v1659
    %v3597 = vpop.f32.mrb[0].mxu0
    %v3598 = vadd.f32 %v3213, %v3597
    %v3599 = vpop.f32.mrb[0].mxu0
    %3600 = vmatprep.mubr.f32.mxu0 0.0
    %3601 = vmatmul.mubr.f32.gmra.mrb[0].mxu0 %v1660
    %v3602 = vpop.f32.mrb[0].mxu0
    %v3603 = vadd.f32 %v3218, %v3602
    %v3604 = vpop.f32.mrb[0].mxu0
    %3605 = vmatprep.mubr.f32.mxu0 0.0
    %3606 = vmatmul.mubr.f32.gmra.mrb[0].mxu0 %v1661
    %v3607 = vpop.f32.mrb[0].mxu0
    %v3608 = vadd.f32 %v3223, %v3607
    %v3609 = vpop.f32.mrb[0].mxu0
    %3610 = vmatprep.mubr.f32.mxu0 0.0
    %3611 = vmatmul.mubr.f32.gmra.mrb[0].mxu0 %v1662
    %v3612 = vpop.f32.mrb[0].mxu0
    %v3613 = vadd.f32 %v3228, %v3612
    %v3614 = vpop.f32.mrb[0].mxu0
    %3615 = vmatprep.mubr.f32.mxu0 0.0
    %3616 = vmatmul.mubr.f32.gmra.mrb[0].mxu0 %v1663
    %v3617 = vpop.f32.mrb[0].mxu0
    %v3618 = vadd.f32 %v3233, %v3617
    %v3619 = vpop.f32.mrb[0].mxu0
    %3620 = vmatprep.mubr.f32.mxu0 0.0
    %3621 = vmatmul.mubr.f32.gmra.mrb[0].mxu0 %v1664
    %v3622 = vpop.f32.mrb[0].mxu0
    %v3623 = vadd.f32 %v3238, %v3622
    %v3624 = vpop.f32.mrb[0].mxu0
    %3625 = vmatprep.mubr.f32.mxu0 0.0
    %3626 = vmatmul.mubr.f32.gmra.mrb[0].mxu0 %v1665
    %v3627 = vpop.f32.mrb[0].mxu0
    %v3628 = vadd.f32 %v3243, %v3627
    %v3629 = vpop.f32.mrb[0].mxu0
    %3630 = vmatprep.mubr.f32.mxu0 0.0
    %3631 = vmatmul.mubr.f32.gmra.mrb[0].mxu0 %v1666
    %v3632 = vpop.f32.mrb[0].mxu0
    %v3633 = vadd.f32 %v3248, %v3632
    %v3634 = vpop.f32.mrb[0].mxu0
    %3635 = vmatprep.mubr.f32.mxu0 0.0
    %3636 = vmatmul.mubr.f32.gmra.mrb[0].mxu0 %v1667
    %v3637 = vpop.f32.mrb[0].mxu0
    %v3638 = vadd.f32 %v3253, %v3637
    %v3639 = vpop.f32.mrb[0].mxu0
    %3640 = vmatprep.mubr.f32.mxu0 0.0
    %3641 = vmatmul.mubr.f32.gmra.mrb[0].mxu0 %v1668
    %v3642 = vpop.f32.mrb[0].mxu0
    %v3643 = vadd.f32 %v3258, %v3642
    %v3644 = vpop.f32.mrb[0].mxu0
    %3645 = vmatprep.mubr.f32.mxu0 0.0
    %3646 = vmatmul.mubr.f32.gmra.mrb[0].mxu0 %v1669
    %v3647 = vpop.f32.mrb[0].mxu0
    %v3648 = vadd.f32 %v3263, %v3647
    %v3649 = vpop.f32.mrb[0].mxu0
    %3650 = vmatprep.mubr.f32.mxu0 0.0
    %3651 = vmatmul.mubr.f32.gmra.mrb[0].mxu0 %v1670
    %v3652 = vpop.f32.mrb[0].mxu0
    %v3653 = vadd.f32 %v3268, %v3652
    %v3654 = vpop.f32.mrb[0].mxu0
    %3655 = vmatprep.mubr.f32.mxu0 0.0
    %3656 = vmatmul.mubr.f32.gmra.mrb[0].mxu0 %v1671
    %v3657 = vpop.f32.mrb[0].mxu0
    %v3658 = vadd.f32 %v3273, %v3657
    %v3659 = vpop.f32.mrb[0].mxu0
    %3660 = vmatprep.mubr.f32.mxu0 0.0
    %3661 = vmatmul.mubr.f32.gmra.mrb[0].mxu0 %v1672
    %v3662 = vpop.f32.mrb[0].mxu0
    %v3663 = vadd.f32 %v3278, %v3662
    %v3664 = vpop.f32.mrb[0].mxu0
    %3665 = vmatprep.mubr.f32.mxu0 0.0
    %3666 = vmatmul.mubr.f32.gmra.mrb[0].mxu0 %v1673
    %v3667 = vpop.f32.mrb[0].mxu0
    %v3668 = vadd.f32 %v3283, %v3667
    %v3669 = vpop.f32.mrb[0].mxu0
    %3670 = vmatprep.mubr.f32.mxu0 0.0
    %3671 = vmatmul.mubr.f32.gmra.mrb[0].mxu0 %v1674
    %v3672 = vpop.f32.mrb[0].mxu0
    %v3673 = vadd.f32 %v3288, %v3672
    %v3674 = vpop.f32.mrb[0].mxu0
    %3675 = vmatprep.mubr.f32.mxu0 0.0
    %3676 = vmatmul.mubr.f32.gmra.mrb[0].mxu0 %v1675
    %v3677 = vpop.f32.mrb[0].mxu0
    %v3678 = vadd.f32 %v3293, %v3677
    %v3679 = vpop.f32.mrb[0].mxu0
    %3680 = vmatprep.mubr.f32.mxu0 0.0
    %3681 = vmatmul.mubr.f32.gmra.mrb[0].mxu0 %v1676
    %v3682 = vpop.f32.mrb[0].mxu0
    %v3683 = vadd.f32 %v3298, %v3682
    %v3684 = vpop.f32.mrb[0].mxu0
    %3685 = vmatprep.mubr.f32.mxu0 0.0
    %3686 = vmatmul.mubr.f32.gmra.mrb[0].mxu0 %v1677
    %v3687 = vpop.f32.mrb[0].mxu0
    %v3688 = vadd.f32 %v3303, %v3687
    %v3689 = vpop.f32.mrb[0].mxu0
    %3690 = vmatprep.mubr.f32.mxu0 0.0
    %3691 = vmatmul.mubr.f32.gmra.mrb[0].mxu0 %v1678
    %v3692 = vpop.f32.mrb[0].mxu0
    %v3693 = vadd.f32 %v3308, %v3692
    %v3694 = vpop.f32.mrb[0].mxu0
    %3695 = vmatprep.mubr.f32.mxu0 0.0
    %3696 = vmatmul.mubr.f32.gmra.mrb[0].mxu0 %v1679
    %v3697 = vpop.f32.mrb[0].mxu0
    %v3698 = vadd.f32 %v3313, %v3697
    %v3699 = vpop.f32.mrb[0].mxu0
    %3700 = vmatprep.mubr.f32.mxu0 0.0
    %3701 = vmatmul.mubr.f32.gmra.mrb[0].mxu0 %v1680
    %v3702 = vpop.f32.mrb[0].mxu0
    %v3703 = vadd.f32 %v3318, %v3702
    %v3704 = vpop.f32.mrb[0].mxu0
    %3705 = vmatprep.mubr.f32.mxu0 0.0
    %3706 = vmatmul.mubr.f32.gmra.mrb[0].mxu0 %v1681
    %v3707 = vpop.f32.mrb[0].mxu0
    %v3708 = vadd.f32 %v3323, %v3707
    %v3709 = vpop.f32.mrb[0].mxu0
    %3710 = vmatprep.mubr.f32.mxu0 0.0
    %3711 = vmatmul.mubr.f32.gmra.mrb[0].mxu0 %v1682
    %v3712 = vpop.f32.mrb[0].mxu0
    %v3713 = vadd.f32 %v3328, %v3712
    %v3714 = vpop.f32.mrb[0].mxu0
    %3715 = vmatprep.mubr.f32.mxu0 0.0
    %3716 = vmatmul.mubr.f32.gmra.mrb[0].mxu0 %v1683
    %v3717 = vpop.f32.mrb[0].mxu0
    %v3718 = vadd.f32 %v3333, %v3717
    %v3719 = vpop.f32.mrb[0].mxu0
    %3720 = vmatprep.mubr.f32.mxu0 0.0
    %3721 = vmatmul.mubr.f32.gmra.mrb[0].mxu0 %v1684
    %v3722 = vpop.f32.mrb[0].mxu0
    %v3723 = vadd.f32 %v3338, %v3722
    %v3724 = vpop.f32.mrb[0].mxu0
    %3725 = vmatprep.mubr.f32.mxu0 0.0
    %3726 = vmatmul.mubr.f32.gmra.mrb[0].mxu0 %v1685
    %v3727 = vpop.f32.mrb[0].mxu0
    %v3728 = vadd.f32 %v3343, %v3727
    %v3729 = vpop.f32.mrb[0].mxu0
    %3730 = vmatprep.mubr.f32.mxu0 0.0
    %3731 = vmatmul.mubr.f32.gmra.mrb[0].mxu0 %v1686
    %v3732 = vpop.f32.mrb[0].mxu0
    %v3733 = vadd.f32 %v3348, %v3732
    %v3734 = vpop.f32.mrb[0].mxu0
    %3735 = vmatprep.mubr.f32.mxu0 0.0
    %3736 = vmatmul.mubr.f32.gmra.mrb[0].mxu0 %v1687
    %v3737 = vpop.f32.mrb[0].mxu0
    %v3738 = vadd.f32 %v3353, %v3737
    %v3739 = vpop.f32.mrb[0].mxu0
    %3740 = vmatprep.mubr.f32.mxu0 0.0
    %3741 = vmatmul.mubr.f32.gmra.mrb[0].mxu0 %v1688
    %v3742 = vpop.f32.mrb[0].mxu0
    %v3743 = vadd.f32 %v3358, %v3742
    %v3744 = vpop.f32.mrb[0].mxu0
    %3745 = vmatprep.mubr.f32.mxu0 0.0
    %3746 = vmatmul.mubr.f32.gmra.mrb[0].mxu0 %v1689
    %v3747 = vpop.f32.mrb[0].mxu0
    %v3748 = vadd.f32 %v3363, %v3747
    %v3749 = vpop.f32.mrb[0].mxu0
    %3750 = vmatprep.mubr.f32.mxu0 0.0
    %3751 = vmatmul.mubr.f32.gmra.mrb[0].mxu0 %v1690
    %v3752 = vpop.f32.mrb[0].mxu0
    %v3753 = vadd.f32 %v3368, %v3752
    %v3754 = vpop.f32.mrb[0].mxu0
    %3755 = vmatprep.mubr.f32.mxu0 0.0
    %3756 = vmatmul.mubr.f32.gmra.mrb[0].mxu0 %v1691
    %v3757 = vpop.f32.mrb[0].mxu0
    %v3758 = vadd.f32 %v3373, %v3757
    %v3759 = vpop.f32.mrb[0].mxu0
    %3760 = vdwg.mxu0
    %v3761 = vld [vmem:[%s5] sm:$0x1]
    %v3762 = vld [vmem:[%s6] sm:$0x1]
    %v3763 = vadd.f32 %v3443, %v3448
    %v3764 = vadd.f32 %v3763, %v3453
    %v3765 = vadd.f32 %v3764, %v3458
    %v3766 = vadd.f32 %v3765, %v3463
    %v3767 = vadd.f32 %v3766, %v3468
    %v3768 = vadd.f32 %v3767, %v3473
    %v3769 = vadd.f32 %v3768, %v3478
    %v3770 = vadd.f32 %v3769, %v3483
    %v3771 = vadd.f32 %v3770, %v3488
    %v3772 = vadd.f32 %v3771, %v3493
    %v3773 = vadd.f32 %v3772, %v3498
    %v3774 = vadd.f32 %v3773, %v3503
    %v3775 = vadd.f32 %v3774, %v3508
    %v3776 = vadd.f32 %v3775, %v3513
    %v3777 = vadd.f32 %v3776, %v3518
    %v3778 = vadd.f32 %v3777, %v3523
    %v3779 = vadd.f32 %v3778, %v3528
    %v3780 = vadd.f32 %v3779, %v3533
    %v3781 = vadd.f32 %v3780, %v3538
    %v3782 = vadd.f32 %v3781, %v3543
    %v3783 = vadd.f32 %v3782, %v3548
    %v3784 = vadd.f32 %v3783, %v3553
    %v3785 = vadd.f32 %v3784, %v3558
    %v3786 = vadd.f32 %v3785, %v3563
    %v3787 = vadd.f32 %v3786, %v3568
    %v3788 = vadd.f32 %v3787, %v3573
    %v3789 = vadd.f32 %v3788, %v3578
    %v3790 = vadd.f32 %v3789, %v3583
    %v3791 = vadd.f32 %v3790, %v3588
    %v3792 = vadd.f32 %v3791, %v3593
    %v3793 = vadd.f32 %v3792, %v3598
    %v3794 = vadd.f32 %v3793, %v3603
    %v3795 = vadd.f32 %v3794, %v3608
    %v3796 = vadd.f32 %v3795, %v3613
    %v3797 = vadd.f32 %v3796, %v3618
    %v3798 = vadd.f32 %v3797, %v3623
    %v3799 = vadd.f32 %v3798, %v3628
    %v3800 = vadd.f32 %v3799, %v3633
    %v3801 = vadd.f32 %v3800, %v3638
    %v3802 = vadd.f32 %v3801, %v3643
    %v3803 = vadd.f32 %v3802, %v3648
    %v3804 = vadd.f32 %v3803, %v3653
    %v3805 = vadd.f32 %v3804, %v3658
    %v3806 = vadd.f32 %v3805, %v3663
    %v3807 = vadd.f32 %v3806, %v3668
    %v3808 = vadd.f32 %v3807, %v3673
    %v3809 = vadd.f32 %v3808, %v3678
    %v3810 = vadd.f32 %v3809, %v3683
    %v3811 = vadd.f32 %v3810, %v3688
    %v3812 = vadd.f32 %v3811, %v3693
    %v3813 = vadd.f32 %v3812, %v3698
    %v3814 = vadd.f32 %v3813, %v3703
    %v3815 = vadd.f32 %v3814, %v3708
    %v3816 = vadd.f32 %v3815, %v3713
    %v3817 = vadd.f32 %v3816, %v3718
    %v3818 = vadd.f32 %v3817, %v3723
    %v3819 = vadd.f32 %v3818, %v3728
    %v3820 = vadd.f32 %v3819, %v3733
    %v3821 = vadd.f32 %v3820, %v3738
    %v3822 = vadd.f32 %v3821, %v3743
    %v3823 = vadd.f32 %v3822, %v3748
    %v3824 = vadd.f32 %v3823, %v3753
    %v3825 = vadd.f32 %v3824, %v3758
    %v3826 = vrot.slane %v3825, 4
    %v3827 = vadd.f32 %v3825, %v3826
    %v3828 = vrot.slane %v3827, 2
    %v3829 = vadd.f32 %v3827, %v3828
    %v3830 = vrot.slane %v3829, 1
    %v3831 = vadd.f32 %v3829, %v3830
    %v3832 = vmul.f32 %v3443, %v3443
    %v3833 = vmul.f32 %v3448, %v3448
    %v3834 = vmul.f32 %v3453, %v3453
    %v3835 = vmul.f32 %v3458, %v3458
    %v3836 = vmul.f32 %v3463, %v3463
    %v3837 = vmul.f32 %v3468, %v3468
    %v3838 = vmul.f32 %v3473, %v3473
    %v3839 = vmul.f32 %v3478, %v3478
    %v3840 = vmul.f32 %v3483, %v3483
    %v3841 = vmul.f32 %v3488, %v3488
    %v3842 = vmul.f32 %v3493, %v3493
    %v3843 = vmul.f32 %v3498, %v3498
    %v3844 = vmul.f32 %v3503, %v3503
    %v3845 = vmul.f32 %v3508, %v3508
    %v3846 = vmul.f32 %v3513, %v3513
    %v3847 = vmul.f32 %v3518, %v3518
    %v3848 = vmul.f32 %v3523, %v3523
    %v3849 = vmul.f32 %v3528, %v3528
    %v3850 = vmul.f32 %v3533, %v3533
    %v3851 = vmul.f32 %v3538, %v3538
    %v3852 = vmul.f32 %v3543, %v3543
    %v3853 = vmul.f32 %v3548, %v3548
    %v3854 = vmul.f32 %v3553, %v3553
    %v3855 = vmul.f32 %v3558, %v3558
    %v3856 = vmul.f32 %v3563, %v3563
    %v3857 = vmul.f32 %v3568, %v3568
    %v3858 = vmul.f32 %v3573, %v3573
    %v3859 = vmul.f32 %v3578, %v3578
    %v3860 = vmul.f32 %v3583, %v3583
    %v3861 = vmul.f32 %v3588, %v3588
    %v3862 = vmul.f32 %v3593, %v3593
    %v3863 = vmul.f32 %v3598, %v3598
    %v3864 = vmul.f32 %v3603, %v3603
    %v3865 = vmul.f32 %v3608, %v3608
    %v3866 = vmul.f32 %v3613, %v3613
    %v3867 = vmul.f32 %v3618, %v3618
    %v3868 = vmul.f32 %v3623, %v3623
    %v3869 = vmul.f32 %v3628, %v3628
    %v3870 = vmul.f32 %v3633, %v3633
    %v3871 = vmul.f32 %v3638, %v3638
    %v3872 = vmul.f32 %v3643, %v3643
    %v3873 = vmul.f32 %v3648, %v3648
    %v3874 = vmul.f32 %v3653, %v3653
    %v3875 = vmul.f32 %v3658, %v3658
    %v3876 = vmul.f32 %v3663, %v3663
    %v3877 = vmul.f32 %v3668, %v3668
    %v3878 = vmul.f32 %v3673, %v3673
    %v3879 = vmul.f32 %v3678, %v3678
    %v3880 = vmul.f32 %v3683, %v3683
    %v3881 = vmul.f32 %v3688, %v3688
    %v3882 = vmul.f32 %v3693, %v3693
    %v3883 = vmul.f32 %v3698, %v3698
    %v3884 = vmul.f32 %v3703, %v3703
    %v3885 = vmul.f32 %v3708, %v3708
    %v3886 = vmul.f32 %v3713, %v3713
    %v3887 = vmul.f32 %v3718, %v3718
    %v3888 = vmul.f32 %v3723, %v3723
    %v3889 = vmul.f32 %v3728, %v3728
    %v3890 = vmul.f32 %v3733, %v3733
    %v3891 = vmul.f32 %v3738, %v3738
    %v3892 = vmul.f32 %v3743, %v3743
    %v3893 = vmul.f32 %v3748, %v3748
    %v3894 = vmul.f32 %v3753, %v3753
    %v3895 = vmul.f32 %v3758, %v3758
    %v3896 = vadd.f32 %v3832, %v3833
    %v3897 = vadd.f32 %v3896, %v3834
    %v3898 = vadd.f32 %v3897, %v3835
    %v3899 = vadd.f32 %v3898, %v3836
    %v3900 = vadd.f32 %v3899, %v3837
    %v3901 = vadd.f32 %v3900, %v3838
    %v3902 = vadd.f32 %v3901, %v3839
    %v3903 = vadd.f32 %v3902, %v3840
    %v3904 = vadd.f32 %v3903, %v3841
    %v3905 = vadd.f32 %v3904, %v3842
    %v3906 = vadd.f32 %v3905, %v3843
    %v3907 = vadd.f32 %v3906, %v3844
    %v3908 = vadd.f32 %v3907, %v3845
    %v3909 = vadd.f32 %v3908, %v3846
    %v3910 = vadd.f32 %v3909, %v3847
    %v3911 = vadd.f32 %v3910, %v3848
    %v3912 = vadd.f32 %v3911, %v3849
    %v3913 = vadd.f32 %v3912, %v3850
    %v3914 = vadd.f32 %v3913, %v3851
    %v3915 = vadd.f32 %v3914, %v3852
    %v3916 = vadd.f32 %v3915, %v3853
    %v3917 = vadd.f32 %v3916, %v3854
    %v3918 = vadd.f32 %v3917, %v3855
    %v3919 = vadd.f32 %v3918, %v3856
    %v3920 = vadd.f32 %v3919, %v3857
    %v3921 = vadd.f32 %v3920, %v3858
    %v3922 = vadd.f32 %v3921, %v3859
    %v3923 = vadd.f32 %v3922, %v3860
    %v3924 = vadd.f32 %v3923, %v3861
    %v3925 = vadd.f32 %v3924, %v3862
    %v3926 = vadd.f32 %v3925, %v3863
    %v3927 = vadd.f32 %v3926, %v3864
    %v3928 = vadd.f32 %v3927, %v3865
    %v3929 = vadd.f32 %v3928, %v3866
    %v3930 = vadd.f32 %v3929, %v3867
    %v3931 = vadd.f32 %v3930, %v3868
    %v3932 = vadd.f32 %v3931, %v3869
    %v3933 = vadd.f32 %v3932, %v3870
    %v3934 = vadd.f32 %v3933, %v3871
    %v3935 = vadd.f32 %v3934, %v3872
    %v3936 = vadd.f32 %v3935, %v3873
    %v3937 = vadd.f32 %v3936, %v3874
    %v3938 = vadd.f32 %v3937, %v3875
    %v3939 = vadd.f32 %v3938, %v3876
    %v3940 = vadd.f32 %v3939, %v3877
    %v3941 = vadd.f32 %v3940, %v3878
    %v3942 = vadd.f32 %v3941, %v3879
    %v3943 = vadd.f32 %v3942, %v3880
    %v3944 = vadd.f32 %v3943, %v3881
    %v3945 = vadd.f32 %v3944, %v3882
    %v3946 = vadd.f32 %v3945, %v3883
    %v3947 = vadd.f32 %v3946, %v3884
    %v3948 = vadd.f32 %v3947, %v3885
    %v3949 = vadd.f32 %v3948, %v3886
    %v3950 = vadd.f32 %v3949, %v3887
    %v3951 = vadd.f32 %v3950, %v3888
    %v3952 = vadd.f32 %v3951, %v3889
    %v3953 = vadd.f32 %v3952, %v3890
    %v3954 = vadd.f32 %v3953, %v3891
    %v3955 = vadd.f32 %v3954, %v3892
    %v3956 = vadd.f32 %v3955, %v3893
    %v3957 = vadd.f32 %v3956, %v3894
    %v3958 = vadd.f32 %v3957, %v3895
    %v3959 = vrot.slane %v3958, 4
    %v3960 = vadd.f32 %v3958, %v3959
    %v3961 = vrot.slane %v3960, 2
    %v3962 = vadd.f32 %v3960, %v3961
    %v3963 = vrot.slane %v3962, 1
    %v3964 = vadd.f32 %v3962, %v3963
    %v3965 = vmul.f32 %v3831, 0.001953125
    %v3966 = vmul.f32 %v3964, 0.001953125
    %v3967 = vmul.f32 %v3965, %v3965
    %v3968 = vsub.f32 %v3966, %v3967
    %v3969 = vadd.f32 %v3968, 1e-05
    %v3970 = vrsqrt.pop %v3969
    %v3971 = vmul.f32 %v3761, %v3970
    %v3972 = vmul.f32 %v3965, %v3971
    %v3973 = vsub.f32 %v3762, %v3972
    %v3975 = vlaneseq
    %v3976 = vshrl.u32 %v3975, 7
    %v3977 = vsub.s32 0, %v3976
    %v3978 = vrot.slane %v3971, %v3977
    %v3980 = vmul.f32 %v3443, %v3978
    %v3981 = vmul.f32 %v3448, %v3978
    %v3982 = vmul.f32 %v3453, %v3978
    %v3983 = vmul.f32 %v3458, %v3978
    %v3984 = vmul.f32 %v3463, %v3978
    %v3985 = vmul.f32 %v3468, %v3978
    %v3986 = vmul.f32 %v3473, %v3978
    %v3987 = vmul.f32 %v3478, %v3978
    %v3988 = vmul.f32 %v3483, %v3978
    %v3989 = vmul.f32 %v3488, %v3978
    %v3990 = vmul.f32 %v3493, %v3978
    %v3991 = vmul.f32 %v3498, %v3978
    %v3992 = vmul.f32 %v3503, %v3978
    %v3993 = vmul.f32 %v3508, %v3978
    %v3994 = vmul.f32 %v3513, %v3978
    %v3995 = vmul.f32 %v3518, %v3978
    %v3996 = vmul.f32 %v3523, %v3978
    %v3997 = vmul.f32 %v3528, %v3978
    %v3998 = vmul.f32 %v3533, %v3978
    %v3999 = vmul.f32 %v3538, %v3978
    %v4000 = vmul.f32 %v3543, %v3978
    %v4001 = vmul.f32 %v3548, %v3978
    %v4002 = vmul.f32 %v3553, %v3978
    %v4003 = vmul.f32 %v3558, %v3978
    %v4004 = vmul.f32 %v3563, %v3978
    %v4005 = vmul.f32 %v3568, %v3978
    %v4006 = vmul.f32 %v3573, %v3978
    %v4007 = vmul.f32 %v3578, %v3978
    %v4008 = vmul.f32 %v3583, %v3978
    %v4009 = vmul.f32 %v3588, %v3978
    %v4010 = vmul.f32 %v3593, %v3978
    %v4011 = vmul.f32 %v3598, %v3978
    %v4012 = vmul.f32 %v3603, %v3978
    %v4013 = vmul.f32 %v3608, %v3978
    %v4014 = vmul.f32 %v3613, %v3978
    %v4015 = vmul.f32 %v3618, %v3978
    %v4016 = vmul.f32 %v3623, %v3978
    %v4017 = vmul.f32 %v3628, %v3978
    %v4018 = vmul.f32 %v3633, %v3978
    %v4019 = vmul.f32 %v3638, %v3978
    %v4020 = vmul.f32 %v3643, %v3978
    %v4021 = vmul.f32 %v3648, %v3978
    %v4022 = vmul.f32 %v3653, %v3978
    %v4023 = vmul.f32 %v3658, %v3978
    %v4024 = vmul.f32 %v3663, %v3978
    %v4025 = vmul.f32 %v3668, %v3978
    %v4026 = vmul.f32 %v3673, %v3978
    %v4027 = vmul.f32 %v3678, %v3978
    %v4028 = vmul.f32 %v3683, %v3978
    %v4029 = vmul.f32 %v3688, %v3978
    %v4030 = vmul.f32 %v3693, %v3978
    %v4031 = vmul.f32 %v3698, %v3978
    %v4032 = vmul.f32 %v3703, %v3978
    %v4033 = vmul.f32 %v3708, %v3978
    %v4034 = vmul.f32 %v3713, %v3978
    %v4035 = vmul.f32 %v3718, %v3978
    %v4036 = vmul.f32 %v3723, %v3978
    %v4037 = vmul.f32 %v3728, %v3978
    %v4038 = vmul.f32 %v3733, %v3978
    %v4039 = vmul.f32 %v3738, %v3978
    %v4040 = vmul.f32 %v3743, %v3978
    %v4041 = vmul.f32 %v3748, %v3978
    %v4042 = vmul.f32 %v3753, %v3978
    %v4043 = vmul.f32 %v3758, %v3978
    %v4045 = vlaneseq
    %v4046 = vshrl.u32 %v4045, 7
    %v4047 = vsub.s32 0, %v4046
    %v4048 = vrot.slane %v3973, %v4047
    %v4050 = vadd.f32 %v3980, %v4048
    %v4051 = vadd.f32 %v3981, %v4048
    %v4052 = vadd.f32 %v3982, %v4048
    %v4053 = vadd.f32 %v3983, %v4048
    %v4054 = vadd.f32 %v3984, %v4048
    %v4055 = vadd.f32 %v3985, %v4048
    %v4056 = vadd.f32 %v3986, %v4048
    %v4057 = vadd.f32 %v3987, %v4048
    %v4058 = vadd.f32 %v3988, %v4048
    %v4059 = vadd.f32 %v3989, %v4048
    %v4060 = vadd.f32 %v3990, %v4048
    %v4061 = vadd.f32 %v3991, %v4048
    %v4062 = vadd.f32 %v3992, %v4048
    %v4063 = vadd.f32 %v3993, %v4048
    %v4064 = vadd.f32 %v3994, %v4048
    %v4065 = vadd.f32 %v3995, %v4048
    %v4066 = vadd.f32 %v3996, %v4048
    %v4067 = vadd.f32 %v3997, %v4048
    %v4068 = vadd.f32 %v3998, %v4048
    %v4069 = vadd.f32 %v3999, %v4048
    %v4070 = vadd.f32 %v4000, %v4048
    %v4071 = vadd.f32 %v4001, %v4048
    %v4072 = vadd.f32 %v4002, %v4048
    %v4073 = vadd.f32 %v4003, %v4048
    %v4074 = vadd.f32 %v4004, %v4048
    %v4075 = vadd.f32 %v4005, %v4048
    %v4076 = vadd.f32 %v4006, %v4048
    %v4077 = vadd.f32 %v4007, %v4048
    %v4078 = vadd.f32 %v4008, %v4048
    %v4079 = vadd.f32 %v4009, %v4048
    %v4080 = vadd.f32 %v4010, %v4048
    %v4081 = vadd.f32 %v4011, %v4048
    %v4082 = vadd.f32 %v4012, %v4048
    %v4083 = vadd.f32 %v4013, %v4048
    %v4084 = vadd.f32 %v4014, %v4048
    %v4085 = vadd.f32 %v4015, %v4048
    %v4086 = vadd.f32 %v4016, %v4048
    %v4087 = vadd.f32 %v4017, %v4048
    %v4088 = vadd.f32 %v4018, %v4048
    %v4089 = vadd.f32 %v4019, %v4048
    %v4090 = vadd.f32 %v4020, %v4048
    %v4091 = vadd.f32 %v4021, %v4048
    %v4092 = vadd.f32 %v4022, %v4048
    %v4093 = vadd.f32 %v4023, %v4048
    %v4094 = vadd.f32 %v4024, %v4048
    %v4095 = vadd.f32 %v4025, %v4048
    %v4096 = vadd.f32 %v4026, %v4048
    %v4097 = vadd.f32 %v4027, %v4048
    %v4098 = vadd.f32 %v4028, %v4048
    %v4099 = vadd.f32 %v4029, %v4048
    %v4100 = vadd.f32 %v4030, %v4048
    %v4101 = vadd.f32 %v4031, %v4048
    %v4102 = vadd.f32 %v4032, %v4048
    %v4103 = vadd.f32 %v4033, %v4048
    %v4104 = vadd.f32 %v4034, %v4048
    %v4105 = vadd.f32 %v4035, %v4048
    %v4106 = vadd.f32 %v4036, %v4048
    %v4107 = vadd.f32 %v4037, %v4048
    %v4108 = vadd.f32 %v4038, %v4048
    %v4109 = vadd.f32 %v4039, %v4048
    %v4110 = vadd.f32 %v4040, %v4048
    %v4111 = vadd.f32 %v4041, %v4048
    %v4112 = vadd.f32 %v4042, %v4048
    %v4113 = vadd.f32 %v4043, %v4048
    %v4114 = vmax.f32 %v4050, 0.0
    %v4115 = vmax.f32 %v4051, 0.0
    %v4116 = vmax.f32 %v4052, 0.0
    %v4117 = vmax.f32 %v4053, 0.0
    %v4118 = vmax.f32 %v4054, 0.0
    %v4119 = vmax.f32 %v4055, 0.0
    %v4120 = vmax.f32 %v4056, 0.0
    %v4121 = vmax.f32 %v4057, 0.0
    %v4122 = vmax.f32 %v4058, 0.0
    %v4123 = vmax.f32 %v4059, 0.0
    %v4124 = vmax.f32 %v4060, 0.0
    %v4125 = vmax.f32 %v4061, 0.0
    %v4126 = vmax.f32 %v4062, 0.0
    %v4127 = vmax.f32 %v4063, 0.0
    %v4128 = vmax.f32 %v4064, 0.0
    %v4129 = vmax.f32 %v4065, 0.0
    %v4130 = vmax.f32 %v4066, 0.0
    %v4131 = vmax.f32 %v4067, 0.0
    %v4132 = vmax.f32 %v4068, 0.0
    %v4133 = vmax.f32 %v4069, 0.0
    %v4134 = vmax.f32 %v4070, 0.0
    %v4135 = vmax.f32 %v4071, 0.0
    %v4136 = vmax.f32 %v4072, 0.0
    %v4137 = vmax.f32 %v4073, 0.0
    %v4138 = vmax.f32 %v4074, 0.0
    %v4139 = vmax.f32 %v4075, 0.0
    %v4140 = vmax.f32 %v4076, 0.0
    %v4141 = vmax.f32 %v4077, 0.0
    %v4142 = vmax.f32 %v4078, 0.0
    %v4143 = vmax.f32 %v4079, 0.0
    %v4144 = vmax.f32 %v4080, 0.0
    %v4145 = vmax.f32 %v4081, 0.0
    %v4146 = vmax.f32 %v4082, 0.0
    %v4147 = vmax.f32 %v4083, 0.0
    %v4148 = vmax.f32 %v4084, 0.0
    %v4149 = vmax.f32 %v4085, 0.0
    %v4150 = vmax.f32 %v4086, 0.0
    %v4151 = vmax.f32 %v4087, 0.0
    %v4152 = vmax.f32 %v4088, 0.0
    %v4153 = vmax.f32 %v4089, 0.0
    %v4154 = vmax.f32 %v4090, 0.0
    %v4155 = vmax.f32 %v4091, 0.0
    %v4156 = vmax.f32 %v4092, 0.0
    %v4157 = vmax.f32 %v4093, 0.0
    %v4158 = vmax.f32 %v4094, 0.0
    %v4159 = vmax.f32 %v4095, 0.0
    %v4160 = vmax.f32 %v4096, 0.0
    %v4161 = vmax.f32 %v4097, 0.0
    %v4162 = vmax.f32 %v4098, 0.0
    %v4163 = vmax.f32 %v4099, 0.0
    %v4164 = vmax.f32 %v4100, 0.0
    %v4165 = vmax.f32 %v4101, 0.0
    %v4166 = vmax.f32 %v4102, 0.0
    %v4167 = vmax.f32 %v4103, 0.0
    %v4168 = vmax.f32 %v4104, 0.0
    %v4169 = vmax.f32 %v4105, 0.0
    %v4170 = vmax.f32 %v4106, 0.0
    %v4171 = vmax.f32 %v4107, 0.0
    %v4172 = vmax.f32 %v4108, 0.0
    %v4173 = vmax.f32 %v4109, 0.0
    %v4174 = vmax.f32 %v4110, 0.0
    %v4175 = vmax.f32 %v4111, 0.0
    %v4176 = vmax.f32 %v4112, 0.0
    %v4177 = vmax.f32 %v4113, 0.0
    %v4178 = vld [vmem:[#allocation9] sm:$0xff]
    %v4179 = vld [vmem:[#allocation9 + $0x8] sm:$0xff]
    %v4180 = vld [vmem:[#allocation9 + $0x10] sm:$0xff]
    %v4181 = vld [vmem:[#allocation9 + $0x18] sm:$0xff]
    %v4182 = vld [vmem:[#allocation9 + $0x20] sm:$0xff]
    %v4183 = vld [vmem:[#allocation9 + $0x28] sm:$0xff]
    %v4184 = vld [vmem:[#allocation9 + $0x30] sm:$0xff]
    %v4185 = vld [vmem:[#allocation9 + $0x38] sm:$0xff]
    %v4186 = vld [vmem:[#allocation9 + $0x40] sm:$0xff]
    %v4187 = vld [vmem:[#allocation9 + $0x48] sm:$0xff]
    %v4188 = vld [vmem:[#allocation9 + $0x50] sm:$0xff]
    %v4189 = vld [vmem:[#allocation9 + $0x58] sm:$0xff]
    %v4190 = vld [vmem:[#allocation9 + $0x60] sm:$0xff]
    %v4191 = vld [vmem:[#allocation9 + $0x68] sm:$0xff]
    %v4192 = vld [vmem:[#allocation9 + $0x70] sm:$0xff]
    %v4193 = vld [vmem:[#allocation9 + $0x78] sm:$0xff]
    %4194 = vmatprep.subr.mxu0 0.0
    %4195 = vmatpush1.msra.mxu0 %v4178
    %4196 = vmatprep.subr.mxu0 0.0
    %4197 = vmatpush1.msra.mxu0 %v4179
    %4198 = vmatprep.subr.mxu0 0.0
    %4199 = vmatpush1.msra.mxu0 %v4180
    %4200 = vmatprep.subr.mxu0 0.0
    %4201 = vmatpush1.msra.mxu0 %v4181
    %4202 = vmatprep.subr.mxu0 0.0
    %4203 = vmatpush1.msra.mxu0 %v4182
    %4204 = vmatprep.subr.mxu0 0.0
    %4205 = vmatpush1.msra.mxu0 %v4183
    %4206 = vmatprep.subr.mxu0 0.0
    %4207 = vmatpush1.msra.mxu0 %v4184
    %4208 = vmatprep.subr.mxu0 0.0
    %4209 = vmatpush1.msra.mxu0 %v4185
    %4210 = vmatprep.subr.mxu0 0.0
    %4211 = vmatpush1.msra.mxu0 %v4186
    %4212 = vmatprep.subr.mxu0 0.0
    %4213 = vmatpush1.msra.mxu0 %v4187
    %4214 = vmatprep.subr.mxu0 0.0
    %4215 = vmatpush1.msra.mxu0 %v4188
    %4216 = vmatprep.subr.mxu0 0.0
    %4217 = vmatpush1.msra.mxu0 %v4189
    %4218 = vmatprep.subr.mxu0 0.0
    %4219 = vmatpush1.msra.mxu0 %v4190
    %4220 = vmatprep.subr.mxu0 0.0
    %4221 = vmatpush1.msra.mxu0 %v4191
    %4222 = vmatprep.subr.mxu0 0.0
    %4223 = vmatpush1.msra.mxu0 %v4192
    %4224 = vmatprep.subr.mxu0 0.0
    %4225 = vmatpush1.msra.mxu0 %v4193
    %4226 = vmatprep.subr.mxu0 0.0
    %4227 = vmatpush1.msra.mxu0 0.0
    %4228 = vmatprep.subr.mxu0 0.0
    %4229 = vmatpush1.msra.mxu0 0.0
    %4230 = vmatprep.subr.mxu0 0.0
    %4231 = vmatpush1.msra.mxu0 0.0
    %4232 = vmatprep.subr.mxu0 0.0
    %4233 = vmatpush1.msra.mxu0 0.0
    %4234 = vmatprep.subr.mxu0 0.0
    %4235 = vmatpush1.msra.mxu0 0.0
    %4236 = vmatprep.subr.mxu0 0.0
    %4237 = vmatpush1.msra.mxu0 0.0
    %4238 = vmatprep.subr.mxu0 0.0
    %4239 = vmatpush1.msra.mxu0 0.0
    %4240 = vmatprep.subr.mxu0 0.0
    %4241 = vmatpush1.msra.mxu0 0.0
    %4242 = vmatprep.subr.mxu0 0.0
    %4243 = vmatpush1.msra.mxu0 0.0
    %4244 = vmatprep.subr.mxu0 0.0
    %4245 = vmatpush1.msra.mxu0 0.0
    %4246 = vmatprep.subr.mxu0 0.0
    %4247 = vmatpush1.msra.mxu0 0.0
    %4248 = vmatprep.subr.mxu0 0.0
    %4249 = vmatpush1.msra.mxu0 0.0
    %4250 = vmatprep.subr.mxu0 0.0
    %4251 = vmatpush1.msra.mxu0 0.0
    %4252 = vmatprep.subr.mxu0 0.0
    %4253 = vmatpush1.msra.mxu0 0.0
    %4254 = vmatprep.subr.mxu0 0.0
    %4255 = vmatpush1.msra.mxu0 0.0
    %4256 = vmatprep.subr.mxu0 0.0
    %4257 = vmatpush1.msra.mxu0 0.0
    %4258 = vmatprep.mubr.f32.mxu0 0.0
    %4259 = vmatmul.mubr.f32.gmra.mrb[0].mxu0 %v4114
    %v4260 = vpop.f32.mrb[0].mxu0
    %v4261 = vadd.f32 0.0, %v4260
    %v4262 = vpop.f32.mrb[0].mxu0
    %4263 = vmatprep.mubr.f32.mxu0 0.0
    %4264 = vmatmul.mubr.f32.gmra.mrb[0].mxu0 %v4115
    %v4265 = vpop.f32.mrb[0].mxu0
    %v4266 = vadd.f32 0.0, %v4265
    %v4267 = vpop.f32.mrb[0].mxu0
    %4268 = vmatprep.mubr.f32.mxu0 0.0
    %4269 = vmatmul.mubr.f32.gmra.mrb[0].mxu0 %v4116
    %v4270 = vpop.f32.mrb[0].mxu0
    %v4271 = vadd.f32 0.0, %v4270
    %v4272 = vpop.f32.mrb[0].mxu0
    %4273 = vmatprep.mubr.f32.mxu0 0.0
    %4274 = vmatmul.mubr.f32.gmra.mrb[0].mxu0 %v4117
    %v4275 = vpop.f32.mrb[0].mxu0
    %v4276 = vadd.f32 0.0, %v4275
    %v4277 = vpop.f32.mrb[0].mxu0
    %4278 = vmatprep.mubr.f32.mxu0 0.0
    %4279 = vmatmul.mubr.f32.gmra.mrb[0].mxu0 %v4118
    %v4280 = vpop.f32.mrb[0].mxu0
    %v4281 = vadd.f32 0.0, %v4280
    %v4282 = vpop.f32.mrb[0].mxu0
    %4283 = vmatprep.mubr.f32.mxu0 0.0
    %4284 = vmatmul.mubr.f32.gmra.mrb[0].mxu0 %v4119
    %v4285 = vpop.f32.mrb[0].mxu0
    %v4286 = vadd.f32 0.0, %v4285
    %v4287 = vpop.f32.mrb[0].mxu0
    %4288 = vmatprep.mubr.f32.mxu0 0.0
    %4289 = vmatmul.mubr.f32.gmra.mrb[0].mxu0 %v4120
    %v4290 = vpop.f32.mrb[0].mxu0
    %v4291 = vadd.f32 0.0, %v4290
    %v4292 = vpop.f32.mrb[0].mxu0
    %4293 = vmatprep.mubr.f32.mxu0 0.0
    %4294 = vmatmul.mubr.f32.gmra.mrb[0].mxu0 %v4121
    %v4295 = vpop.f32.mrb[0].mxu0
    %v4296 = vadd.f32 0.0, %v4295
    %v4297 = vpop.f32.mrb[0].mxu0
    %4298 = vmatprep.mubr.f32.mxu0 0.0
    %4299 = vmatmul.mubr.f32.gmra.mrb[0].mxu0 %v4122
    %v4300 = vpop.f32.mrb[0].mxu0
    %v4301 = vadd.f32 0.0, %v4300
    %v4302 = vpop.f32.mrb[0].mxu0
    %4303 = vmatprep.mubr.f32.mxu0 0.0
    %4304 = vmatmul.mubr.f32.gmra.mrb[0].mxu0 %v4123
    %v4305 = vpop.f32.mrb[0].mxu0
    %v4306 = vadd.f32 0.0, %v4305
    %v4307 = vpop.f32.mrb[0].mxu0
    %4308 = vmatprep.mubr.f32.mxu0 0.0
    %4309 = vmatmul.mubr.f32.gmra.mrb[0].mxu0 %v4124
    %v4310 = vpop.f32.mrb[0].mxu0
    %v4311 = vadd.f32 0.0, %v4310
    %v4312 = vpop.f32.mrb[0].mxu0
    %4313 = vmatprep.mubr.f32.mxu0 0.0
    %4314 = vmatmul.mubr.f32.gmra.mrb[0].mxu0 %v4125
    %v4315 = vpop.f32.mrb[0].mxu0
    %v4316 = vadd.f32 0.0, %v4315
    %v4317 = vpop.f32.mrb[0].mxu0
    %4318 = vmatprep.mubr.f32.mxu0 0.0
    %4319 = vmatmul.mubr.f32.gmra.mrb[0].mxu0 %v4126
    %v4320 = vpop.f32.mrb[0].mxu0
    %v4321 = vadd.f32 0.0, %v4320
    %v4322 = vpop.f32.mrb[0].mxu0
    %4323 = vmatprep.mubr.f32.mxu0 0.0
    %4324 = vmatmul.mubr.f32.gmra.mrb[0].mxu0 %v4127
    %v4325 = vpop.f32.mrb[0].mxu0
    %v4326 = vadd.f32 0.0, %v4325
    %v4327 = vpop.f32.mrb[0].mxu0
    %4328 = vmatprep.mubr.f32.mxu0 0.0
    %4329 = vmatmul.mubr.f32.gmra.mrb[0].mxu0 %v4128
    %v4330 = vpop.f32.mrb[0].mxu0
    %v4331 = vadd.f32 0.0, %v4330
    %v4332 = vpop.f32.mrb[0].mxu0
    %4333 = vmatprep.mubr.f32.mxu0 0.0
    %4334 = vmatmul.mubr.f32.gmra.mrb[0].mxu0 %v4129
    %v4335 = vpop.f32.mrb[0].mxu0
    %v4336 = vadd.f32 0.0, %v4335
    %v4337 = vpop.f32.mrb[0].mxu0
    %4338 = vmatprep.mubr.f32.mxu0 0.0
    %4339 = vmatmul.mubr.f32.gmra.mrb[0].mxu0 %v4130
    %v4340 = vpop.f32.mrb[0].mxu0
    %v4341 = vadd.f32 0.0, %v4340
    %v4342 = vpop.f32.mrb[0].mxu0
    %4343 = vmatprep.mubr.f32.mxu0 0.0
    %4344 = vmatmul.mubr.f32.gmra.mrb[0].mxu0 %v4131
    %v4345 = vpop.f32.mrb[0].mxu0
    %v4346 = vadd.f32 0.0, %v4345
    %v4347 = vpop.f32.mrb[0].mxu0
    %4348 = vmatprep.mubr.f32.mxu0 0.0
    %4349 = vmatmul.mubr.f32.gmra.mrb[0].mxu0 %v4132
    %v4350 = vpop.f32.mrb[0].mxu0
    %v4351 = vadd.f32 0.0, %v4350
    %v4352 = vpop.f32.mrb[0].mxu0
    %4353 = vmatprep.mubr.f32.mxu0 0.0
    %4354 = vmatmul.mubr.f32.gmra.mrb[0].mxu0 %v4133
    %v4355 = vpop.f32.mrb[0].mxu0
    %v4356 = vadd.f32 0.0, %v4355
    %v4357 = vpop.f32.mrb[0].mxu0
    %4358 = vmatprep.mubr.f32.mxu0 0.0
    %4359 = vmatmul.mubr.f32.gmra.mrb[0].mxu0 %v4134
    %v4360 = vpop.f32.mrb[0].mxu0
    %v4361 = vadd.f32 0.0, %v4360
    %v4362 = vpop.f32.mrb[0].mxu0
    %4363 = vmatprep.mubr.f32.mxu0 0.0
    %4364 = vmatmul.mubr.f32.gmra.mrb[0].mxu0 %v4135
    %v4365 = vpop.f32.mrb[0].mxu0
    %v4366 = vadd.f32 0.0, %v4365
    %v4367 = vpop.f32.mrb[0].mxu0
    %4368 = vmatprep.mubr.f32.mxu0 0.0
    %4369 = vmatmul.mubr.f32.gmra.mrb[0].mxu0 %v4136
    %v4370 = vpop.f32.mrb[0].mxu0
    %v4371 = vadd.f32 0.0, %v4370
    %v4372 = vpop.f32.mrb[0].mxu0
    %4373 = vmatprep.mubr.f32.mxu0 0.0
    %4374 = vmatmul.mubr.f32.gmra.mrb[0].mxu0 %v4137
    %v4375 = vpop.f32.mrb[0].mxu0
    %v4376 = vadd.f32 0.0, %v4375
    %v4377 = vpop.f32.mrb[0].mxu0
    %4378 = vmatprep.mubr.f32.mxu0 0.0
    %4379 = vmatmul.mubr.f32.gmra.mrb[0].mxu0 %v4138
    %v4380 = vpop.f32.mrb[0].mxu0
    %v4381 = vadd.f32 0.0, %v4380
    %v4382 = vpop.f32.mrb[0].mxu0
    %4383 = vmatprep.mubr.f32.mxu0 0.0
    %4384 = vmatmul.mubr.f32.gmra.mrb[0].mxu0 %v4139
    %v4385 = vpop.f32.mrb[0].mxu0
    %v4386 = vadd.f32 0.0, %v4385
    %v4387 = vpop.f32.mrb[0].mxu0
    %4388 = vmatprep.mubr.f32.mxu0 0.0
    %4389 = vmatmul.mubr.f32.gmra.mrb[0].mxu0 %v4140
    %v4390 = vpop.f32.mrb[0].mxu0
    %v4391 = vadd.f32 0.0, %v4390
    %v4392 = vpop.f32.mrb[0].mxu0
    %4393 = vmatprep.mubr.f32.mxu0 0.0
    %4394 = vmatmul.mubr.f32.gmra.mrb[0].mxu0 %v4141
    %v4395 = vpop.f32.mrb[0].mxu0
    %v4396 = vadd.f32 0.0, %v4395
    %v4397 = vpop.f32.mrb[0].mxu0
    %4398 = vmatprep.mubr.f32.mxu0 0.0
    %4399 = vmatmul.mubr.f32.gmra.mrb[0].mxu0 %v4142
    %v4400 = vpop.f32.mrb[0].mxu0
    %v4401 = vadd.f32 0.0, %v4400
    %v4402 = vpop.f32.mrb[0].mxu0
    %4403 = vmatprep.mubr.f32.mxu0 0.0
    %4404 = vmatmul.mubr.f32.gmra.mrb[0].mxu0 %v4143
    %v4405 = vpop.f32.mrb[0].mxu0
    %v4406 = vadd.f32 0.0, %v4405
    %v4407 = vpop.f32.mrb[0].mxu0
    %4408 = vmatprep.mubr.f32.mxu0 0.0
    %4409 = vmatmul.mubr.f32.gmra.mrb[0].mxu0 %v4144
    %v4410 = vpop.f32.mrb[0].mxu0
    %v4411 = vadd.f32 0.0, %v4410
    %v4412 = vpop.f32.mrb[0].mxu0
    %4413 = vmatprep.mubr.f32.mxu0 0.0
    %4414 = vmatmul.mubr.f32.gmra.mrb[0].mxu0 %v4145
    %v4415 = vpop.f32.mrb[0].mxu0
    %v4416 = vadd.f32 0.0, %v4415
    %v4417 = vpop.f32.mrb[0].mxu0
    %4418 = vmatprep.mubr.f32.mxu0 0.0
    %4419 = vmatmul.mubr.f32.gmra.mrb[0].mxu0 %v4146
    %v4420 = vpop.f32.mrb[0].mxu0
    %v4421 = vadd.f32 0.0, %v4420
    %v4422 = vpop.f32.mrb[0].mxu0
    %4423 = vmatprep.mubr.f32.mxu0 0.0
    %4424 = vmatmul.mubr.f32.gmra.mrb[0].mxu0 %v4147
    %v4425 = vpop.f32.mrb[0].mxu0
    %v4426 = vadd.f32 0.0, %v4425
    %v4427 = vpop.f32.mrb[0].mxu0
    %4428 = vmatprep.mubr.f32.mxu0 0.0
    %4429 = vmatmul.mubr.f32.gmra.mrb[0].mxu0 %v4148
    %v4430 = vpop.f32.mrb[0].mxu0
    %v4431 = vadd.f32 0.0, %v4430
    %v4432 = vpop.f32.mrb[0].mxu0
    %4433 = vmatprep.mubr.f32.mxu0 0.0
    %4434 = vmatmul.mubr.f32.gmra.mrb[0].mxu0 %v4149
    %v4435 = vpop.f32.mrb[0].mxu0
    %v4436 = vadd.f32 0.0, %v4435
    %v4437 = vpop.f32.mrb[0].mxu0
    %4438 = vmatprep.mubr.f32.mxu0 0.0
    %4439 = vmatmul.mubr.f32.gmra.mrb[0].mxu0 %v4150
    %v4440 = vpop.f32.mrb[0].mxu0
    %v4441 = vadd.f32 0.0, %v4440
    %v4442 = vpop.f32.mrb[0].mxu0
    %4443 = vmatprep.mubr.f32.mxu0 0.0
    %4444 = vmatmul.mubr.f32.gmra.mrb[0].mxu0 %v4151
    %v4445 = vpop.f32.mrb[0].mxu0
    %v4446 = vadd.f32 0.0, %v4445
    %v4447 = vpop.f32.mrb[0].mxu0
    %4448 = vmatprep.mubr.f32.mxu0 0.0
    %4449 = vmatmul.mubr.f32.gmra.mrb[0].mxu0 %v4152
    %v4450 = vpop.f32.mrb[0].mxu0
    %v4451 = vadd.f32 0.0, %v4450
    %v4452 = vpop.f32.mrb[0].mxu0
    %4453 = vmatprep.mubr.f32.mxu0 0.0
    %4454 = vmatmul.mubr.f32.gmra.mrb[0].mxu0 %v4153
    %v4455 = vpop.f32.mrb[0].mxu0
    %v4456 = vadd.f32 0.0, %v4455
    %v4457 = vpop.f32.mrb[0].mxu0
    %4458 = vmatprep.mubr.f32.mxu0 0.0
    %4459 = vmatmul.mubr.f32.gmra.mrb[0].mxu0 %v4154
    %v4460 = vpop.f32.mrb[0].mxu0
    %v4461 = vadd.f32 0.0, %v4460
    %v4462 = vpop.f32.mrb[0].mxu0
    %4463 = vmatprep.mubr.f32.mxu0 0.0
    %4464 = vmatmul.mubr.f32.gmra.mrb[0].mxu0 %v4155
    %v4465 = vpop.f32.mrb[0].mxu0
    %v4466 = vadd.f32 0.0, %v4465
    %v4467 = vpop.f32.mrb[0].mxu0
    %4468 = vmatprep.mubr.f32.mxu0 0.0
    %4469 = vmatmul.mubr.f32.gmra.mrb[0].mxu0 %v4156
    %v4470 = vpop.f32.mrb[0].mxu0
    %v4471 = vadd.f32 0.0, %v4470
    %v4472 = vpop.f32.mrb[0].mxu0
    %4473 = vmatprep.mubr.f32.mxu0 0.0
    %4474 = vmatmul.mubr.f32.gmra.mrb[0].mxu0 %v4157
    %v4475 = vpop.f32.mrb[0].mxu0
    %v4476 = vadd.f32 0.0, %v4475
    %v4477 = vpop.f32.mrb[0].mxu0
    %4478 = vmatprep.mubr.f32.mxu0 0.0
    %4479 = vmatmul.mubr.f32.gmra.mrb[0].mxu0 %v4158
    %v4480 = vpop.f32.mrb[0].mxu0
    %v4481 = vadd.f32 0.0, %v4480
    %v4482 = vpop.f32.mrb[0].mxu0
    %4483 = vmatprep.mubr.f32.mxu0 0.0
    %4484 = vmatmul.mubr.f32.gmra.mrb[0].mxu0 %v4159
    %v4485 = vpop.f32.mrb[0].mxu0
    %v4486 = vadd.f32 0.0, %v4485
    %v4487 = vpop.f32.mrb[0].mxu0
    %4488 = vmatprep.mubr.f32.mxu0 0.0
    %4489 = vmatmul.mubr.f32.gmra.mrb[0].mxu0 %v4160
    %v4490 = vpop.f32.mrb[0].mxu0
    %v4491 = vadd.f32 0.0, %v4490
    %v4492 = vpop.f32.mrb[0].mxu0
    %4493 = vmatprep.mubr.f32.mxu0 0.0
    %4494 = vmatmul.mubr.f32.gmra.mrb[0].mxu0 %v4161
    %v4495 = vpop.f32.mrb[0].mxu0
    %v4496 = vadd.f32 0.0, %v4495
    %v4497 = vpop.f32.mrb[0].mxu0
    %4498 = vmatprep.mubr.f32.mxu0 0.0
    %4499 = vmatmul.mubr.f32.gmra.mrb[0].mxu0 %v4162
    %v4500 = vpop.f32.mrb[0].mxu0
    %v4501 = vadd.f32 0.0, %v4500
    %v4502 = vpop.f32.mrb[0].mxu0
    %4503 = vmatprep.mubr.f32.mxu0 0.0
    %4504 = vmatmul.mubr.f32.gmra.mrb[0].mxu0 %v4163
    %v4505 = vpop.f32.mrb[0].mxu0
    %v4506 = vadd.f32 0.0, %v4505
    %v4507 = vpop.f32.mrb[0].mxu0
    %4508 = vmatprep.mubr.f32.mxu0 0.0
    %4509 = vmatmul.mubr.f32.gmra.mrb[0].mxu0 %v4164
    %v4510 = vpop.f32.mrb[0].mxu0
    %v4511 = vadd.f32 0.0, %v4510
    %v4512 = vpop.f32.mrb[0].mxu0
    %4513 = vmatprep.mubr.f32.mxu0 0.0
    %4514 = vmatmul.mubr.f32.gmra.mrb[0].mxu0 %v4165
    %v4515 = vpop.f32.mrb[0].mxu0
    %v4516 = vadd.f32 0.0, %v4515
    %v4517 = vpop.f32.mrb[0].mxu0
    %4518 = vmatprep.mubr.f32.mxu0 0.0
    %4519 = vmatmul.mubr.f32.gmra.mrb[0].mxu0 %v4166
    %v4520 = vpop.f32.mrb[0].mxu0
    %v4521 = vadd.f32 0.0, %v4520
    %v4522 = vpop.f32.mrb[0].mxu0
    %4523 = vmatprep.mubr.f32.mxu0 0.0
    %4524 = vmatmul.mubr.f32.gmra.mrb[0].mxu0 %v4167
    %v4525 = vpop.f32.mrb[0].mxu0
    %v4526 = vadd.f32 0.0, %v4525
    %v4527 = vpop.f32.mrb[0].mxu0
    %4528 = vmatprep.mubr.f32.mxu0 0.0
    %4529 = vmatmul.mubr.f32.gmra.mrb[0].mxu0 %v4168
    %v4530 = vpop.f32.mrb[0].mxu0
    %v4531 = vadd.f32 0.0, %v4530
    %v4532 = vpop.f32.mrb[0].mxu0
    %4533 = vmatprep.mubr.f32.mxu0 0.0
    %4534 = vmatmul.mubr.f32.gmra.mrb[0].mxu0 %v4169
    %v4535 = vpop.f32.mrb[0].mxu0
    %v4536 = vadd.f32 0.0, %v4535
    %v4537 = vpop.f32.mrb[0].mxu0
    %4538 = vmatprep.mubr.f32.mxu0 0.0
    %4539 = vmatmul.mubr.f32.gmra.mrb[0].mxu0 %v4170
    %v4540 = vpop.f32.mrb[0].mxu0
    %v4541 = vadd.f32 0.0, %v4540
    %v4542 = vpop.f32.mrb[0].mxu0
    %4543 = vmatprep.mubr.f32.mxu0 0.0
    %4544 = vmatmul.mubr.f32.gmra.mrb[0].mxu0 %v4171
    %v4545 = vpop.f32.mrb[0].mxu0
    %v4546 = vadd.f32 0.0, %v4545
    %v4547 = vpop.f32.mrb[0].mxu0
    %4548 = vmatprep.mubr.f32.mxu0 0.0
    %4549 = vmatmul.mubr.f32.gmra.mrb[0].mxu0 %v4172
    %v4550 = vpop.f32.mrb[0].mxu0
    %v4551 = vadd.f32 0.0, %v4550
    %v4552 = vpop.f32.mrb[0].mxu0
    %4553 = vmatprep.mubr.f32.mxu0 0.0
    %4554 = vmatmul.mubr.f32.gmra.mrb[0].mxu0 %v4173
    %v4555 = vpop.f32.mrb[0].mxu0
    %v4556 = vadd.f32 0.0, %v4555
    %v4557 = vpop.f32.mrb[0].mxu0
    %4558 = vmatprep.mubr.f32.mxu0 0.0
    %4559 = vmatmul.mubr.f32.gmra.mrb[0].mxu0 %v4174
    %v4560 = vpop.f32.mrb[0].mxu0
    %v4561 = vadd.f32 0.0, %v4560
    %v4562 = vpop.f32.mrb[0].mxu0
    %4563 = vmatprep.mubr.f32.mxu0 0.0
    %4564 = vmatmul.mubr.f32.gmra.mrb[0].mxu0 %v4175
    %v4565 = vpop.f32.mrb[0].mxu0
    %v4566 = vadd.f32 0.0, %v4565
    %v4567 = vpop.f32.mrb[0].mxu0
    %4568 = vmatprep.mubr.f32.mxu0 0.0
    %4569 = vmatmul.mubr.f32.gmra.mrb[0].mxu0 %v4176
    %v4570 = vpop.f32.mrb[0].mxu0
    %v4571 = vadd.f32 0.0, %v4570
    %v4572 = vpop.f32.mrb[0].mxu0
    %4573 = vmatprep.mubr.f32.mxu0 0.0
    %4574 = vmatmul.mubr.f32.gmra.mrb[0].mxu0 %v4177
    %v4575 = vpop.f32.mrb[0].mxu0
    %v4576 = vadd.f32 0.0, %v4575
    %v4577 = vpop.f32.mrb[0].mxu0
    %4578 = vdwg.mxu0
    %v4579 = vld [vmem:[%s8] sm:$0x1]
    %v4580 = vld [vmem:[%s9] sm:$0x1]
    %v4581 = vadd.f32 %v4261, %v4266
    %v4582 = vadd.f32 %v4581, %v4271
    %v4583 = vadd.f32 %v4582, %v4276
    %v4584 = vadd.f32 %v4583, %v4281
    %v4585 = vadd.f32 %v4584, %v4286
    %v4586 = vadd.f32 %v4585, %v4291
    %v4587 = vadd.f32 %v4586, %v4296
    %v4588 = vadd.f32 %v4587, %v4301
    %v4589 = vadd.f32 %v4588, %v4306
    %v4590 = vadd.f32 %v4589, %v4311
    %v4591 = vadd.f32 %v4590, %v4316
    %v4592 = vadd.f32 %v4591, %v4321
    %v4593 = vadd.f32 %v4592, %v4326
    %v4594 = vadd.f32 %v4593, %v4331
    %v4595 = vadd.f32 %v4594, %v4336
    %v4596 = vadd.f32 %v4595, %v4341
    %v4597 = vadd.f32 %v4596, %v4346
    %v4598 = vadd.f32 %v4597, %v4351
    %v4599 = vadd.f32 %v4598, %v4356
    %v4600 = vadd.f32 %v4599, %v4361
    %v4601 = vadd.f32 %v4600, %v4366
    %v4602 = vadd.f32 %v4601, %v4371
    %v4603 = vadd.f32 %v4602, %v4376
    %v4604 = vadd.f32 %v4603, %v4381
    %v4605 = vadd.f32 %v4604, %v4386
    %v4606 = vadd.f32 %v4605, %v4391
    %v4607 = vadd.f32 %v4606, %v4396
    %v4608 = vadd.f32 %v4607, %v4401
    %v4609 = vadd.f32 %v4608, %v4406
    %v4610 = vadd.f32 %v4609, %v4411
    %v4611 = vadd.f32 %v4610, %v4416
    %v4612 = vadd.f32 %v4611, %v4421
    %v4613 = vadd.f32 %v4612, %v4426
    %v4614 = vadd.f32 %v4613, %v4431
    %v4615 = vadd.f32 %v4614, %v4436
    %v4616 = vadd.f32 %v4615, %v4441
    %v4617 = vadd.f32 %v4616, %v4446
    %v4618 = vadd.f32 %v4617, %v4451
    %v4619 = vadd.f32 %v4618, %v4456
    %v4620 = vadd.f32 %v4619, %v4461
    %v4621 = vadd.f32 %v4620, %v4466
    %v4622 = vadd.f32 %v4621, %v4471
    %v4623 = vadd.f32 %v4622, %v4476
    %v4624 = vadd.f32 %v4623, %v4481
    %v4625 = vadd.f32 %v4624, %v4486
    %v4626 = vadd.f32 %v4625, %v4491
    %v4627 = vadd.f32 %v4626, %v4496
    %v4628 = vadd.f32 %v4627, %v4501
    %v4629 = vadd.f32 %v4628, %v4506
    %v4630 = vadd.f32 %v4629, %v4511
    %v4631 = vadd.f32 %v4630, %v4516
    %v4632 = vadd.f32 %v4631, %v4521
    %v4633 = vadd.f32 %v4632, %v4526
    %v4634 = vadd.f32 %v4633, %v4531
    %v4635 = vadd.f32 %v4634, %v4536
    %v4636 = vadd.f32 %v4635, %v4541
    %v4637 = vadd.f32 %v4636, %v4546
    %v4638 = vadd.f32 %v4637, %v4551
    %v4639 = vadd.f32 %v4638, %v4556
    %v4640 = vadd.f32 %v4639, %v4561
    %v4641 = vadd.f32 %v4640, %v4566
    %v4642 = vadd.f32 %v4641, %v4571
    %v4643 = vadd.f32 %v4642, %v4576
    %v4644 = vrot.slane %v4643, 4
    %v4645 = vadd.f32 %v4643, %v4644
    %v4646 = vrot.slane %v4645, 2
    %v4647 = vadd.f32 %v4645, %v4646
    %v4648 = vrot.slane %v4647, 1
    %v4649 = vadd.f32 %v4647, %v4648
    %v4650 = vmul.f32 %v4261, %v4261
    %v4651 = vmul.f32 %v4266, %v4266
    %v4652 = vmul.f32 %v4271, %v4271
    %v4653 = vmul.f32 %v4276, %v4276
    %v4654 = vmul.f32 %v4281, %v4281
    %v4655 = vmul.f32 %v4286, %v4286
    %v4656 = vmul.f32 %v4291, %v4291
    %v4657 = vmul.f32 %v4296, %v4296
    %v4658 = vmul.f32 %v4301, %v4301
    %v4659 = vmul.f32 %v4306, %v4306
    %v4660 = vmul.f32 %v4311, %v4311
    %v4661 = vmul.f32 %v4316, %v4316
    %v4662 = vmul.f32 %v4321, %v4321
    %v4663 = vmul.f32 %v4326, %v4326
    %v4664 = vmul.f32 %v4331, %v4331
    %v4665 = vmul.f32 %v4336, %v4336
    %v4666 = vmul.f32 %v4341, %v4341
    %v4667 = vmul.f32 %v4346, %v4346
    %v4668 = vmul.f32 %v4351, %v4351
    %v4669 = vmul.f32 %v4356, %v4356
    %v4670 = vmul.f32 %v4361, %v4361
    %v4671 = vmul.f32 %v4366, %v4366
    %v4672 = vmul.f32 %v4371, %v4371
    %v4673 = vmul.f32 %v4376, %v4376
    %v4674 = vmul.f32 %v4381, %v4381
    %v4675 = vmul.f32 %v4386, %v4386
    %v4676 = vmul.f32 %v4391, %v4391
    %v4677 = vmul.f32 %v4396, %v4396
    %v4678 = vmul.f32 %v4401, %v4401
    %v4679 = vmul.f32 %v4406, %v4406
    %v4680 = vmul.f32 %v4411, %v4411
    %v4681 = vmul.f32 %v4416, %v4416
    %v4682 = vmul.f32 %v4421, %v4421
    %v4683 = vmul.f32 %v4426, %v4426
    %v4684 = vmul.f32 %v4431, %v4431
    %v4685 = vmul.f32 %v4436, %v4436
    %v4686 = vmul.f32 %v4441, %v4441
    %v4687 = vmul.f32 %v4446, %v4446
    %v4688 = vmul.f32 %v4451, %v4451
    %v4689 = vmul.f32 %v4456, %v4456
    %v4690 = vmul.f32 %v4461, %v4461
    %v4691 = vmul.f32 %v4466, %v4466
    %v4692 = vmul.f32 %v4471, %v4471
    %v4693 = vmul.f32 %v4476, %v4476
    %v4694 = vmul.f32 %v4481, %v4481
    %v4695 = vmul.f32 %v4486, %v4486
    %v4696 = vmul.f32 %v4491, %v4491
    %v4697 = vmul.f32 %v4496, %v4496
    %v4698 = vmul.f32 %v4501, %v4501
    %v4699 = vmul.f32 %v4506, %v4506
    %v4700 = vmul.f32 %v4511, %v4511
    %v4701 = vmul.f32 %v4516, %v4516
    %v4702 = vmul.f32 %v4521, %v4521
    %v4703 = vmul.f32 %v4526, %v4526
    %v4704 = vmul.f32 %v4531, %v4531
    %v4705 = vmul.f32 %v4536, %v4536
    %v4706 = vmul.f32 %v4541, %v4541
    %v4707 = vmul.f32 %v4546, %v4546
    %v4708 = vmul.f32 %v4551, %v4551
    %v4709 = vmul.f32 %v4556, %v4556
    %v4710 = vmul.f32 %v4561, %v4561
    %v4711 = vmul.f32 %v4566, %v4566
    %v4712 = vmul.f32 %v4571, %v4571
    %v4713 = vmul.f32 %v4576, %v4576
    %v4714 = vadd.f32 %v4650, %v4651
    %v4715 = vadd.f32 %v4714, %v4652
    %v4716 = vadd.f32 %v4715, %v4653
    %v4717 = vadd.f32 %v4716, %v4654
    %v4718 = vadd.f32 %v4717, %v4655
    %v4719 = vadd.f32 %v4718, %v4656
    %v4720 = vadd.f32 %v4719, %v4657
    %v4721 = vadd.f32 %v4720, %v4658
    %v4722 = vadd.f32 %v4721, %v4659
    %v4723 = vadd.f32 %v4722, %v4660
    %v4724 = vadd.f32 %v4723, %v4661
    %v4725 = vadd.f32 %v4724, %v4662
    %v4726 = vadd.f32 %v4725, %v4663
    %v4727 = vadd.f32 %v4726, %v4664
    %v4728 = vadd.f32 %v4727, %v4665
    %v4729 = vadd.f32 %v4728, %v4666
    %v4730 = vadd.f32 %v4729, %v4667
    %v4731 = vadd.f32 %v4730, %v4668
    %v4732 = vadd.f32 %v4731, %v4669
    %v4733 = vadd.f32 %v4732, %v4670
    %v4734 = vadd.f32 %v4733, %v4671
    %v4735 = vadd.f32 %v4734, %v4672
    %v4736 = vadd.f32 %v4735, %v4673
    %v4737 = vadd.f32 %v4736, %v4674
    %v4738 = vadd.f32 %v4737, %v4675
    %v4739 = vadd.f32 %v4738, %v4676
    %v4740 = vadd.f32 %v4739, %v4677
    %v4741 = vadd.f32 %v4740, %v4678
    %v4742 = vadd.f32 %v4741, %v4679
    %v4743 = vadd.f32 %v4742, %v4680
    %v4744 = vadd.f32 %v4743, %v4681
    %v4745 = vadd.f32 %v4744, %v4682
    %v4746 = vadd.f32 %v4745, %v4683
    %v4747 = vadd.f32 %v4746, %v4684
    %v4748 = vadd.f32 %v4747, %v4685
    %v4749 = vadd.f32 %v4748, %v4686
    %v4750 = vadd.f32 %v4749, %v4687
    %v4751 = vadd.f32 %v4750, %v4688
    %v4752 = vadd.f32 %v4751, %v4689
    %v4753 = vadd.f32 %v4752, %v4690
    %v4754 = vadd.f32 %v4753, %v4691
    %v4755 = vadd.f32 %v4754, %v4692
    %v4756 = vadd.f32 %v4755, %v4693
    %v4757 = vadd.f32 %v4756, %v4694
    %v4758 = vadd.f32 %v4757, %v4695
    %v4759 = vadd.f32 %v4758, %v4696
    %v4760 = vadd.f32 %v4759, %v4697
    %v4761 = vadd.f32 %v4760, %v4698
    %v4762 = vadd.f32 %v4761, %v4699
    %v4763 = vadd.f32 %v4762, %v4700
    %v4764 = vadd.f32 %v4763, %v4701
    %v4765 = vadd.f32 %v4764, %v4702
    %v4766 = vadd.f32 %v4765, %v4703
    %v4767 = vadd.f32 %v4766, %v4704
    %v4768 = vadd.f32 %v4767, %v4705
    %v4769 = vadd.f32 %v4768, %v4706
    %v4770 = vadd.f32 %v4769, %v4707
    %v4771 = vadd.f32 %v4770, %v4708
    %v4772 = vadd.f32 %v4771, %v4709
    %v4773 = vadd.f32 %v4772, %v4710
    %v4774 = vadd.f32 %v4773, %v4711
    %v4775 = vadd.f32 %v4774, %v4712
    %v4776 = vadd.f32 %v4775, %v4713
    %v4777 = vrot.slane %v4776, 4
    %v4778 = vadd.f32 %v4776, %v4777
    %v4779 = vrot.slane %v4778, 2
    %v4780 = vadd.f32 %v4778, %v4779
    %v4781 = vrot.slane %v4780, 1
    %v4782 = vadd.f32 %v4780, %v4781
    %v4783 = vmul.f32 %v4649, 0.001953125
    %v4784 = vmul.f32 %v4782, 0.001953125
    %v4785 = vmul.f32 %v4783, %v4783
    %v4786 = vsub.f32 %v4784, %v4785
    %v4787 = vadd.f32 %v4786, 1e-05
    %v4788 = vrsqrt.pop %v4787
    %v4789 = vmul.f32 %v4579, %v4788
    %v4790 = vmul.f32 %v4783, %v4789
    %v4791 = vsub.f32 %v4580, %v4790
    %v4793 = vlaneseq
    %v4794 = vshrl.u32 %v4793, 7
    %v4795 = vsub.s32 0, %v4794
    %v4796 = vrot.slane %v4789, %v4795
    %v4798 = vmul.f32 %v4261, %v4796
    %v4799 = vmul.f32 %v4266, %v4796
    %v4800 = vmul.f32 %v4271, %v4796
    %v4801 = vmul.f32 %v4276, %v4796
    %v4802 = vmul.f32 %v4281, %v4796
    %v4803 = vmul.f32 %v4286, %v4796
    %v4804 = vmul.f32 %v4291, %v4796
    %v4805 = vmul.f32 %v4296, %v4796
    %v4806 = vmul.f32 %v4301, %v4796
    %v4807 = vmul.f32 %v4306, %v4796
    %v4808 = vmul.f32 %v4311, %v4796
    %v4809 = vmul.f32 %v4316, %v4796
    %v4810 = vmul.f32 %v4321, %v4796
    %v4811 = vmul.f32 %v4326, %v4796
    %v4812 = vmul.f32 %v4331, %v4796
    %v4813 = vmul.f32 %v4336, %v4796
    %v4814 = vmul.f32 %v4341, %v4796
    %v4815 = vmul.f32 %v4346, %v4796
    %v4816 = vmul.f32 %v4351, %v4796
    %v4817 = vmul.f32 %v4356, %v4796
    %v4818 = vmul.f32 %v4361, %v4796
    %v4819 = vmul.f32 %v4366, %v4796
    %v4820 = vmul.f32 %v4371, %v4796
    %v4821 = vmul.f32 %v4376, %v4796
    %v4822 = vmul.f32 %v4381, %v4796
    %v4823 = vmul.f32 %v4386, %v4796
    %v4824 = vmul.f32 %v4391, %v4796
    %v4825 = vmul.f32 %v4396, %v4796
    %v4826 = vmul.f32 %v4401, %v4796
    %v4827 = vmul.f32 %v4406, %v4796
    %v4828 = vmul.f32 %v4411, %v4796
    %v4829 = vmul.f32 %v4416, %v4796
    %v4830 = vmul.f32 %v4421, %v4796
    %v4831 = vmul.f32 %v4426, %v4796
    %v4832 = vmul.f32 %v4431, %v4796
    %v4833 = vmul.f32 %v4436, %v4796
    %v4834 = vmul.f32 %v4441, %v4796
    %v4835 = vmul.f32 %v4446, %v4796
    %v4836 = vmul.f32 %v4451, %v4796
    %v4837 = vmul.f32 %v4456, %v4796
    %v4838 = vmul.f32 %v4461, %v4796
    %v4839 = vmul.f32 %v4466, %v4796
    %v4840 = vmul.f32 %v4471, %v4796
    %v4841 = vmul.f32 %v4476, %v4796
    %v4842 = vmul.f32 %v4481, %v4796
    %v4843 = vmul.f32 %v4486, %v4796
    %v4844 = vmul.f32 %v4491, %v4796
    %v4845 = vmul.f32 %v4496, %v4796
    %v4846 = vmul.f32 %v4501, %v4796
    %v4847 = vmul.f32 %v4506, %v4796
    %v4848 = vmul.f32 %v4511, %v4796
    %v4849 = vmul.f32 %v4516, %v4796
    %v4850 = vmul.f32 %v4521, %v4796
    %v4851 = vmul.f32 %v4526, %v4796
    %v4852 = vmul.f32 %v4531, %v4796
    %v4853 = vmul.f32 %v4536, %v4796
    %v4854 = vmul.f32 %v4541, %v4796
    %v4855 = vmul.f32 %v4546, %v4796
    %v4856 = vmul.f32 %v4551, %v4796
    %v4857 = vmul.f32 %v4556, %v4796
    %v4858 = vmul.f32 %v4561, %v4796
    %v4859 = vmul.f32 %v4566, %v4796
    %v4860 = vmul.f32 %v4571, %v4796
    %v4861 = vmul.f32 %v4576, %v4796
    %v4863 = vlaneseq
    %v4864 = vshrl.u32 %v4863, 7
    %v4865 = vsub.s32 0, %v4864
    %v4866 = vrot.slane %v4791, %v4865
    %v4868 = vadd.f32 %v4798, %v4866
    %v4869 = vadd.f32 %v4799, %v4866
    %v4870 = vadd.f32 %v4800, %v4866
    %v4871 = vadd.f32 %v4801, %v4866
    %v4872 = vadd.f32 %v4802, %v4866
    %v4873 = vadd.f32 %v4803, %v4866
    %v4874 = vadd.f32 %v4804, %v4866
    %v4875 = vadd.f32 %v4805, %v4866
    %v4876 = vadd.f32 %v4806, %v4866
    %v4877 = vadd.f32 %v4807, %v4866
    %v4878 = vadd.f32 %v4808, %v4866
    %v4879 = vadd.f32 %v4809, %v4866
    %v4880 = vadd.f32 %v4810, %v4866
    %v4881 = vadd.f32 %v4811, %v4866
    %v4882 = vadd.f32 %v4812, %v4866
    %v4883 = vadd.f32 %v4813, %v4866
    %v4884 = vadd.f32 %v4814, %v4866
    %v4885 = vadd.f32 %v4815, %v4866
    %v4886 = vadd.f32 %v4816, %v4866
    %v4887 = vadd.f32 %v4817, %v4866
    %v4888 = vadd.f32 %v4818, %v4866
    %v4889 = vadd.f32 %v4819, %v4866
    %v4890 = vadd.f32 %v4820, %v4866
    %v4891 = vadd.f32 %v4821, %v4866
    %v4892 = vadd.f32 %v4822, %v4866
    %v4893 = vadd.f32 %v4823, %v4866
    %v4894 = vadd.f32 %v4824, %v4866
    %v4895 = vadd.f32 %v4825, %v4866
    %v4896 = vadd.f32 %v4826, %v4866
    %v4897 = vadd.f32 %v4827, %v4866
    %v4898 = vadd.f32 %v4828, %v4866
    %v4899 = vadd.f32 %v4829, %v4866
    %v4900 = vadd.f32 %v4830, %v4866
    %v4901 = vadd.f32 %v4831, %v4866
    %v4902 = vadd.f32 %v4832, %v4866
    %v4903 = vadd.f32 %v4833, %v4866
    %v4904 = vadd.f32 %v4834, %v4866
    %v4905 = vadd.f32 %v4835, %v4866
    %v4906 = vadd.f32 %v4836, %v4866
    %v4907 = vadd.f32 %v4837, %v4866
    %v4908 = vadd.f32 %v4838, %v4866
    %v4909 = vadd.f32 %v4839, %v4866
    %v4910 = vadd.f32 %v4840, %v4866
    %v4911 = vadd.f32 %v4841, %v4866
    %v4912 = vadd.f32 %v4842, %v4866
    %v4913 = vadd.f32 %v4843, %v4866
    %v4914 = vadd.f32 %v4844, %v4866
    %v4915 = vadd.f32 %v4845, %v4866
    %v4916 = vadd.f32 %v4846, %v4866
    %v4917 = vadd.f32 %v4847, %v4866
    %v4918 = vadd.f32 %v4848, %v4866
    %v4919 = vadd.f32 %v4849, %v4866
    %v4920 = vadd.f32 %v4850, %v4866
    %v4921 = vadd.f32 %v4851, %v4866
    %v4922 = vadd.f32 %v4852, %v4866
    %v4923 = vadd.f32 %v4853, %v4866
    %v4924 = vadd.f32 %v4854, %v4866
    %v4925 = vadd.f32 %v4855, %v4866
    %v4926 = vadd.f32 %v4856, %v4866
    %v4927 = vadd.f32 %v4857, %v4866
    %v4928 = vadd.f32 %v4858, %v4866
    %v4929 = vadd.f32 %v4859, %v4866
    %v4930 = vadd.f32 %v4860, %v4866
    %v4931 = vadd.f32 %v4861, %v4866
    %v4932 = vadd.f32 %v4868, %v91
    %v4933 = vadd.f32 %v4869, %v92
    %v4934 = vadd.f32 %v4870, %v93
    %v4935 = vadd.f32 %v4871, %v94
    %v4936 = vadd.f32 %v4872, %v95
    %v4937 = vadd.f32 %v4873, %v96
    %v4938 = vadd.f32 %v4874, %v97
    %v4939 = vadd.f32 %v4875, %v98
    %v4940 = vadd.f32 %v4876, %v99
    %v4941 = vadd.f32 %v4877, %v100
    %v4942 = vadd.f32 %v4878, %v101
    %v4943 = vadd.f32 %v4879, %v102
    %v4944 = vadd.f32 %v4880, %v103
    %v4945 = vadd.f32 %v4881, %v104
    %v4946 = vadd.f32 %v4882, %v105
    %v4947 = vadd.f32 %v4883, %v106
    %v4948 = vadd.f32 %v4884, %v107
    %v4949 = vadd.f32 %v4885, %v108
    %v4950 = vadd.f32 %v4886, %v109
    %v4951 = vadd.f32 %v4887, %v110
    %v4952 = vadd.f32 %v4888, %v111
    %v4953 = vadd.f32 %v4889, %v112
    %v4954 = vadd.f32 %v4890, %v113
    %v4955 = vadd.f32 %v4891, %v114
    %v4956 = vadd.f32 %v4892, %v115
    %v4957 = vadd.f32 %v4893, %v116
    %v4958 = vadd.f32 %v4894, %v117
    %v4959 = vadd.f32 %v4895, %v118
    %v4960 = vadd.f32 %v4896, %v119
    %v4961 = vadd.f32 %v4897, %v120
    %v4962 = vadd.f32 %v4898, %v121
    %v4963 = vadd.f32 %v4899, %v122
    %v4964 = vadd.f32 %v4900, %v123
    %v4965 = vadd.f32 %v4901, %v124
    %v4966 = vadd.f32 %v4902, %v125
    %v4967 = vadd.f32 %v4903, %v126
    %v4968 = vadd.f32 %v4904, %v127
    %v4969 = vadd.f32 %v4905, %v128
    %v4970 = vadd.f32 %v4906, %v129
    %v4971 = vadd.f32 %v4907, %v130
    %v4972 = vadd.f32 %v4908, %v131
    %v4973 = vadd.f32 %v4909, %v132
    %v4974 = vadd.f32 %v4910, %v133
    %v4975 = vadd.f32 %v4911, %v134
    %v4976 = vadd.f32 %v4912, %v135
    %v4977 = vadd.f32 %v4913, %v136
    %v4978 = vadd.f32 %v4914, %v137
    %v4979 = vadd.f32 %v4915, %v138
    %v4980 = vadd.f32 %v4916, %v139
    %v4981 = vadd.f32 %v4917, %v140
    %v4982 = vadd.f32 %v4918, %v141
    %v4983 = vadd.f32 %v4919, %v142
    %v4984 = vadd.f32 %v4920, %v143
    %v4985 = vadd.f32 %v4921, %v144
    %v4986 = vadd.f32 %v4922, %v145
    %v4987 = vadd.f32 %v4923, %v146
    %v4988 = vadd.f32 %v4924, %v147
    %v4989 = vadd.f32 %v4925, %v148
    %v4990 = vadd.f32 %v4926, %v149
    %v4991 = vadd.f32 %v4927, %v150
    %v4992 = vadd.f32 %v4928, %v151
    %v4993 = vadd.f32 %v4929, %v152
    %v4994 = vadd.f32 %v4930, %v153
    %v4995 = vadd.f32 %v4931, %v154
    %v4996 = vmax.f32 %v4932, 0.0
    %v4997 = vmax.f32 %v4933, 0.0
    %v4998 = vmax.f32 %v4934, 0.0
    %v4999 = vmax.f32 %v4935, 0.0
    %v5000 = vmax.f32 %v4936, 0.0
    %v5001 = vmax.f32 %v4937, 0.0
    %v5002 = vmax.f32 %v4938, 0.0
    %v5003 = vmax.f32 %v4939, 0.0
    %v5004 = vmax.f32 %v4940, 0.0
    %v5005 = vmax.f32 %v4941, 0.0
    %v5006 = vmax.f32 %v4942, 0.0
    %v5007 = vmax.f32 %v4943, 0.0
    %v5008 = vmax.f32 %v4944, 0.0
    %v5009 = vmax.f32 %v4945, 0.0
    %v5010 = vmax.f32 %v4946, 0.0
    %v5011 = vmax.f32 %v4947, 0.0
    %v5012 = vmax.f32 %v4948, 0.0
    %v5013 = vmax.f32 %v4949, 0.0
    %v5014 = vmax.f32 %v4950, 0.0
    %v5015 = vmax.f32 %v4951, 0.0
    %v5016 = vmax.f32 %v4952, 0.0
    %v5017 = vmax.f32 %v4953, 0.0
    %v5018 = vmax.f32 %v4954, 0.0
    %v5019 = vmax.f32 %v4955, 0.0
    %v5020 = vmax.f32 %v4956, 0.0
    %v5021 = vmax.f32 %v4957, 0.0
    %v5022 = vmax.f32 %v4958, 0.0
    %v5023 = vmax.f32 %v4959, 0.0
    %v5024 = vmax.f32 %v4960, 0.0
    %v5025 = vmax.f32 %v4961, 0.0
    %v5026 = vmax.f32 %v4962, 0.0
    %v5027 = vmax.f32 %v4963, 0.0
    %v5028 = vmax.f32 %v4964, 0.0
    %v5029 = vmax.f32 %v4965, 0.0
    %v5030 = vmax.f32 %v4966, 0.0
    %v5031 = vmax.f32 %v4967, 0.0
    %v5032 = vmax.f32 %v4968, 0.0
    %v5033 = vmax.f32 %v4969, 0.0
    %v5034 = vmax.f32 %v4970, 0.0
    %v5035 = vmax.f32 %v4971, 0.0
    %v5036 = vmax.f32 %v4972, 0.0
    %v5037 = vmax.f32 %v4973, 0.0
    %v5038 = vmax.f32 %v4974, 0.0
    %v5039 = vmax.f32 %v4975, 0.0
    %v5040 = vmax.f32 %v4976, 0.0
    %v5041 = vmax.f32 %v4977, 0.0
    %v5042 = vmax.f32 %v4978, 0.0
    %v5043 = vmax.f32 %v4979, 0.0
    %v5044 = vmax.f32 %v4980, 0.0
    %v5045 = vmax.f32 %v4981, 0.0
    %v5046 = vmax.f32 %v4982, 0.0
    %v5047 = vmax.f32 %v4983, 0.0
    %v5048 = vmax.f32 %v4984, 0.0
    %v5049 = vmax.f32 %v4985, 0.0
    %v5050 = vmax.f32 %v4986, 0.0
    %v5051 = vmax.f32 %v4987, 0.0
    %v5052 = vmax.f32 %v4988, 0.0
    %v5053 = vmax.f32 %v4989, 0.0
    %v5054 = vmax.f32 %v4990, 0.0
    %v5055 = vmax.f32 %v4991, 0.0
    %v5056 = vmax.f32 %v4992, 0.0
    %v5057 = vmax.f32 %v4993, 0.0
    %v5058 = vmax.f32 %v4994, 0.0
    %v5059 = vmax.f32 %v4995, 0.0
    %5060 = vst [vmem:[#allocation11] sm:$0xff] %v4996
    %5061 = vst [vmem:[#allocation11 + $0x8] sm:$0xff] %v4997
    %5062 = vst [vmem:[#allocation11 + $0x10] sm:$0xff] %v4998
    %5063 = vst [vmem:[#allocation11 + $0x18] sm:$0xff] %v4999
    %5064 = vst [vmem:[#allocation11 + $0x20] sm:$0xff] %v5000
    %5065 = vst [vmem:[#allocation11 + $0x28] sm:$0xff] %v5001
    %5066 = vst [vmem:[#allocation11 + $0x30] sm:$0xff] %v5002
    %5067 = vst [vmem:[#allocation11 + $0x38] sm:$0xff] %v5003
    %5068 = vst [vmem:[#allocation11 + $0x40] sm:$0xff] %v5004
    %5069 = vst [vmem:[#allocation11 + $0x48] sm:$0xff] %v5005
    %5070 = vst [vmem:[#allocation11 + $0x50] sm:$0xff] %v5006
    %5071 = vst [vmem:[#allocation11 + $0x58] sm:$0xff] %v5007
    %5072 = vst [vmem:[#allocation11 + $0x60] sm:$0xff] %v5008
    %5073 = vst [vmem:[#allocation11 + $0x68] sm:$0xff] %v5009
    %5074 = vst [vmem:[#allocation11 + $0x70] sm:$0xff] %v5010
    %5075 = vst [vmem:[#allocation11 + $0x78] sm:$0xff] %v5011
    %5076 = vst [vmem:[#allocation11 + $0x80] sm:$0xff] %v5012
    %5077 = vst [vmem:[#allocation11 + $0x88] sm:$0xff] %v5013
    %5078 = vst [vmem:[#allocation11 + $0x90] sm:$0xff] %v5014
    %5079 = vst [vmem:[#allocation11 + $0x98] sm:$0xff] %v5015
    %5080 = vst [vmem:[#allocation11 + $0xa0] sm:$0xff] %v5016
    %5081 = vst [vmem:[#allocation11 + $0xa8] sm:$0xff] %v5017
    %5082 = vst [vmem:[#allocation11 + $0xb0] sm:$0xff] %v5018
    %5083 = vst [vmem:[#allocation11 + $0xb8] sm:$0xff] %v5019
    %5084 = vst [vmem:[#allocation11 + $0xc0] sm:$0xff] %v5020
    %5085 = vst [vmem:[#allocation11 + $0xc8] sm:$0xff] %v5021
    %5086 = vst [vmem:[#allocation11 + $0xd0] sm:$0xff] %v5022
    %5087 = vst [vmem:[#allocation11 + $0xd8] sm:$0xff] %v5023
    %5088 = vst [vmem:[#allocation11 + $0xe0] sm:$0xff] %v5024
    %5089 = vst [vmem:[#allocation11 + $0xe8] sm:$0xff] %v5025
    %5090 = vst [vmem:[#allocation11 + $0xf0] sm:$0xff] %v5026
    %5091 = vst [vmem:[#allocation11 + $0xf8] sm:$0xff] %v5027
    %5092 = vst [vmem:[#allocation11 + $0x100] sm:$0xff] %v5028
    %5093 = vst [vmem:[#allocation11 + $0x108] sm:$0xff] %v5029
    %5094 = vst [vmem:[#allocation11 + $0x110] sm:$0xff] %v5030
    %5095 = vst [vmem:[#allocation11 + $0x118] sm:$0xff] %v5031
    %5096 = vst [vmem:[#allocation11 + $0x120] sm:$0xff] %v5032
    %5097 = vst [vmem:[#allocation11 + $0x128] sm:$0xff] %v5033
    %5098 = vst [vmem:[#allocation11 + $0x130] sm:$0xff] %v5034
    %5099 = vst [vmem:[#allocation11 + $0x138] sm:$0xff] %v5035
    %5100 = vst [vmem:[#allocation11 + $0x140] sm:$0xff] %v5036
    %5101 = vst [vmem:[#allocation11 + $0x148] sm:$0xff] %v5037
    %5102 = vst [vmem:[#allocation11 + $0x150] sm:$0xff] %v5038
    %5103 = vst [vmem:[#allocation11 + $0x158] sm:$0xff] %v5039
    %5104 = vst [vmem:[#allocation11 + $0x160] sm:$0xff] %v5040
    %5105 = vst [vmem:[#allocation11 + $0x168] sm:$0xff] %v5041
    %5106 = vst [vmem:[#allocation11 + $0x170] sm:$0xff] %v5042
    %5107 = vst [vmem:[#allocation11 + $0x178] sm:$0xff] %v5043
    %5108 = vst [vmem:[#allocation11 + $0x180] sm:$0xff] %v5044
    %5109 = vst [vmem:[#allocation11 + $0x188] sm:$0xff] %v5045
    %5110 = vst [vmem:[#allocation11 + $0x190] sm:$0xff] %v5046
    %5111 = vst [vmem:[#allocation11 + $0x198] sm:$0xff] %v5047
    %5112 = vst [vmem:[#allocation11 + $0x1a0] sm:$0xff] %v5048
    %5113 = vst [vmem:[#allocation11 + $0x1a8] sm:$0xff] %v5049
    %5114 = vst [vmem:[#allocation11 + $0x1b0] sm:$0xff] %v5050
    %5115 = vst [vmem:[#allocation11 + $0x1b8] sm:$0xff] %v5051
    %5116 = vst [vmem:[#allocation11 + $0x1c0] sm:$0xff] %v5052
    %5117 = vst [vmem:[#allocation11 + $0x1c8] sm:$0xff] %v5053
    %5118 = vst [vmem:[#allocation11 + $0x1d0] sm:$0xff] %v5054
    %5119 = vst [vmem:[#allocation11 + $0x1d8] sm:$0xff] %v5055
    %5120 = vst [vmem:[#allocation11 + $0x1e0] sm:$0xff] %v5056
    %5121 = vst [vmem:[#allocation11 + $0x1e8] sm:$0xff] %v5057
    %5122 = vst [vmem:[#allocation11 + $0x1f0] sm:$0xff] %v5058
    %5123 = vst [vmem:[#allocation11 + $0x1f8] sm:$0xff] %v5059
    // Predicated region
    $region58: #{tpu_custom_call.1} parent=1 // pred_check
      _
    $region59: #{tpu_custom_call.1} parent=1 // pred_check_branch
      %5125 = sbr.rel (0) target = $region61
    $region60: #{tpu_custom_call.1} parent=1 // pred_region
      %s5127 = ssub.s32 8192, 8192
      %5128 = vsyncadd [#allocation5], %s5127
      %s5129 = sshll.u32 [#allocation11], 4
      %s5130 = int_to_ptr.vmem [resolvable:$true] %s5129
      %5135 = dma.vmem_to_hbm [thread:$0]  %s5130, 8192, %s10, [#allocation5], 128, 128, 8
    $region61: #{tpu_custom_call.1} parent=1 // pred_fallthru
      _
    // Predicated region
    $region62: #{tpu_custom_call.1} parent=1 // pred_check
      _
    $region63: #{tpu_custom_call.1} parent=1 // pred_check_branch
      %5137 = sbr.rel (0) target = $region65
    $region64: #{tpu_custom_call.1} parent=1 // pred_region
      %5138 = dma.done [#allocation5], 8192
    $region65: #{tpu_custom_call.1} parent=1 // pred_fallthru
      _
    %5139 = vsyncpa [#allocation4], 1
    %5140 = vsyncpa [#allocation7], 1
    %5141 = vsyncpa [#allocation10], 1
    %5142 = vsyncpa [#allocation5], 1

</llo_original>
